<compile_context>
chip_gen: v6e
topology: v6e:2x2x1
jax: 0.10.0
libtpu: 0.0.40
codegen_flags: <defaults>
</compile_context>

<pallas_src>
import functools

import jax
import jax.numpy as jnp
from jax import lax
from jax.experimental import pallas as pl
from jax.experimental.pallas import tpu as pltpu


# ----------------------------------------------------------------------------
# Fused Pallas kernel
# ----------------------------------------------------------------------------
def _lstm_cell(gates, c, H):
    # Direction-fused cell: H = 2*hidden, gate blocks are [fwd|bwd] lane-wise.
    i = jax.nn.sigmoid(gates[:, 0:H])
    f = jax.nn.sigmoid(gates[:, H:2 * H])
    g = jnp.tanh(gates[:, 2 * H:3 * H])
    o = jax.nn.sigmoid(gates[:, 3 * H:4 * H])
    c_new = f * c + i * g
    h_new = o * jnp.tanh(c_new)
    return h_new, c_new


def _yuan_kernel(x_ref, wih1_ref, whh1_ref, b1_ref,
                 wih2a_ref, wih2b_ref, whh2_ref, b2_ref,
                 wfc1_ref, bfc1_ref, wfc2_ref, bfc2_ref,
                 out_ref,
                 gx1_sc, gx2_sc,
                 *, T, B, HS1, HS2):
    f32 = jnp.float32
    bf16 = jnp.bfloat16
    H1, H2 = 2 * HS1, 2 * HS2          # direction-fused hidden widths

    # ---- layer 1: hoisted input projection, written per-t into aligned -----
    # ---- (T, B, 8H) scratch tiles (off the serial path) --------------------
    wih1 = wih1_ref[...]
    b1 = b1_ref[...]
    for t in range(T):                  # static, T small
        gx1_sc[t] = jnp.dot(x_ref[t], wih1, preferred_element_type=f32) + b1

    # static lane mask: first HS1 lanes of each 2H gate block = forward dir
    lane1 = lax.broadcasted_iota(jnp.int32, (B, 4 * H1), 1)
    fwd1 = (lane1 % H1) < HS1

    whh1 = whh1_ref[...]
    h1 = jnp.zeros((B, H1), f32)
    c1 = jnp.zeros((B, H1), f32)
    h1_steps = []
    for t in range(T):                  # serial recurrence (fwd+bwd fused)
        rt = T - 1 - t
        gx = jnp.where(fwd1, gx1_sc[t], gx1_sc[rt])
        gh = jnp.dot(h1.astype(bf16), whh1, preferred_element_type=f32)
        h1, c1 = _lstm_cell(gx + gh, c1, H1)
        h1_steps.append(h1)             # h1 = [h_fwd(t) | h_bwd(rt)]

    # ---- layer 2: hoisted input projection from layer-1 step outputs -------
    # out1(time) = [h_fwd(time) | h_bwd(time)]
    #            -> gx2[time] = h_step[time] @ W_a + h_step[T-1-time] @ W_b
    # (W_a / W_b are row-zeroed halves of the fused w_ih2, so no lane slices.)
    wih2a = wih2a_ref[...]
    wih2b = wih2b_ref[...]
    b2 = b2_ref[...]
    h1b = [h.astype(bf16) for h in h1_steps]
    for t in range(T):
        rt = T - 1 - t
        gx2_sc[t] = (jnp.dot(h1b[t], wih2a, preferred_element_type=f32)
                     + jnp.dot(h1b[rt], wih2b, preferred_element_type=f32)
                     + b2)

    lane2 = lax.broadcasted_iota(jnp.int32, (B, 4 * H2), 1)
    fwd2 = (lane2 % H2) < HS2

    whh2 = whh2_ref[...]
    h2 = jnp.zeros((B, H2), f32)
    c2 = jnp.zeros((B, H2), f32)
    for t in range(T):
        rt = T - 1 - t
        gx = jnp.where(fwd2, gx2_sc[t], gx2_sc[rt])
        gh = jnp.dot(h2.astype(bf16), whh2, preferred_element_type=f32)
        h2, c2 = _lstm_cell(gx + gh, c2, H2)

    # h2 == [h_fwd_final | h_bwd_final] == h_n.permute(1,0,2).reshape(B,-1)
    # (drop_lstm / drop_fc1 are identity in eval mode)
    z1 = jnp.maximum(jnp.dot(h2, wfc1_ref[...], preferred_element_type=f32)
                     + bfc1_ref[...], 0.0)
    z2 = (jnp.dot(z1, wfc2_ref[...], preferred_element_type=f32)
          + bfc2_ref[...])
    out_ref[...] = jax.nn.sigmoid(z2)


def yuan_fused(x, fp, T, B, HS1, HS2):
    """x: (T, B, E) bf16 time-major embedded input."""
    _, _, E = x.shape
    DENSE = fp["w_fc1"].shape[1]
    # lane-dense gate assumption (8H multiple of 128) -- layout guarantee
    assert (8 * HS1) % 128 == 0 and (8 * HS2) % 128 == 0, "gates not lane-dense"
    kernel = functools.partial(_yuan_kernel, T=T, B=B, HS1=HS1, HS2=HS2)
    return pl.pallas_call(
        kernel,
        out_shape=jax.ShapeDtypeStruct((B, 1), jnp.float32),
        grid_spec=pltpu.PrefetchScalarGridSpec(
            num_scalar_prefetch=0,
            grid=(1,),
            in_specs=[
                pl.BlockSpec((T, B, E), lambda i: (0, 0, 0)),
                pl.BlockSpec((E, 8 * HS1), lambda i: (0, 0)),
                pl.BlockSpec((2 * HS1, 8 * HS1), lambda i: (0, 0)),
                pl.BlockSpec((1, 8 * HS1), lambda i: (0, 0)),
                pl.BlockSpec((2 * HS1, 8 * HS2), lambda i: (0, 0)),
                pl.BlockSpec((2 * HS1, 8 * HS2), lambda i: (0, 0)),
                pl.BlockSpec((2 * HS2, 8 * HS2), lambda i: (0, 0)),
                pl.BlockSpec((1, 8 * HS2), lambda i: (0, 0)),
                pl.BlockSpec((2 * HS2, DENSE), lambda i: (0, 0)),
                pl.BlockSpec((1, DENSE), lambda i: (0, 0)),
                pl.BlockSpec((DENSE, 1), lambda i: (0, 0)),
                pl.BlockSpec((1, 1), lambda i: (0, 0)),
            ],
            out_specs=pl.BlockSpec((B, 1), lambda i: (0, 0)),
            scratch_shapes=[
                pltpu.VMEM((T, B, 8 * HS1), jnp.float32),  # layer-1 gx
                pltpu.VMEM((T, B, 8 * HS2), jnp.float32),  # layer-2 gx
            ],
        ),
        compiler_params=pltpu.CompilerParams(
            dimension_semantics=("arbitrary",),
            vmem_limit_bytes=32 * 1024 * 1024),
        # TODO(synk): for v7x a leading parallel grid axis over batch tiles
        # would use both TensorCores; B=2 here makes it moot.
    )(x, fp["w_ih1"], fp["w_hh1"], fp["b1"],
      fp["w_ih2a"], fp["w_ih2b"], fp["w_hh2"], fp["b2"],
      fp["w_fc1"], fp["b_fc1"], fp["w_fc2"], fp["b_fc2"])


# ----------------------------------------------------------------------------
# Parameter fusion (direction-interleaved gate columns, bf16 matmul operands)
# ----------------------------------------------------------------------------
def _interleave_gates(wf, wb, H):
    """(X,4H)+(X,4H) with gate order [i,f,g,o] -> (X,8H) [i_f,i_b,f_f,f_b,...]."""
    parts = []
    for g in range(4):
        parts.append(wf[:, g * H:(g + 1) * H])
        parts.append(wb[:, g * H:(g + 1) * H])
    return jnp.concatenate(parts, axis=1)


def fuse_params(p):
    HS1 = p["w_hh1_f"].shape[0]
    HS2 = p["w_hh2_f"].shape[0]
    bf16, f32 = jnp.bfloat16, jnp.float32

    zh1 = jnp.zeros_like(p["w_hh1_f"])
    zh2 = jnp.zeros_like(p["w_hh2_f"])
    # block-diagonal-in-direction recurrent weights, interleaved gate columns
    w_hh1 = jnp.concatenate(
        [_interleave_gates(p["w_hh1_f"], zh1, HS1),
         _interleave_gates(zh1, p["w_hh1_b"], HS1)], axis=0)
    w_hh2 = jnp.concatenate(
        [_interleave_gates(p["w_hh2_f"], zh2, HS2),
         _interleave_gates(zh2, p["w_hh2_b"], HS2)], axis=0)

    # layer-2 input weights split into row-zeroed halves so the kernel can
    # form out1(t) = [h_fwd(t)|h_bwd(t)] without any lane slice/concat.
    w_ih2 = _interleave_gates(p["w_ih2_f"], p["w_ih2_b"], HS2)   # (2*HS1, 8*HS2)
    zrows = jnp.zeros((HS1, 8 * HS2), f32)
    w_ih2a = jnp.concatenate([w_ih2[:HS1], zrows], axis=0)
    w_ih2b = jnp.concatenate([zrows, w_ih2[HS1:]], axis=0)

    return {
        "embedding": p["embedding"],
        "w_ih1": _interleave_gates(p["w_ih1_f"], p["w_ih1_b"], HS1).astype(bf16),
        "w_hh1": w_hh1.astype(bf16),
        "b1": _interleave_gates(p["b1_f"], p["b1_b"], HS1).astype(f32),
        "w_ih2a": w_ih2a.astype(bf16),
        "w_ih2b": w_ih2b.astype(bf16),
        "w_hh2": w_hh2.astype(bf16),
        "b2": _interleave_gates(p["b2_f"], p["b2_b"], HS2).astype(f32),
        "w_fc1": p["w_fc1"].astype(f32), "b_fc1": p["b_fc1"].astype(f32),
        "w_fc2": p["w_fc2"].astype(f32), "b_fc2": p["b_fc2"].astype(f32),
    }


# ----------------------------------------------------------------------------
# Model wrapper
# ----------------------------------------------------------------------------
def yuan_forward(token_ids, fp):
    """token_ids: (B, T) int32 (all sequences assumed length max_len)."""
    B, T = token_ids.shape
    HS1 = fp["w_hh1"].shape[0] // 2
    HS2 = fp["w_hh2"].shape[0] // 2
    ids_tm = jnp.transpose(token_ids)                              # (T, B)
    x = jnp.take(fp["embedding"], ids_tm, axis=0).astype(jnp.bfloat16)
    return yuan_fused(x, fp, T, B, HS1, HS2)


# ----------------------------------------------------------------------------
# Pure-JAX reference (correctness check, f32 per-direction)
# ----------------------------------------------------------------------------
def _lstm_dir_ref(x, w_ih, w_hh, b):
    T, B, D = x.shape
    H = w_hh.shape[0]

    def step(carry, x_t):
        h, c = carry
        gates = x_t @ w_ih + h @ w_hh + b
        i = jax.nn.sigmoid(gates[:, :H])
        f = jax.nn.sigmoid(gates[:, H:2 * H])
        g = jnp.tanh(gates[:, 2 * H:3 * H])
        o = jax.nn.sigmoid(gates[:, 3 * H:])
        c = f * c + i * g
        h = o * jnp.tanh(c)
        return (h, c), h

    init = (jnp.zeros((B, H), jnp.float32), jnp.zeros((B, H), jnp.float32))
    _, outs = lax.scan(step, init, x)
    return outs


def yuan_forward_ref(token_ids, p):
    emb = jnp.take(p["embedding"], token_ids, axis=0)
    x = jnp.transpose(emb, (1, 0, 2)).astype(jnp.float32)
    o1f = _lstm_dir_ref(x, p["w_ih1_f"], p["w_hh1_f"], p["b1_f"])
    o1b = jnp.flip(_lstm_dir_ref(jnp.flip(x, 0), p["w_ih1_b"], p["w_hh1_b"],
                                 p["b1_b"]), 0)
    out1 = jnp.concatenate([o1f, o1b], axis=-1)
    o2f = _lstm_dir_ref(out1, p["w_ih2_f"], p["w_hh2_f"], p["b2_f"])
    o2b_rev = _lstm_dir_ref(jnp.flip(out1, 0), p["w_ih2_b"], p["w_hh2_b"],
                            p["b2_b"])
    h_n3 = jnp.concatenate([o2f[-1], o2b_rev[-1]], axis=-1)
    z1 = jnp.maximum(h_n3 @ p["w_fc1"] + p["b_fc1"], 0.0)
    return jax.nn.sigmoid(z1 @ p["w_fc2"] + p["b_fc2"])


# ----------------------------------------------------------------------------
# Deterministic parameter construction
# ----------------------------------------------------------------------------
def init_params(key, vocab, emb_dim, hs1, hs2, dense_out):
    keys = jax.random.split(key, 17)
    u = lambda k, shape, s=0.1: (jax.random.uniform(k, shape, jnp.float32,
                                                    -1.0, 1.0) * s)
    return {
        "embedding": u(keys[0], (vocab, emb_dim), 1.0),
        # lstm1 forward / backward
        "w_ih1_f": u(keys[1], (emb_dim, 4 * hs1)),
        "w_hh1_f": u(keys[2], (hs1, 4 * hs1)),
        "b1_f":    u(keys[3], (1, 4 * hs1)),
        "w_ih1_b": u(keys[4], (emb_dim, 4 * hs1)),
        "w_hh1_b": u(keys[5], (hs1, 4 * hs1)),
        "b1_b":    u(keys[6], (1, 4 * hs1)),
        # lstm2 forward / backward (input dim = 2*hs1)
        "w_ih2_f": u(keys[7], (2 * hs1, 4 * hs2)),
        "w_hh2_f": u(keys[8], (hs2, 4 * hs2)),
        "b2_f":    u(keys[9], (1, 4 * hs2)),
        "w_ih2_b": u(keys[10], (2 * hs1, 4 * hs2)),
        "w_hh2_b": u(keys[11], (hs2, 4 * hs2)),
        "b2_b":    u(keys[12], (1, 4 * hs2)),
        # FC head
        "w_fc1":   u(keys[13], (2 * hs2, dense_out)),
        "b_fc1":   u(keys[14], (1, dense_out)),
        "w_fc2":   u(keys[15], (dense_out, 1)),
        "b_fc2":   u(keys[16], (1, 1)),
    }


if __name__ == "__main__":
    # layer_num=1, bidirectional=True (required so fc1 input 2*hs2 matches the
    # h_n reshape in the original module).
    B, T = 2, 8
    VOCAB, EMB = 50, 32
    HS1, HS2, DENSE = 16, 16, 32

    key = jax.random.PRNGKey(0)
    k_tok, k_par = jax.random.split(key)
    token_ids = jax.random.randint(k_tok, (B, T), 0, VOCAB, dtype=jnp.int32)
    params = init_params(k_par, VOCAB, EMB, HS1, HS2, DENSE)
    fused = fuse_params(params)

    out = jax.block_until_ready(jax.jit(yuan_forward)(token_ids, fused))
    assert out.shape == (B, 1), out.shape

    ref = jax.block_until_ready(yuan_forward_ref(token_ids, params))
    # bf16 matmul operands (f32 accumulate, f32 gate math) -> relaxed tol.
    assert jnp.allclose(out, ref, atol=2e-2, rtol=2e-2), (out, ref)

    # TODO(synk): pack_sequence with ragged lengths not modeled; all sequences
    # are assumed to have length max_len (equal-length batch).
    print("KERNEL_OK")
</pallas_src>

<mosaic_0001>
module attributes {stable_mosaic.version = 11 : i64} {
  func.func @_yuan_kernel(%arg0: i32, %arg1: memref<8x2x32xbf16, #tpu.memory_space<vmem>>, %arg2: memref<32x128xbf16, #tpu.memory_space<vmem>>, %arg3: memref<32x128xbf16, #tpu.memory_space<vmem>>, %arg4: memref<1x128xf32, #tpu.memory_space<vmem>>, %arg5: memref<32x128xbf16, #tpu.memory_space<vmem>>, %arg6: memref<32x128xbf16, #tpu.memory_space<vmem>>, %arg7: memref<32x128xbf16, #tpu.memory_space<vmem>>, %arg8: memref<1x128xf32, #tpu.memory_space<vmem>>, %arg9: memref<32x32xf32, #tpu.memory_space<vmem>>, %arg10: memref<1x32xf32, #tpu.memory_space<vmem>>, %arg11: memref<32x1xf32, #tpu.memory_space<vmem>>, %arg12: memref<1x1xf32, #tpu.memory_space<vmem>>, %arg13: memref<2x1xf32, #tpu.memory_space<vmem>>, %arg14: memref<8x2x128xf32, #tpu.memory_space<vmem>>, %arg15: memref<8x2x128xf32, #tpu.memory_space<vmem>>) attributes {dimension_semantics = [#tpu.dimension_semantics<arbitrary>], iteration_bounds = array<i64: 1>, scalar_prefetch = 0 : i64, scratch_operands = 2 : i64, tpu.core_type = #tpu.core_type<tc>, window_params = [{pipeline_mode = #tpu.pipeline_mode<synchronous>, transform_indices = @transform_0, window_bounds = array<i64: 8, 2, 32>}, {pipeline_mode = #tpu.pipeline_mode<synchronous>, transform_indices = @transform_1, window_bounds = array<i64: 32, 128>}, {pipeline_mode = #tpu.pipeline_mode<synchronous>, transform_indices = @transform_2, window_bounds = array<i64: 32, 128>}, {pipeline_mode = #tpu.pipeline_mode<synchronous>, transform_indices = @transform_3, window_bounds = array<i64: 1, 128>}, {pipeline_mode = #tpu.pipeline_mode<synchronous>, transform_indices = @transform_4, window_bounds = array<i64: 32, 128>}, {pipeline_mode = #tpu.pipeline_mode<synchronous>, transform_indices = @transform_5, window_bounds = array<i64: 32, 128>}, {pipeline_mode = #tpu.pipeline_mode<synchronous>, transform_indices = @transform_6, window_bounds = array<i64: 32, 128>}, {pipeline_mode = #tpu.pipeline_mode<synchronous>, transform_indices = @transform_7, window_bounds = array<i64: 1, 128>}, {pipeline_mode = #tpu.pipeline_mode<synchronous>, transform_indices = @transform_8, window_bounds = array<i64: 32, 32>}, {pipeline_mode = #tpu.pipeline_mode<synchronous>, transform_indices = @transform_9, window_bounds = array<i64: 1, 32>}, {pipeline_mode = #tpu.pipeline_mode<synchronous>, transform_indices = @transform_10, window_bounds = array<i64: 32, 1>}, {pipeline_mode = #tpu.pipeline_mode<synchronous>, transform_indices = @transform_11, window_bounds = array<i64: 1, 1>}, {pipeline_mode = #tpu.pipeline_mode<synchronous>, transform_indices = @transform_12, window_bounds = array<i64: 2, 1>}]} {
    %c0 = arith.constant 0 : index
    %c0_0 = arith.constant 0 : index
    %0 = vector.load %arg2[%c0, %c0_0] : memref<32x128xbf16, #tpu.memory_space<vmem>>, vector<32x128xbf16>
    %c0_1 = arith.constant 0 : index
    %c0_2 = arith.constant 0 : index
    %1 = vector.load %arg4[%c0_1, %c0_2] : memref<1x128xf32, #tpu.memory_space<vmem>>, vector<1x128xf32>
    %c0_3 = arith.constant 0 : index
    %c0_4 = arith.constant 0 : index
    %c0_5 = arith.constant 0 : index
    %2 = vector.load %arg1[%c0_3, %c0_4, %c0_5] : memref<8x2x32xbf16, #tpu.memory_space<vmem>>, vector<1x2x32xbf16>
    %3 = vector.shape_cast %2 : vector<1x2x32xbf16> to vector<2x32xbf16>
    %cst = arith.constant dense<0.000000e+00> : vector<2x128xf32>
    %4 = tpu.matmul %3, %0, %cst {dimension_numbers = #tpu.dot_dimension_numbers<[1], [0], [0], [1], [0, 0, 1, 1], [], []>} : vector<2x32xbf16>, vector<32x128xbf16>, vector<2x128xf32> -> vector<2x128xf32>
    %5 = vector.broadcast %1 : vector<1x128xf32> to vector<2x128xf32>
    %6 = arith.addf %4, %5 : vector<2x128xf32>
    %c0_6 = arith.constant 0 : index
    %c0_7 = arith.constant 0 : index
    %c0_8 = arith.constant 0 : index
    %7 = vector.load %arg14[%c0_6, %c0_7, %c0_8] : memref<8x2x128xf32, #tpu.memory_space<vmem>>, vector<1x2x128xf32>
    %8 = vector.shape_cast %7 : vector<1x2x128xf32> to vector<2x128xf32>
    %9 = vector.shape_cast %6 : vector<2x128xf32> to vector<1x2x128xf32>
    tpu.vector_store %arg14[%c0_6, %c0_7, %c0_8], %9 {strides = array<i32>} : memref<8x2x128xf32, #tpu.memory_space<vmem>>, vector<1x2x128xf32>,
    %c1 = arith.constant 1 : index
    %c0_9 = arith.constant 0 : index
    %c0_10 = arith.constant 0 : index
    %10 = vector.load %arg1[%c1, %c0_9, %c0_10] : memref<8x2x32xbf16, #tpu.memory_space<vmem>>, vector<1x2x32xbf16>
    %11 = vector.shape_cast %10 : vector<1x2x32xbf16> to vector<2x32xbf16>
    %cst_11 = arith.constant dense<0.000000e+00> : vector<2x128xf32>
    %12 = tpu.matmul %11, %0, %cst_11 {dimension_numbers = #tpu.dot_dimension_numbers<[1], [0], [0], [1], [0, 0, 1, 1], [], []>} : vector<2x32xbf16>, vector<32x128xbf16>, vector<2x128xf32> -> vector<2x128xf32>
    %13 = vector.broadcast %1 : vector<1x128xf32> to vector<2x128xf32>
    %14 = arith.addf %12, %13 : vector<2x128xf32>
    %c1_12 = arith.constant 1 : index
    %c0_13 = arith.constant 0 : index
    %c0_14 = arith.constant 0 : index
    %15 = vector.load %arg14[%c1_12, %c0_13, %c0_14] : memref<8x2x128xf32, #tpu.memory_space<vmem>>, vector<1x2x128xf32>
    %16 = vector.shape_cast %15 : vector<1x2x128xf32> to vector<2x128xf32>
    %17 = vector.shape_cast %14 : vector<2x128xf32> to vector<1x2x128xf32>
    tpu.vector_store %arg14[%c1_12, %c0_13, %c0_14], %17 {strides = array<i32>} : memref<8x2x128xf32, #tpu.memory_space<vmem>>, vector<1x2x128xf32>,
    %c2 = arith.constant 2 : index
    %c0_15 = arith.constant 0 : index
    %c0_16 = arith.constant 0 : index
    %18 = vector.load %arg1[%c2, %c0_15, %c0_16] : memref<8x2x32xbf16, #tpu.memory_space<vmem>>, vector<1x2x32xbf16>
    %19 = vector.shape_cast %18 : vector<1x2x32xbf16> to vector<2x32xbf16>
    %cst_17 = arith.constant dense<0.000000e+00> : vector<2x128xf32>
    %20 = tpu.matmul %19, %0, %cst_17 {dimension_numbers = #tpu.dot_dimension_numbers<[1], [0], [0], [1], [0, 0, 1, 1], [], []>} : vector<2x32xbf16>, vector<32x128xbf16>, vector<2x128xf32> -> vector<2x128xf32>
    %21 = vector.broadcast %1 : vector<1x128xf32> to vector<2x128xf32>
    %22 = arith.addf %20, %21 : vector<2x128xf32>
    %c2_18 = arith.constant 2 : index
    %c0_19 = arith.constant 0 : index
    %c0_20 = arith.constant 0 : index
    %23 = vector.load %arg14[%c2_18, %c0_19, %c0_20] : memref<8x2x128xf32, #tpu.memory_space<vmem>>, vector<1x2x128xf32>
    %24 = vector.shape_cast %23 : vector<1x2x128xf32> to vector<2x128xf32>
    %25 = vector.shape_cast %22 : vector<2x128xf32> to vector<1x2x128xf32>
    tpu.vector_store %arg14[%c2_18, %c0_19, %c0_20], %25 {strides = array<i32>} : memref<8x2x128xf32, #tpu.memory_space<vmem>>, vector<1x2x128xf32>,
    %c3 = arith.constant 3 : index
    %c0_21 = arith.constant 0 : index
    %c0_22 = arith.constant 0 : index
    %26 = vector.load %arg1[%c3, %c0_21, %c0_22] : memref<8x2x32xbf16, #tpu.memory_space<vmem>>, vector<1x2x32xbf16>
    %27 = vector.shape_cast %26 : vector<1x2x32xbf16> to vector<2x32xbf16>
    %cst_23 = arith.constant dense<0.000000e+00> : vector<2x128xf32>
    %28 = tpu.matmul %27, %0, %cst_23 {dimension_numbers = #tpu.dot_dimension_numbers<[1], [0], [0], [1], [0, 0, 1, 1], [], []>} : vector<2x32xbf16>, vector<32x128xbf16>, vector<2x128xf32> -> vector<2x128xf32>
    %29 = vector.broadcast %1 : vector<1x128xf32> to vector<2x128xf32>
    %30 = arith.addf %28, %29 : vector<2x128xf32>
    %c3_24 = arith.constant 3 : index
    %c0_25 = arith.constant 0 : index
    %c0_26 = arith.constant 0 : index
    %31 = vector.load %arg14[%c3_24, %c0_25, %c0_26] : memref<8x2x128xf32, #tpu.memory_space<vmem>>, vector<1x2x128xf32>
    %32 = vector.shape_cast %31 : vector<1x2x128xf32> to vector<2x128xf32>
    %33 = vector.shape_cast %30 : vector<2x128xf32> to vector<1x2x128xf32>
    tpu.vector_store %arg14[%c3_24, %c0_25, %c0_26], %33 {strides = array<i32>} : memref<8x2x128xf32, #tpu.memory_space<vmem>>, vector<1x2x128xf32>,
    %c4 = arith.constant 4 : index
    %c0_27 = arith.constant 0 : index
    %c0_28 = arith.constant 0 : index
    %34 = vector.load %arg1[%c4, %c0_27, %c0_28] : memref<8x2x32xbf16, #tpu.memory_space<vmem>>, vector<1x2x32xbf16>
    %35 = vector.shape_cast %34 : vector<1x2x32xbf16> to vector<2x32xbf16>
    %cst_29 = arith.constant dense<0.000000e+00> : vector<2x128xf32>
    %36 = tpu.matmul %35, %0, %cst_29 {dimension_numbers = #tpu.dot_dimension_numbers<[1], [0], [0], [1], [0, 0, 1, 1], [], []>} : vector<2x32xbf16>, vector<32x128xbf16>, vector<2x128xf32> -> vector<2x128xf32>
    %37 = vector.broadcast %1 : vector<1x128xf32> to vector<2x128xf32>
    %38 = arith.addf %36, %37 : vector<2x128xf32>
    %c4_30 = arith.constant 4 : index
    %c0_31 = arith.constant 0 : index
    %c0_32 = arith.constant 0 : index
    %39 = vector.load %arg14[%c4_30, %c0_31, %c0_32] : memref<8x2x128xf32, #tpu.memory_space<vmem>>, vector<1x2x128xf32>
    %40 = vector.shape_cast %39 : vector<1x2x128xf32> to vector<2x128xf32>
    %41 = vector.shape_cast %38 : vector<2x128xf32> to vector<1x2x128xf32>
    tpu.vector_store %arg14[%c4_30, %c0_31, %c0_32], %41 {strides = array<i32>} : memref<8x2x128xf32, #tpu.memory_space<vmem>>, vector<1x2x128xf32>,
    %c5 = arith.constant 5 : index
    %c0_33 = arith.constant 0 : index
    %c0_34 = arith.constant 0 : index
    %42 = vector.load %arg1[%c5, %c0_33, %c0_34] : memref<8x2x32xbf16, #tpu.memory_space<vmem>>, vector<1x2x32xbf16>
    %43 = vector.shape_cast %42 : vector<1x2x32xbf16> to vector<2x32xbf16>
    %cst_35 = arith.constant dense<0.000000e+00> : vector<2x128xf32>
    %44 = tpu.matmul %43, %0, %cst_35 {dimension_numbers = #tpu.dot_dimension_numbers<[1], [0], [0], [1], [0, 0, 1, 1], [], []>} : vector<2x32xbf16>, vector<32x128xbf16>, vector<2x128xf32> -> vector<2x128xf32>
    %45 = vector.broadcast %1 : vector<1x128xf32> to vector<2x128xf32>
    %46 = arith.addf %44, %45 : vector<2x128xf32>
    %c5_36 = arith.constant 5 : index
    %c0_37 = arith.constant 0 : index
    %c0_38 = arith.constant 0 : index
    %47 = vector.load %arg14[%c5_36, %c0_37, %c0_38] : memref<8x2x128xf32, #tpu.memory_space<vmem>>, vector<1x2x128xf32>
    %48 = vector.shape_cast %47 : vector<1x2x128xf32> to vector<2x128xf32>
    %49 = vector.shape_cast %46 : vector<2x128xf32> to vector<1x2x128xf32>
    tpu.vector_store %arg14[%c5_36, %c0_37, %c0_38], %49 {strides = array<i32>} : memref<8x2x128xf32, #tpu.memory_space<vmem>>, vector<1x2x128xf32>,
    %c6 = arith.constant 6 : index
    %c0_39 = arith.constant 0 : index
    %c0_40 = arith.constant 0 : index
    %50 = vector.load %arg1[%c6, %c0_39, %c0_40] : memref<8x2x32xbf16, #tpu.memory_space<vmem>>, vector<1x2x32xbf16>
    %51 = vector.shape_cast %50 : vector<1x2x32xbf16> to vector<2x32xbf16>
    %cst_41 = arith.constant dense<0.000000e+00> : vector<2x128xf32>
    %52 = tpu.matmul %51, %0, %cst_41 {dimension_numbers = #tpu.dot_dimension_numbers<[1], [0], [0], [1], [0, 0, 1, 1], [], []>} : vector<2x32xbf16>, vector<32x128xbf16>, vector<2x128xf32> -> vector<2x128xf32>
    %53 = vector.broadcast %1 : vector<1x128xf32> to vector<2x128xf32>
    %54 = arith.addf %52, %53 : vector<2x128xf32>
    %c6_42 = arith.constant 6 : index
    %c0_43 = arith.constant 0 : index
    %c0_44 = arith.constant 0 : index
    %55 = vector.load %arg14[%c6_42, %c0_43, %c0_44] : memref<8x2x128xf32, #tpu.memory_space<vmem>>, vector<1x2x128xf32>
    %56 = vector.shape_cast %55 : vector<1x2x128xf32> to vector<2x128xf32>
    %57 = vector.shape_cast %54 : vector<2x128xf32> to vector<1x2x128xf32>
    tpu.vector_store %arg14[%c6_42, %c0_43, %c0_44], %57 {strides = array<i32>} : memref<8x2x128xf32, #tpu.memory_space<vmem>>, vector<1x2x128xf32>,
    %c7 = arith.constant 7 : index
    %c0_45 = arith.constant 0 : index
    %c0_46 = arith.constant 0 : index
    %58 = vector.load %arg1[%c7, %c0_45, %c0_46] : memref<8x2x32xbf16, #tpu.memory_space<vmem>>, vector<1x2x32xbf16>
    %59 = vector.shape_cast %58 : vector<1x2x32xbf16> to vector<2x32xbf16>
    %cst_47 = arith.constant dense<0.000000e+00> : vector<2x128xf32>
    %60 = tpu.matmul %59, %0, %cst_47 {dimension_numbers = #tpu.dot_dimension_numbers<[1], [0], [0], [1], [0, 0, 1, 1], [], []>} : vector<2x32xbf16>, vector<32x128xbf16>, vector<2x128xf32> -> vector<2x128xf32>
    %61 = vector.broadcast %1 : vector<1x128xf32> to vector<2x128xf32>
    %62 = arith.addf %60, %61 : vector<2x128xf32>
    %c7_48 = arith.constant 7 : index
    %c0_49 = arith.constant 0 : index
    %c0_50 = arith.constant 0 : index
    %63 = vector.load %arg14[%c7_48, %c0_49, %c0_50] : memref<8x2x128xf32, #tpu.memory_space<vmem>>, vector<1x2x128xf32>
    %64 = vector.shape_cast %63 : vector<1x2x128xf32> to vector<2x128xf32>
    %65 = vector.shape_cast %62 : vector<2x128xf32> to vector<1x2x128xf32>
    tpu.vector_store %arg14[%c7_48, %c0_49, %c0_50], %65 {strides = array<i32>} : memref<8x2x128xf32, #tpu.memory_space<vmem>>, vector<1x2x128xf32>,
    %66 = tpu.iota {dimensions = array<i32: 1>} : vector<2x128xi32>
    %c32_i32 = arith.constant 32 : i32
    %c0_i32 = arith.constant 0 : i32
    %67 = arith.cmpi eq, %c32_i32, %c0_i32 : i32
    %c1_i32 = arith.constant 1 : i32
    %68 = arith.select %67, %c1_i32, %c32_i32 : i32
    %69 = vector.broadcast %68 : i32 to vector<2x128xi32>
    %70 = arith.remsi %66, %69 : vector<2x128xi32>
    %c0_i32_51 = arith.constant 0 : i32
    %71 = vector.broadcast %c0_i32_51 : i32 to vector<2x128xi32>
    %72 = arith.cmpi ne, %70, %71 : vector<2x128xi32>
    %c0_i32_52 = arith.constant 0 : i32
    %73 = vector.broadcast %c0_i32_52 : i32 to vector<2x128xi32>
    %74 = arith.cmpi slt, %70, %73 : vector<2x128xi32>
    %c0_i32_53 = arith.constant 0 : i32
    %75 = arith.cmpi slt, %68, %c0_i32_53 : i32
    %76 = vector.broadcast %75 : i1 to vector<2x128xi1>
    %77 = vector.broadcast %76 : vector<2x128xi1> to vector<2x128xi1>
    %78 = arith.xori %74, %77 : vector<2x128xi1>
    %79 = arith.andi %78, %72 : vector<2x128xi1>
    %80 = vector.broadcast %68 : i32 to vector<2x128xi32>
    %81 = arith.addi %70, %80 : vector<2x128xi32>
    %82 = arith.select %79, %81, %70 : vector<2x128xi1>, vector<2x128xi32>
    %c16_i32 = arith.constant 16 : i32
    %83 = vector.broadcast %c16_i32 : i32 to vector<2x128xi32>
    %84 = arith.cmpi slt, %82, %83 : vector<2x128xi32>
    %c0_54 = arith.constant 0 : index
    %c0_55 = arith.constant 0 : index
    %85 = vector.load %arg3[%c0_54, %c0_55] : memref<32x128xbf16, #tpu.memory_space<vmem>>, vector<32x128xbf16>
    %cst_56 = arith.constant 0.000000e+00 : f32
    %86 = vector.broadcast %cst_56 : f32 to vector<2x32xf32>
    %cst_57 = arith.constant 0.000000e+00 : f32
    %87 = vector.broadcast %cst_57 : f32 to vector<2x32xf32>
    %c0_58 = arith.constant 0 : index
    %c0_59 = arith.constant 0 : index
    %c0_60 = arith.constant 0 : index
    %88 = vector.load %arg14[%c0_58, %c0_59, %c0_60] : memref<8x2x128xf32, #tpu.memory_space<vmem>>, vector<1x2x128xf32>
    %89 = vector.shape_cast %88 : vector<1x2x128xf32> to vector<2x128xf32>
    %c7_61 = arith.constant 7 : index
    %c0_62 = arith.constant 0 : index
    %c0_63 = arith.constant 0 : index
    %90 = vector.load %arg14[%c7_61, %c0_62, %c0_63] : memref<8x2x128xf32, #tpu.memory_space<vmem>>, vector<1x2x128xf32>
    %91 = vector.shape_cast %90 : vector<1x2x128xf32> to vector<2x128xf32>
    %92 = arith.select %84, %89, %91 : vector<2x128xi1>, vector<2x128xf32>
    %93 = arith.truncf %86 : vector<2x32xf32> to vector<2x32xbf16>
    %cst_64 = arith.constant dense<0.000000e+00> : vector<2x128xf32>
    %94 = tpu.matmul %93, %85, %cst_64 {dimension_numbers = #tpu.dot_dimension_numbers<[1], [0], [0], [1], [0, 0, 1, 1], [], []>} : vector<2x32xbf16>, vector<32x128xbf16>, vector<2x128xf32> -> vector<2x128xf32>
    %95 = arith.addf %92, %94 : vector<2x128xf32>
    %96 = vector.extract_strided_slice %95 {offsets = [0, 0], sizes = [2, 32], strides = [1, 1]} : vector<2x128xf32> to vector<2x32xf32>
    %97 = arith.negf %96 : vector<2x32xf32>
    %98 = math.exp %97 : vector<2x32xf32>
    %cst_65 = arith.constant 1.000000e+00 : f32
    %99 = vector.broadcast %cst_65 : f32 to vector<2x32xf32>
    %100 = arith.addf %99, %98 : vector<2x32xf32>
    %101 = arith.divf %99, %100 : vector<2x32xf32>
    %102 = vector.extract_strided_slice %95 {offsets = [0, 32], sizes = [2, 32], strides = [1, 1]} : vector<2x128xf32> to vector<2x32xf32>
    %103 = arith.negf %102 : vector<2x32xf32>
    %104 = math.exp %103 : vector<2x32xf32>
    %cst_66 = arith.constant 1.000000e+00 : f32
    %105 = vector.broadcast %cst_66 : f32 to vector<2x32xf32>
    %106 = arith.addf %105, %104 : vector<2x32xf32>
    %107 = arith.divf %105, %106 : vector<2x32xf32>
    %108 = vector.extract_strided_slice %95 {offsets = [0, 64], sizes = [2, 32], strides = [1, 1]} : vector<2x128xf32> to vector<2x32xf32>
    %109 = math.tanh %108 : vector<2x32xf32>
    %110 = vector.extract_strided_slice %95 {offsets = [0, 96], sizes = [2, 32], strides = [1, 1]} : vector<2x128xf32> to vector<2x32xf32>
    %111 = arith.negf %110 : vector<2x32xf32>
    %112 = math.exp %111 : vector<2x32xf32>
    %cst_67 = arith.constant 1.000000e+00 : f32
    %113 = vector.broadcast %cst_67 : f32 to vector<2x32xf32>
    %114 = arith.addf %113, %112 : vector<2x32xf32>
    %115 = arith.divf %113, %114 : vector<2x32xf32>
    %116 = arith.mulf %107, %87 : vector<2x32xf32>
    %117 = arith.mulf %101, %109 : vector<2x32xf32>
    %118 = arith.addf %116, %117 : vector<2x32xf32>
    %119 = math.tanh %118 : vector<2x32xf32>
    %120 = arith.mulf %115, %119 : vector<2x32xf32>
    %c1_68 = arith.constant 1 : index
    %c0_69 = arith.constant 0 : index
    %c0_70 = arith.constant 0 : index
    %121 = vector.load %arg14[%c1_68, %c0_69, %c0_70] : memref<8x2x128xf32, #tpu.memory_space<vmem>>, vector<1x2x128xf32>
    %122 = vector.shape_cast %121 : vector<1x2x128xf32> to vector<2x128xf32>
    %c6_71 = arith.constant 6 : index
    %c0_72 = arith.constant 0 : index
    %c0_73 = arith.constant 0 : index
    %123 = vector.load %arg14[%c6_71, %c0_72, %c0_73] : memref<8x2x128xf32, #tpu.memory_space<vmem>>, vector<1x2x128xf32>
    %124 = vector.shape_cast %123 : vector<1x2x128xf32> to vector<2x128xf32>
    %125 = arith.select %84, %122, %124 : vector<2x128xi1>, vector<2x128xf32>
    %126 = arith.truncf %120 : vector<2x32xf32> to vector<2x32xbf16>
    %cst_74 = arith.constant dense<0.000000e+00> : vector<2x128xf32>
    %127 = tpu.matmul %126, %85, %cst_74 {dimension_numbers = #tpu.dot_dimension_numbers<[1], [0], [0], [1], [0, 0, 1, 1], [], []>} : vector<2x32xbf16>, vector<32x128xbf16>, vector<2x128xf32> -> vector<2x128xf32>
    %128 = arith.addf %125, %127 : vector<2x128xf32>
    %129 = vector.extract_strided_slice %128 {offsets = [0, 0], sizes = [2, 32], strides = [1, 1]} : vector<2x128xf32> to vector<2x32xf32>
    %130 = arith.negf %129 : vector<2x32xf32>
    %131 = math.exp %130 : vector<2x32xf32>
    %cst_75 = arith.constant 1.000000e+00 : f32
    %132 = vector.broadcast %cst_75 : f32 to vector<2x32xf32>
    %133 = arith.addf %132, %131 : vector<2x32xf32>
    %134 = arith.divf %132, %133 : vector<2x32xf32>
    %135 = vector.extract_strided_slice %128 {offsets = [0, 32], sizes = [2, 32], strides = [1, 1]} : vector<2x128xf32> to vector<2x32xf32>
    %136 = arith.negf %135 : vector<2x32xf32>
    %137 = math.exp %136 : vector<2x32xf32>
    %cst_76 = arith.constant 1.000000e+00 : f32
    %138 = vector.broadcast %cst_76 : f32 to vector<2x32xf32>
    %139 = arith.addf %138, %137 : vector<2x32xf32>
    %140 = arith.divf %138, %139 : vector<2x32xf32>
    %141 = vector.extract_strided_slice %128 {offsets = [0, 64], sizes = [2, 32], strides = [1, 1]} : vector<2x128xf32> to vector<2x32xf32>
    %142 = math.tanh %141 : vector<2x32xf32>
    %143 = vector.extract_strided_slice %128 {offsets = [0, 96], sizes = [2, 32], strides = [1, 1]} : vector<2x128xf32> to vector<2x32xf32>
    %144 = arith.negf %143 : vector<2x32xf32>
    %145 = math.exp %144 : vector<2x32xf32>
    %cst_77 = arith.constant 1.000000e+00 : f32
    %146 = vector.broadcast %cst_77 : f32 to vector<2x32xf32>
    %147 = arith.addf %146, %145 : vector<2x32xf32>
    %148 = arith.divf %146, %147 : vector<2x32xf32>
    %149 = arith.mulf %140, %118 : vector<2x32xf32>
    %150 = arith.mulf %134, %142 : vector<2x32xf32>
    %151 = arith.addf %149, %150 : vector<2x32xf32>
    %152 = math.tanh %151 : vector<2x32xf32>
    %153 = arith.mulf %148, %152 : vector<2x32xf32>
    %c2_78 = arith.constant 2 : index
    %c0_79 = arith.constant 0 : index
    %c0_80 = arith.constant 0 : index
    %154 = vector.load %arg14[%c2_78, %c0_79, %c0_80] : memref<8x2x128xf32, #tpu.memory_space<vmem>>, vector<1x2x128xf32>
    %155 = vector.shape_cast %154 : vector<1x2x128xf32> to vector<2x128xf32>
    %c5_81 = arith.constant 5 : index
    %c0_82 = arith.constant 0 : index
    %c0_83 = arith.constant 0 : index
    %156 = vector.load %arg14[%c5_81, %c0_82, %c0_83] : memref<8x2x128xf32, #tpu.memory_space<vmem>>, vector<1x2x128xf32>
    %157 = vector.shape_cast %156 : vector<1x2x128xf32> to vector<2x128xf32>
    %158 = arith.select %84, %155, %157 : vector<2x128xi1>, vector<2x128xf32>
    %159 = arith.truncf %153 : vector<2x32xf32> to vector<2x32xbf16>
    %cst_84 = arith.constant dense<0.000000e+00> : vector<2x128xf32>
    %160 = tpu.matmul %159, %85, %cst_84 {dimension_numbers = #tpu.dot_dimension_numbers<[1], [0], [0], [1], [0, 0, 1, 1], [], []>} : vector<2x32xbf16>, vector<32x128xbf16>, vector<2x128xf32> -> vector<2x128xf32>
    %161 = arith.addf %158, %160 : vector<2x128xf32>
    %162 = vector.extract_strided_slice %161 {offsets = [0, 0], sizes = [2, 32], strides = [1, 1]} : vector<2x128xf32> to vector<2x32xf32>
    %163 = arith.negf %162 : vector<2x32xf32>
    %164 = math.exp %163 : vector<2x32xf32>
    %cst_85 = arith.constant 1.000000e+00 : f32
    %165 = vector.broadcast %cst_85 : f32 to vector<2x32xf32>
    %166 = arith.addf %165, %164 : vector<2x32xf32>
    %167 = arith.divf %165, %166 : vector<2x32xf32>
    %168 = vector.extract_strided_slice %161 {offsets = [0, 32], sizes = [2, 32], strides = [1, 1]} : vector<2x128xf32> to vector<2x32xf32>
    %169 = arith.negf %168 : vector<2x32xf32>
    %170 = math.exp %169 : vector<2x32xf32>
    %cst_86 = arith.constant 1.000000e+00 : f32
    %171 = vector.broadcast %cst_86 : f32 to vector<2x32xf32>
    %172 = arith.addf %171, %170 : vector<2x32xf32>
    %173 = arith.divf %171, %172 : vector<2x32xf32>
    %174 = vector.extract_strided_slice %161 {offsets = [0, 64], sizes = [2, 32], strides = [1, 1]} : vector<2x128xf32> to vector<2x32xf32>
    %175 = math.tanh %174 : vector<2x32xf32>
    %176 = vector.extract_strided_slice %161 {offsets = [0, 96], sizes = [2, 32], strides = [1, 1]} : vector<2x128xf32> to vector<2x32xf32>
    %177 = arith.negf %176 : vector<2x32xf32>
    %178 = math.exp %177 : vector<2x32xf32>
    %cst_87 = arith.constant 1.000000e+00 : f32
    %179 = vector.broadcast %cst_87 : f32 to vector<2x32xf32>
    %180 = arith.addf %179, %178 : vector<2x32xf32>
    %181 = arith.divf %179, %180 : vector<2x32xf32>
    %182 = arith.mulf %173, %151 : vector<2x32xf32>
    %183 = arith.mulf %167, %175 : vector<2x32xf32>
    %184 = arith.addf %182, %183 : vector<2x32xf32>
    %185 = math.tanh %184 : vector<2x32xf32>
    %186 = arith.mulf %181, %185 : vector<2x32xf32>
    %c3_88 = arith.constant 3 : index
    %c0_89 = arith.constant 0 : index
    %c0_90 = arith.constant 0 : index
    %187 = vector.load %arg14[%c3_88, %c0_89, %c0_90] : memref<8x2x128xf32, #tpu.memory_space<vmem>>, vector<1x2x128xf32>
    %188 = vector.shape_cast %187 : vector<1x2x128xf32> to vector<2x128xf32>
    %c4_91 = arith.constant 4 : index
    %c0_92 = arith.constant 0 : index
    %c0_93 = arith.constant 0 : index
    %189 = vector.load %arg14[%c4_91, %c0_92, %c0_93] : memref<8x2x128xf32, #tpu.memory_space<vmem>>, vector<1x2x128xf32>
    %190 = vector.shape_cast %189 : vector<1x2x128xf32> to vector<2x128xf32>
    %191 = arith.select %84, %188, %190 : vector<2x128xi1>, vector<2x128xf32>
    %192 = arith.truncf %186 : vector<2x32xf32> to vector<2x32xbf16>
    %cst_94 = arith.constant dense<0.000000e+00> : vector<2x128xf32>
    %193 = tpu.matmul %192, %85, %cst_94 {dimension_numbers = #tpu.dot_dimension_numbers<[1], [0], [0], [1], [0, 0, 1, 1], [], []>} : vector<2x32xbf16>, vector<32x128xbf16>, vector<2x128xf32> -> vector<2x128xf32>
    %194 = arith.addf %191, %193 : vector<2x128xf32>
    %195 = vector.extract_strided_slice %194 {offsets = [0, 0], sizes = [2, 32], strides = [1, 1]} : vector<2x128xf32> to vector<2x32xf32>
    %196 = arith.negf %195 : vector<2x32xf32>
    %197 = math.exp %196 : vector<2x32xf32>
    %cst_95 = arith.constant 1.000000e+00 : f32
    %198 = vector.broadcast %cst_95 : f32 to vector<2x32xf32>
    %199 = arith.addf %198, %197 : vector<2x32xf32>
    %200 = arith.divf %198, %199 : vector<2x32xf32>
    %201 = vector.extract_strided_slice %194 {offsets = [0, 32], sizes = [2, 32], strides = [1, 1]} : vector<2x128xf32> to vector<2x32xf32>
    %202 = arith.negf %201 : vector<2x32xf32>
    %203 = math.exp %202 : vector<2x32xf32>
    %cst_96 = arith.constant 1.000000e+00 : f32
    %204 = vector.broadcast %cst_96 : f32 to vector<2x32xf32>
    %205 = arith.addf %204, %203 : vector<2x32xf32>
    %206 = arith.divf %204, %205 : vector<2x32xf32>
    %207 = vector.extract_strided_slice %194 {offsets = [0, 64], sizes = [2, 32], strides = [1, 1]} : vector<2x128xf32> to vector<2x32xf32>
    %208 = math.tanh %207 : vector<2x32xf32>
    %209 = vector.extract_strided_slice %194 {offsets = [0, 96], sizes = [2, 32], strides = [1, 1]} : vector<2x128xf32> to vector<2x32xf32>
    %210 = arith.negf %209 : vector<2x32xf32>
    %211 = math.exp %210 : vector<2x32xf32>
    %cst_97 = arith.constant 1.000000e+00 : f32
    %212 = vector.broadcast %cst_97 : f32 to vector<2x32xf32>
    %213 = arith.addf %212, %211 : vector<2x32xf32>
    %214 = arith.divf %212, %213 : vector<2x32xf32>
    %215 = arith.mulf %206, %184 : vector<2x32xf32>
    %216 = arith.mulf %200, %208 : vector<2x32xf32>
    %217 = arith.addf %215, %216 : vector<2x32xf32>
    %218 = math.tanh %217 : vector<2x32xf32>
    %219 = arith.mulf %214, %218 : vector<2x32xf32>
    %c4_98 = arith.constant 4 : index
    %c0_99 = arith.constant 0 : index
    %c0_100 = arith.constant 0 : index
    %220 = vector.load %arg14[%c4_98, %c0_99, %c0_100] : memref<8x2x128xf32, #tpu.memory_space<vmem>>, vector<1x2x128xf32>
    %221 = vector.shape_cast %220 : vector<1x2x128xf32> to vector<2x128xf32>
    %c3_101 = arith.constant 3 : index
    %c0_102 = arith.constant 0 : index
    %c0_103 = arith.constant 0 : index
    %222 = vector.load %arg14[%c3_101, %c0_102, %c0_103] : memref<8x2x128xf32, #tpu.memory_space<vmem>>, vector<1x2x128xf32>
    %223 = vector.shape_cast %222 : vector<1x2x128xf32> to vector<2x128xf32>
    %224 = arith.select %84, %221, %223 : vector<2x128xi1>, vector<2x128xf32>
    %225 = arith.truncf %219 : vector<2x32xf32> to vector<2x32xbf16>
    %cst_104 = arith.constant dense<0.000000e+00> : vector<2x128xf32>
    %226 = tpu.matmul %225, %85, %cst_104 {dimension_numbers = #tpu.dot_dimension_numbers<[1], [0], [0], [1], [0, 0, 1, 1], [], []>} : vector<2x32xbf16>, vector<32x128xbf16>, vector<2x128xf32> -> vector<2x128xf32>
    %227 = arith.addf %224, %226 : vector<2x128xf32>
    %228 = vector.extract_strided_slice %227 {offsets = [0, 0], sizes = [2, 32], strides = [1, 1]} : vector<2x128xf32> to vector<2x32xf32>
    %229 = arith.negf %228 : vector<2x32xf32>
    %230 = math.exp %229 : vector<2x32xf32>
    %cst_105 = arith.constant 1.000000e+00 : f32
    %231 = vector.broadcast %cst_105 : f32 to vector<2x32xf32>
    %232 = arith.addf %231, %230 : vector<2x32xf32>
    %233 = arith.divf %231, %232 : vector<2x32xf32>
    %234 = vector.extract_strided_slice %227 {offsets = [0, 32], sizes = [2, 32], strides = [1, 1]} : vector<2x128xf32> to vector<2x32xf32>
    %235 = arith.negf %234 : vector<2x32xf32>
    %236 = math.exp %235 : vector<2x32xf32>
    %cst_106 = arith.constant 1.000000e+00 : f32
    %237 = vector.broadcast %cst_106 : f32 to vector<2x32xf32>
    %238 = arith.addf %237, %236 : vector<2x32xf32>
    %239 = arith.divf %237, %238 : vector<2x32xf32>
    %240 = vector.extract_strided_slice %227 {offsets = [0, 64], sizes = [2, 32], strides = [1, 1]} : vector<2x128xf32> to vector<2x32xf32>
    %241 = math.tanh %240 : vector<2x32xf32>
    %242 = vector.extract_strided_slice %227 {offsets = [0, 96], sizes = [2, 32], strides = [1, 1]} : vector<2x128xf32> to vector<2x32xf32>
    %243 = arith.negf %242 : vector<2x32xf32>
    %244 = math.exp %243 : vector<2x32xf32>
    %cst_107 = arith.constant 1.000000e+00 : f32
    %245 = vector.broadcast %cst_107 : f32 to vector<2x32xf32>
    %246 = arith.addf %245, %244 : vector<2x32xf32>
    %247 = arith.divf %245, %246 : vector<2x32xf32>
    %248 = arith.mulf %239, %217 : vector<2x32xf32>
    %249 = arith.mulf %233, %241 : vector<2x32xf32>
    %250 = arith.addf %248, %249 : vector<2x32xf32>
    %251 = math.tanh %250 : vector<2x32xf32>
    %252 = arith.mulf %247, %251 : vector<2x32xf32>
    %c5_108 = arith.constant 5 : index
    %c0_109 = arith.constant 0 : index
    %c0_110 = arith.constant 0 : index
    %253 = vector.load %arg14[%c5_108, %c0_109, %c0_110] : memref<8x2x128xf32, #tpu.memory_space<vmem>>, vector<1x2x128xf32>
    %254 = vector.shape_cast %253 : vector<1x2x128xf32> to vector<2x128xf32>
    %c2_111 = arith.constant 2 : index
    %c0_112 = arith.constant 0 : index
    %c0_113 = arith.constant 0 : index
    %255 = vector.load %arg14[%c2_111, %c0_112, %c0_113] : memref<8x2x128xf32, #tpu.memory_space<vmem>>, vector<1x2x128xf32>
    %256 = vector.shape_cast %255 : vector<1x2x128xf32> to vector<2x128xf32>
    %257 = arith.select %84, %254, %256 : vector<2x128xi1>, vector<2x128xf32>
    %258 = arith.truncf %252 : vector<2x32xf32> to vector<2x32xbf16>
    %cst_114 = arith.constant dense<0.000000e+00> : vector<2x128xf32>
    %259 = tpu.matmul %258, %85, %cst_114 {dimension_numbers = #tpu.dot_dimension_numbers<[1], [0], [0], [1], [0, 0, 1, 1], [], []>} : vector<2x32xbf16>, vector<32x128xbf16>, vector<2x128xf32> -> vector<2x128xf32>
    %260 = arith.addf %257, %259 : vector<2x128xf32>
    %261 = vector.extract_strided_slice %260 {offsets = [0, 0], sizes = [2, 32], strides = [1, 1]} : vector<2x128xf32> to vector<2x32xf32>
    %262 = arith.negf %261 : vector<2x32xf32>
    %263 = math.exp %262 : vector<2x32xf32>
    %cst_115 = arith.constant 1.000000e+00 : f32
    %264 = vector.broadcast %cst_115 : f32 to vector<2x32xf32>
    %265 = arith.addf %264, %263 : vector<2x32xf32>
    %266 = arith.divf %264, %265 : vector<2x32xf32>
    %267 = vector.extract_strided_slice %260 {offsets = [0, 32], sizes = [2, 32], strides = [1, 1]} : vector<2x128xf32> to vector<2x32xf32>
    %268 = arith.negf %267 : vector<2x32xf32>
    %269 = math.exp %268 : vector<2x32xf32>
    %cst_116 = arith.constant 1.000000e+00 : f32
    %270 = vector.broadcast %cst_116 : f32 to vector<2x32xf32>
    %271 = arith.addf %270, %269 : vector<2x32xf32>
    %272 = arith.divf %270, %271 : vector<2x32xf32>
    %273 = vector.extract_strided_slice %260 {offsets = [0, 64], sizes = [2, 32], strides = [1, 1]} : vector<2x128xf32> to vector<2x32xf32>
    %274 = math.tanh %273 : vector<2x32xf32>
    %275 = vector.extract_strided_slice %260 {offsets = [0, 96], sizes = [2, 32], strides = [1, 1]} : vector<2x128xf32> to vector<2x32xf32>
    %276 = arith.negf %275 : vector<2x32xf32>
    %277 = math.exp %276 : vector<2x32xf32>
    %cst_117 = arith.constant 1.000000e+00 : f32
    %278 = vector.broadcast %cst_117 : f32 to vector<2x32xf32>
    %279 = arith.addf %278, %277 : vector<2x32xf32>
    %280 = arith.divf %278, %279 : vector<2x32xf32>
    %281 = arith.mulf %272, %250 : vector<2x32xf32>
    %282 = arith.mulf %266, %274 : vector<2x32xf32>
    %283 = arith.addf %281, %282 : vector<2x32xf32>
    %284 = math.tanh %283 : vector<2x32xf32>
    %285 = arith.mulf %280, %284 : vector<2x32xf32>
    %c6_118 = arith.constant 6 : index
    %c0_119 = arith.constant 0 : index
    %c0_120 = arith.constant 0 : index
    %286 = vector.load %arg14[%c6_118, %c0_119, %c0_120] : memref<8x2x128xf32, #tpu.memory_space<vmem>>, vector<1x2x128xf32>
    %287 = vector.shape_cast %286 : vector<1x2x128xf32> to vector<2x128xf32>
    %c1_121 = arith.constant 1 : index
    %c0_122 = arith.constant 0 : index
    %c0_123 = arith.constant 0 : index
    %288 = vector.load %arg14[%c1_121, %c0_122, %c0_123] : memref<8x2x128xf32, #tpu.memory_space<vmem>>, vector<1x2x128xf32>
    %289 = vector.shape_cast %288 : vector<1x2x128xf32> to vector<2x128xf32>
    %290 = arith.select %84, %287, %289 : vector<2x128xi1>, vector<2x128xf32>
    %291 = arith.truncf %285 : vector<2x32xf32> to vector<2x32xbf16>
    %cst_124 = arith.constant dense<0.000000e+00> : vector<2x128xf32>
    %292 = tpu.matmul %291, %85, %cst_124 {dimension_numbers = #tpu.dot_dimension_numbers<[1], [0], [0], [1], [0, 0, 1, 1], [], []>} : vector<2x32xbf16>, vector<32x128xbf16>, vector<2x128xf32> -> vector<2x128xf32>
    %293 = arith.addf %290, %292 : vector<2x128xf32>
    %294 = vector.extract_strided_slice %293 {offsets = [0, 0], sizes = [2, 32], strides = [1, 1]} : vector<2x128xf32> to vector<2x32xf32>
    %295 = arith.negf %294 : vector<2x32xf32>
    %296 = math.exp %295 : vector<2x32xf32>
    %cst_125 = arith.constant 1.000000e+00 : f32
    %297 = vector.broadcast %cst_125 : f32 to vector<2x32xf32>
    %298 = arith.addf %297, %296 : vector<2x32xf32>
    %299 = arith.divf %297, %298 : vector<2x32xf32>
    %300 = vector.extract_strided_slice %293 {offsets = [0, 32], sizes = [2, 32], strides = [1, 1]} : vector<2x128xf32> to vector<2x32xf32>
    %301 = arith.negf %300 : vector<2x32xf32>
    %302 = math.exp %301 : vector<2x32xf32>
    %cst_126 = arith.constant 1.000000e+00 : f32
    %303 = vector.broadcast %cst_126 : f32 to vector<2x32xf32>
    %304 = arith.addf %303, %302 : vector<2x32xf32>
    %305 = arith.divf %303, %304 : vector<2x32xf32>
    %306 = vector.extract_strided_slice %293 {offsets = [0, 64], sizes = [2, 32], strides = [1, 1]} : vector<2x128xf32> to vector<2x32xf32>
    %307 = math.tanh %306 : vector<2x32xf32>
    %308 = vector.extract_strided_slice %293 {offsets = [0, 96], sizes = [2, 32], strides = [1, 1]} : vector<2x128xf32> to vector<2x32xf32>
    %309 = arith.negf %308 : vector<2x32xf32>
    %310 = math.exp %309 : vector<2x32xf32>
    %cst_127 = arith.constant 1.000000e+00 : f32
    %311 = vector.broadcast %cst_127 : f32 to vector<2x32xf32>
    %312 = arith.addf %311, %310 : vector<2x32xf32>
    %313 = arith.divf %311, %312 : vector<2x32xf32>
    %314 = arith.mulf %305, %283 : vector<2x32xf32>
    %315 = arith.mulf %299, %307 : vector<2x32xf32>
    %316 = arith.addf %314, %315 : vector<2x32xf32>
    %317 = math.tanh %316 : vector<2x32xf32>
    %318 = arith.mulf %313, %317 : vector<2x32xf32>
    %c7_128 = arith.constant 7 : index
    %c0_129 = arith.constant 0 : index
    %c0_130 = arith.constant 0 : index
    %319 = vector.load %arg14[%c7_128, %c0_129, %c0_130] : memref<8x2x128xf32, #tpu.memory_space<vmem>>, vector<1x2x128xf32>
    %320 = vector.shape_cast %319 : vector<1x2x128xf32> to vector<2x128xf32>
    %c0_131 = arith.constant 0 : index
    %c0_132 = arith.constant 0 : index
    %c0_133 = arith.constant 0 : index
    %321 = vector.load %arg14[%c0_131, %c0_132, %c0_133] : memref<8x2x128xf32, #tpu.memory_space<vmem>>, vector<1x2x128xf32>
    %322 = vector.shape_cast %321 : vector<1x2x128xf32> to vector<2x128xf32>
    %323 = arith.select %84, %320, %322 : vector<2x128xi1>, vector<2x128xf32>
    %324 = arith.truncf %318 : vector<2x32xf32> to vector<2x32xbf16>
    %cst_134 = arith.constant dense<0.000000e+00> : vector<2x128xf32>
    %325 = tpu.matmul %324, %85, %cst_134 {dimension_numbers = #tpu.dot_dimension_numbers<[1], [0], [0], [1], [0, 0, 1, 1], [], []>} : vector<2x32xbf16>, vector<32x128xbf16>, vector<2x128xf32> -> vector<2x128xf32>
    %326 = arith.addf %323, %325 : vector<2x128xf32>
    %327 = vector.extract_strided_slice %326 {offsets = [0, 0], sizes = [2, 32], strides = [1, 1]} : vector<2x128xf32> to vector<2x32xf32>
    %328 = arith.negf %327 : vector<2x32xf32>
    %329 = math.exp %328 : vector<2x32xf32>
    %cst_135 = arith.constant 1.000000e+00 : f32
    %330 = vector.broadcast %cst_135 : f32 to vector<2x32xf32>
    %331 = arith.addf %330, %329 : vector<2x32xf32>
    %332 = arith.divf %330, %331 : vector<2x32xf32>
    %333 = vector.extract_strided_slice %326 {offsets = [0, 32], sizes = [2, 32], strides = [1, 1]} : vector<2x128xf32> to vector<2x32xf32>
    %334 = arith.negf %333 : vector<2x32xf32>
    %335 = math.exp %334 : vector<2x32xf32>
    %cst_136 = arith.constant 1.000000e+00 : f32
    %336 = vector.broadcast %cst_136 : f32 to vector<2x32xf32>
    %337 = arith.addf %336, %335 : vector<2x32xf32>
    %338 = arith.divf %336, %337 : vector<2x32xf32>
    %339 = vector.extract_strided_slice %326 {offsets = [0, 64], sizes = [2, 32], strides = [1, 1]} : vector<2x128xf32> to vector<2x32xf32>
    %340 = math.tanh %339 : vector<2x32xf32>
    %341 = vector.extract_strided_slice %326 {offsets = [0, 96], sizes = [2, 32], strides = [1, 1]} : vector<2x128xf32> to vector<2x32xf32>
    %342 = arith.negf %341 : vector<2x32xf32>
    %343 = math.exp %342 : vector<2x32xf32>
    %cst_137 = arith.constant 1.000000e+00 : f32
    %344 = vector.broadcast %cst_137 : f32 to vector<2x32xf32>
    %345 = arith.addf %344, %343 : vector<2x32xf32>
    %346 = arith.divf %344, %345 : vector<2x32xf32>
    %347 = arith.mulf %338, %316 : vector<2x32xf32>
    %348 = arith.mulf %332, %340 : vector<2x32xf32>
    %349 = arith.addf %347, %348 : vector<2x32xf32>
    %350 = math.tanh %349 : vector<2x32xf32>
    %351 = arith.mulf %346, %350 : vector<2x32xf32>
    %c0_138 = arith.constant 0 : index
    %c0_139 = arith.constant 0 : index
    %352 = vector.load %arg5[%c0_138, %c0_139] : memref<32x128xbf16, #tpu.memory_space<vmem>>, vector<32x128xbf16>
    %c0_140 = arith.constant 0 : index
    %c0_141 = arith.constant 0 : index
    %353 = vector.load %arg6[%c0_140, %c0_141] : memref<32x128xbf16, #tpu.memory_space<vmem>>, vector<32x128xbf16>
    %c0_142 = arith.constant 0 : index
    %c0_143 = arith.constant 0 : index
    %354 = vector.load %arg8[%c0_142, %c0_143] : memref<1x128xf32, #tpu.memory_space<vmem>>, vector<1x128xf32>
    %355 = arith.truncf %120 : vector<2x32xf32> to vector<2x32xbf16>
    %356 = arith.truncf %153 : vector<2x32xf32> to vector<2x32xbf16>
    %357 = arith.truncf %186 : vector<2x32xf32> to vector<2x32xbf16>
    %358 = arith.truncf %219 : vector<2x32xf32> to vector<2x32xbf16>
    %359 = arith.truncf %252 : vector<2x32xf32> to vector<2x32xbf16>
    %360 = arith.truncf %285 : vector<2x32xf32> to vector<2x32xbf16>
    %361 = arith.truncf %318 : vector<2x32xf32> to vector<2x32xbf16>
    %362 = arith.truncf %351 : vector<2x32xf32> to vector<2x32xbf16>
    %cst_144 = arith.constant dense<0.000000e+00> : vector<2x128xf32>
    %363 = tpu.matmul %355, %352, %cst_144 {dimension_numbers = #tpu.dot_dimension_numbers<[1], [0], [0], [1], [0, 0, 1, 1], [], []>} : vector<2x32xbf16>, vector<32x128xbf16>, vector<2x128xf32> -> vector<2x128xf32>
    %cst_145 = arith.constant dense<0.000000e+00> : vector<2x128xf32>
    %364 = tpu.matmul %362, %353, %cst_145 {dimension_numbers = #tpu.dot_dimension_numbers<[1], [0], [0], [1], [0, 0, 1, 1], [], []>} : vector<2x32xbf16>, vector<32x128xbf16>, vector<2x128xf32> -> vector<2x128xf32>
    %365 = arith.addf %363, %364 : vector<2x128xf32>
    %366 = vector.broadcast %354 : vector<1x128xf32> to vector<2x128xf32>
    %367 = arith.addf %365, %366 : vector<2x128xf32>
    %c0_146 = arith.constant 0 : index
    %c0_147 = arith.constant 0 : index
    %c0_148 = arith.constant 0 : index
    %368 = vector.load %arg15[%c0_146, %c0_147, %c0_148] : memref<8x2x128xf32, #tpu.memory_space<vmem>>, vector<1x2x128xf32>
    %369 = vector.shape_cast %368 : vector<1x2x128xf32> to vector<2x128xf32>
    %370 = vector.shape_cast %367 : vector<2x128xf32> to vector<1x2x128xf32>
    tpu.vector_store %arg15[%c0_146, %c0_147, %c0_148], %370 {strides = array<i32>} : memref<8x2x128xf32, #tpu.memory_space<vmem>>, vector<1x2x128xf32>,
    %cst_149 = arith.constant dense<0.000000e+00> : vector<2x128xf32>
    %371 = tpu.matmul %356, %352, %cst_149 {dimension_numbers = #tpu.dot_dimension_numbers<[1], [0], [0], [1], [0, 0, 1, 1], [], []>} : vector<2x32xbf16>, vector<32x128xbf16>, vector<2x128xf32> -> vector<2x128xf32>
    %cst_150 = arith.constant dense<0.000000e+00> : vector<2x128xf32>
    %372 = tpu.matmul %361, %353, %cst_150 {dimension_numbers = #tpu.dot_dimension_numbers<[1], [0], [0], [1], [0, 0, 1, 1], [], []>} : vector<2x32xbf16>, vector<32x128xbf16>, vector<2x128xf32> -> vector<2x128xf32>
    %373 = arith.addf %371, %372 : vector<2x128xf32>
    %374 = vector.broadcast %354 : vector<1x128xf32> to vector<2x128xf32>
    %375 = arith.addf %373, %374 : vector<2x128xf32>
    %c1_151 = arith.constant 1 : index
    %c0_152 = arith.constant 0 : index
    %c0_153 = arith.constant 0 : index
    %376 = vector.load %arg15[%c1_151, %c0_152, %c0_153] : memref<8x2x128xf32, #tpu.memory_space<vmem>>, vector<1x2x128xf32>
    %377 = vector.shape_cast %376 : vector<1x2x128xf32> to vector<2x128xf32>
    %378 = vector.shape_cast %375 : vector<2x128xf32> to vector<1x2x128xf32>
    tpu.vector_store %arg15[%c1_151, %c0_152, %c0_153], %378 {strides = array<i32>} : memref<8x2x128xf32, #tpu.memory_space<vmem>>, vector<1x2x128xf32>,
    %cst_154 = arith.constant dense<0.000000e+00> : vector<2x128xf32>
    %379 = tpu.matmul %357, %352, %cst_154 {dimension_numbers = #tpu.dot_dimension_numbers<[1], [0], [0], [1], [0, 0, 1, 1], [], []>} : vector<2x32xbf16>, vector<32x128xbf16>, vector<2x128xf32> -> vector<2x128xf32>
    %cst_155 = arith.constant dense<0.000000e+00> : vector<2x128xf32>
    %380 = tpu.matmul %360, %353, %cst_155 {dimension_numbers = #tpu.dot_dimension_numbers<[1], [0], [0], [1], [0, 0, 1, 1], [], []>} : vector<2x32xbf16>, vector<32x128xbf16>, vector<2x128xf32> -> vector<2x128xf32>
    %381 = arith.addf %379, %380 : vector<2x128xf32>
    %382 = vector.broadcast %354 : vector<1x128xf32> to vector<2x128xf32>
    %383 = arith.addf %381, %382 : vector<2x128xf32>
    %c2_156 = arith.constant 2 : index
    %c0_157 = arith.constant 0 : index
    %c0_158 = arith.constant 0 : index
    %384 = vector.load %arg15[%c2_156, %c0_157, %c0_158] : memref<8x2x128xf32, #tpu.memory_space<vmem>>, vector<1x2x128xf32>
    %385 = vector.shape_cast %384 : vector<1x2x128xf32> to vector<2x128xf32>
    %386 = vector.shape_cast %383 : vector<2x128xf32> to vector<1x2x128xf32>
    tpu.vector_store %arg15[%c2_156, %c0_157, %c0_158], %386 {strides = array<i32>} : memref<8x2x128xf32, #tpu.memory_space<vmem>>, vector<1x2x128xf32>,
    %cst_159 = arith.constant dense<0.000000e+00> : vector<2x128xf32>
    %387 = tpu.matmul %358, %352, %cst_159 {dimension_numbers = #tpu.dot_dimension_numbers<[1], [0], [0], [1], [0, 0, 1, 1], [], []>} : vector<2x32xbf16>, vector<32x128xbf16>, vector<2x128xf32> -> vector<2x128xf32>
    %cst_160 = arith.constant dense<0.000000e+00> : vector<2x128xf32>
    %388 = tpu.matmul %359, %353, %cst_160 {dimension_numbers = #tpu.dot_dimension_numbers<[1], [0], [0], [1], [0, 0, 1, 1], [], []>} : vector<2x32xbf16>, vector<32x128xbf16>, vector<2x128xf32> -> vector<2x128xf32>
    %389 = arith.addf %387, %388 : vector<2x128xf32>
    %390 = vector.broadcast %354 : vector<1x128xf32> to vector<2x128xf32>
    %391 = arith.addf %389, %390 : vector<2x128xf32>
    %c3_161 = arith.constant 3 : index
    %c0_162 = arith.constant 0 : index
    %c0_163 = arith.constant 0 : index
    %392 = vector.load %arg15[%c3_161, %c0_162, %c0_163] : memref<8x2x128xf32, #tpu.memory_space<vmem>>, vector<1x2x128xf32>
    %393 = vector.shape_cast %392 : vector<1x2x128xf32> to vector<2x128xf32>
    %394 = vector.shape_cast %391 : vector<2x128xf32> to vector<1x2x128xf32>
    tpu.vector_store %arg15[%c3_161, %c0_162, %c0_163], %394 {strides = array<i32>} : memref<8x2x128xf32, #tpu.memory_space<vmem>>, vector<1x2x128xf32>,
    %cst_164 = arith.constant dense<0.000000e+00> : vector<2x128xf32>
    %395 = tpu.matmul %359, %352, %cst_164 {dimension_numbers = #tpu.dot_dimension_numbers<[1], [0], [0], [1], [0, 0, 1, 1], [], []>} : vector<2x32xbf16>, vector<32x128xbf16>, vector<2x128xf32> -> vector<2x128xf32>
    %cst_165 = arith.constant dense<0.000000e+00> : vector<2x128xf32>
    %396 = tpu.matmul %358, %353, %cst_165 {dimension_numbers = #tpu.dot_dimension_numbers<[1], [0], [0], [1], [0, 0, 1, 1], [], []>} : vector<2x32xbf16>, vector<32x128xbf16>, vector<2x128xf32> -> vector<2x128xf32>
    %397 = arith.addf %395, %396 : vector<2x128xf32>
    %398 = vector.broadcast %354 : vector<1x128xf32> to vector<2x128xf32>
    %399 = arith.addf %397, %398 : vector<2x128xf32>
    %c4_166 = arith.constant 4 : index
    %c0_167 = arith.constant 0 : index
    %c0_168 = arith.constant 0 : index
    %400 = vector.load %arg15[%c4_166, %c0_167, %c0_168] : memref<8x2x128xf32, #tpu.memory_space<vmem>>, vector<1x2x128xf32>
    %401 = vector.shape_cast %400 : vector<1x2x128xf32> to vector<2x128xf32>
    %402 = vector.shape_cast %399 : vector<2x128xf32> to vector<1x2x128xf32>
    tpu.vector_store %arg15[%c4_166, %c0_167, %c0_168], %402 {strides = array<i32>} : memref<8x2x128xf32, #tpu.memory_space<vmem>>, vector<1x2x128xf32>,
    %cst_169 = arith.constant dense<0.000000e+00> : vector<2x128xf32>
    %403 = tpu.matmul %360, %352, %cst_169 {dimension_numbers = #tpu.dot_dimension_numbers<[1], [0], [0], [1], [0, 0, 1, 1], [], []>} : vector<2x32xbf16>, vector<32x128xbf16>, vector<2x128xf32> -> vector<2x128xf32>
    %cst_170 = arith.constant dense<0.000000e+00> : vector<2x128xf32>
    %404 = tpu.matmul %357, %353, %cst_170 {dimension_numbers = #tpu.dot_dimension_numbers<[1], [0], [0], [1], [0, 0, 1, 1], [], []>} : vector<2x32xbf16>, vector<32x128xbf16>, vector<2x128xf32> -> vector<2x128xf32>
    %405 = arith.addf %403, %404 : vector<2x128xf32>
    %406 = vector.broadcast %354 : vector<1x128xf32> to vector<2x128xf32>
    %407 = arith.addf %405, %406 : vector<2x128xf32>
    %c5_171 = arith.constant 5 : index
    %c0_172 = arith.constant 0 : index
    %c0_173 = arith.constant 0 : index
    %408 = vector.load %arg15[%c5_171, %c0_172, %c0_173] : memref<8x2x128xf32, #tpu.memory_space<vmem>>, vector<1x2x128xf32>
    %409 = vector.shape_cast %408 : vector<1x2x128xf32> to vector<2x128xf32>
    %410 = vector.shape_cast %407 : vector<2x128xf32> to vector<1x2x128xf32>
    tpu.vector_store %arg15[%c5_171, %c0_172, %c0_173], %410 {strides = array<i32>} : memref<8x2x128xf32, #tpu.memory_space<vmem>>, vector<1x2x128xf32>,
    %cst_174 = arith.constant dense<0.000000e+00> : vector<2x128xf32>
    %411 = tpu.matmul %361, %352, %cst_174 {dimension_numbers = #tpu.dot_dimension_numbers<[1], [0], [0], [1], [0, 0, 1, 1], [], []>} : vector<2x32xbf16>, vector<32x128xbf16>, vector<2x128xf32> -> vector<2x128xf32>
    %cst_175 = arith.constant dense<0.000000e+00> : vector<2x128xf32>
    %412 = tpu.matmul %356, %353, %cst_175 {dimension_numbers = #tpu.dot_dimension_numbers<[1], [0], [0], [1], [0, 0, 1, 1], [], []>} : vector<2x32xbf16>, vector<32x128xbf16>, vector<2x128xf32> -> vector<2x128xf32>
    %413 = arith.addf %411, %412 : vector<2x128xf32>
    %414 = vector.broadcast %354 : vector<1x128xf32> to vector<2x128xf32>
    %415 = arith.addf %413, %414 : vector<2x128xf32>
    %c6_176 = arith.constant 6 : index
    %c0_177 = arith.constant 0 : index
    %c0_178 = arith.constant 0 : index
    %416 = vector.load %arg15[%c6_176, %c0_177, %c0_178] : memref<8x2x128xf32, #tpu.memory_space<vmem>>, vector<1x2x128xf32>
    %417 = vector.shape_cast %416 : vector<1x2x128xf32> to vector<2x128xf32>
    %418 = vector.shape_cast %415 : vector<2x128xf32> to vector<1x2x128xf32>
    tpu.vector_store %arg15[%c6_176, %c0_177, %c0_178], %418 {strides = array<i32>} : memref<8x2x128xf32, #tpu.memory_space<vmem>>, vector<1x2x128xf32>,
    %cst_179 = arith.constant dense<0.000000e+00> : vector<2x128xf32>
    %419 = tpu.matmul %362, %352, %cst_179 {dimension_numbers = #tpu.dot_dimension_numbers<[1], [0], [0], [1], [0, 0, 1, 1], [], []>} : vector<2x32xbf16>, vector<32x128xbf16>, vector<2x128xf32> -> vector<2x128xf32>
    %cst_180 = arith.constant dense<0.000000e+00> : vector<2x128xf32>
    %420 = tpu.matmul %355, %353, %cst_180 {dimension_numbers = #tpu.dot_dimension_numbers<[1], [0], [0], [1], [0, 0, 1, 1], [], []>} : vector<2x32xbf16>, vector<32x128xbf16>, vector<2x128xf32> -> vector<2x128xf32>
    %421 = arith.addf %419, %420 : vector<2x128xf32>
    %422 = vector.broadcast %354 : vector<1x128xf32> to vector<2x128xf32>
    %423 = arith.addf %421, %422 : vector<2x128xf32>
    %c7_181 = arith.constant 7 : index
    %c0_182 = arith.constant 0 : index
    %c0_183 = arith.constant 0 : index
    %424 = vector.load %arg15[%c7_181, %c0_182, %c0_183] : memref<8x2x128xf32, #tpu.memory_space<vmem>>, vector<1x2x128xf32>
    %425 = vector.shape_cast %424 : vector<1x2x128xf32> to vector<2x128xf32>
    %426 = vector.shape_cast %423 : vector<2x128xf32> to vector<1x2x128xf32>
    tpu.vector_store %arg15[%c7_181, %c0_182, %c0_183], %426 {strides = array<i32>} : memref<8x2x128xf32, #tpu.memory_space<vmem>>, vector<1x2x128xf32>,
    %427 = tpu.iota {dimensions = array<i32: 1>} : vector<2x128xi32>
    %c32_i32_184 = arith.constant 32 : i32
    %c0_i32_185 = arith.constant 0 : i32
    %428 = arith.cmpi eq, %c32_i32_184, %c0_i32_185 : i32
    %c1_i32_186 = arith.constant 1 : i32
    %429 = arith.select %428, %c1_i32_186, %c32_i32_184 : i32
    %430 = vector.broadcast %429 : i32 to vector<2x128xi32>
    %431 = arith.remsi %427, %430 : vector<2x128xi32>
    %c0_i32_187 = arith.constant 0 : i32
    %432 = vector.broadcast %c0_i32_187 : i32 to vector<2x128xi32>
    %433 = arith.cmpi ne, %431, %432 : vector<2x128xi32>
    %c0_i32_188 = arith.constant 0 : i32
    %434 = vector.broadcast %c0_i32_188 : i32 to vector<2x128xi32>
    %435 = arith.cmpi slt, %431, %434 : vector<2x128xi32>
    %c0_i32_189 = arith.constant 0 : i32
    %436 = arith.cmpi slt, %429, %c0_i32_189 : i32
    %437 = vector.broadcast %436 : i1 to vector<2x128xi1>
    %438 = vector.broadcast %437 : vector<2x128xi1> to vector<2x128xi1>
    %439 = arith.xori %435, %438 : vector<2x128xi1>
    %440 = arith.andi %439, %433 : vector<2x128xi1>
    %441 = vector.broadcast %429 : i32 to vector<2x128xi32>
    %442 = arith.addi %431, %441 : vector<2x128xi32>
    %443 = arith.select %440, %442, %431 : vector<2x128xi1>, vector<2x128xi32>
    %c16_i32_190 = arith.constant 16 : i32
    %444 = vector.broadcast %c16_i32_190 : i32 to vector<2x128xi32>
    %445 = arith.cmpi slt, %443, %444 : vector<2x128xi32>
    %c0_191 = arith.constant 0 : index
    %c0_192 = arith.constant 0 : index
    %446 = vector.load %arg7[%c0_191, %c0_192] : memref<32x128xbf16, #tpu.memory_space<vmem>>, vector<32x128xbf16>
    %cst_193 = arith.constant 0.000000e+00 : f32
    %447 = vector.broadcast %cst_193 : f32 to vector<2x32xf32>
    %cst_194 = arith.constant 0.000000e+00 : f32
    %448 = vector.broadcast %cst_194 : f32 to vector<2x32xf32>
    %c0_195 = arith.constant 0 : index
    %c0_196 = arith.constant 0 : index
    %c0_197 = arith.constant 0 : index
    %449 = vector.load %arg15[%c0_195, %c0_196, %c0_197] : memref<8x2x128xf32, #tpu.memory_space<vmem>>, vector<1x2x128xf32>
    %450 = vector.shape_cast %449 : vector<1x2x128xf32> to vector<2x128xf32>
    %c7_198 = arith.constant 7 : index
    %c0_199 = arith.constant 0 : index
    %c0_200 = arith.constant 0 : index
    %451 = vector.load %arg15[%c7_198, %c0_199, %c0_200] : memref<8x2x128xf32, #tpu.memory_space<vmem>>, vector<1x2x128xf32>
    %452 = vector.shape_cast %451 : vector<1x2x128xf32> to vector<2x128xf32>
    %453 = arith.select %445, %450, %452 : vector<2x128xi1>, vector<2x128xf32>
    %454 = arith.truncf %447 : vector<2x32xf32> to vector<2x32xbf16>
    %cst_201 = arith.constant dense<0.000000e+00> : vector<2x128xf32>
    %455 = tpu.matmul %454, %446, %cst_201 {dimension_numbers = #tpu.dot_dimension_numbers<[1], [0], [0], [1], [0, 0, 1, 1], [], []>} : vector<2x32xbf16>, vector<32x128xbf16>, vector<2x128xf32> -> vector<2x128xf32>
    %456 = arith.addf %453, %455 : vector<2x128xf32>
    %457 = vector.extract_strided_slice %456 {offsets = [0, 0], sizes = [2, 32], strides = [1, 1]} : vector<2x128xf32> to vector<2x32xf32>
    %458 = arith.negf %457 : vector<2x32xf32>
    %459 = math.exp %458 : vector<2x32xf32>
    %cst_202 = arith.constant 1.000000e+00 : f32
    %460 = vector.broadcast %cst_202 : f32 to vector<2x32xf32>
    %461 = arith.addf %460, %459 : vector<2x32xf32>
    %462 = arith.divf %460, %461 : vector<2x32xf32>
    %463 = vector.extract_strided_slice %456 {offsets = [0, 32], sizes = [2, 32], strides = [1, 1]} : vector<2x128xf32> to vector<2x32xf32>
    %464 = arith.negf %463 : vector<2x32xf32>
    %465 = math.exp %464 : vector<2x32xf32>
    %cst_203 = arith.constant 1.000000e+00 : f32
    %466 = vector.broadcast %cst_203 : f32 to vector<2x32xf32>
    %467 = arith.addf %466, %465 : vector<2x32xf32>
    %468 = arith.divf %466, %467 : vector<2x32xf32>
    %469 = vector.extract_strided_slice %456 {offsets = [0, 64], sizes = [2, 32], strides = [1, 1]} : vector<2x128xf32> to vector<2x32xf32>
    %470 = math.tanh %469 : vector<2x32xf32>
    %471 = vector.extract_strided_slice %456 {offsets = [0, 96], sizes = [2, 32], strides = [1, 1]} : vector<2x128xf32> to vector<2x32xf32>
    %472 = arith.negf %471 : vector<2x32xf32>
    %473 = math.exp %472 : vector<2x32xf32>
    %cst_204 = arith.constant 1.000000e+00 : f32
    %474 = vector.broadcast %cst_204 : f32 to vector<2x32xf32>
    %475 = arith.addf %474, %473 : vector<2x32xf32>
    %476 = arith.divf %474, %475 : vector<2x32xf32>
    %477 = arith.mulf %468, %448 : vector<2x32xf32>
    %478 = arith.mulf %462, %470 : vector<2x32xf32>
    %479 = arith.addf %477, %478 : vector<2x32xf32>
    %480 = math.tanh %479 : vector<2x32xf32>
    %481 = arith.mulf %476, %480 : vector<2x32xf32>
    %c1_205 = arith.constant 1 : index
    %c0_206 = arith.constant 0 : index
    %c0_207 = arith.constant 0 : index
    %482 = vector.load %arg15[%c1_205, %c0_206, %c0_207] : memref<8x2x128xf32, #tpu.memory_space<vmem>>, vector<1x2x128xf32>
    %483 = vector.shape_cast %482 : vector<1x2x128xf32> to vector<2x128xf32>
    %c6_208 = arith.constant 6 : index
    %c0_209 = arith.constant 0 : index
    %c0_210 = arith.constant 0 : index
    %484 = vector.load %arg15[%c6_208, %c0_209, %c0_210] : memref<8x2x128xf32, #tpu.memory_space<vmem>>, vector<1x2x128xf32>
    %485 = vector.shape_cast %484 : vector<1x2x128xf32> to vector<2x128xf32>
    %486 = arith.select %445, %483, %485 : vector<2x128xi1>, vector<2x128xf32>
    %487 = arith.truncf %481 : vector<2x32xf32> to vector<2x32xbf16>
    %cst_211 = arith.constant dense<0.000000e+00> : vector<2x128xf32>
    %488 = tpu.matmul %487, %446, %cst_211 {dimension_numbers = #tpu.dot_dimension_numbers<[1], [0], [0], [1], [0, 0, 1, 1], [], []>} : vector<2x32xbf16>, vector<32x128xbf16>, vector<2x128xf32> -> vector<2x128xf32>
    %489 = arith.addf %486, %488 : vector<2x128xf32>
    %490 = vector.extract_strided_slice %489 {offsets = [0, 0], sizes = [2, 32], strides = [1, 1]} : vector<2x128xf32> to vector<2x32xf32>
    %491 = arith.negf %490 : vector<2x32xf32>
    %492 = math.exp %491 : vector<2x32xf32>
    %cst_212 = arith.constant 1.000000e+00 : f32
    %493 = vector.broadcast %cst_212 : f32 to vector<2x32xf32>
    %494 = arith.addf %493, %492 : vector<2x32xf32>
    %495 = arith.divf %493, %494 : vector<2x32xf32>
    %496 = vector.extract_strided_slice %489 {offsets = [0, 32], sizes = [2, 32], strides = [1, 1]} : vector<2x128xf32> to vector<2x32xf32>
    %497 = arith.negf %496 : vector<2x32xf32>
    %498 = math.exp %497 : vector<2x32xf32>
    %cst_213 = arith.constant 1.000000e+00 : f32
    %499 = vector.broadcast %cst_213 : f32 to vector<2x32xf32>
    %500 = arith.addf %499, %498 : vector<2x32xf32>
    %501 = arith.divf %499, %500 : vector<2x32xf32>
    %502 = vector.extract_strided_slice %489 {offsets = [0, 64], sizes = [2, 32], strides = [1, 1]} : vector<2x128xf32> to vector<2x32xf32>
    %503 = math.tanh %502 : vector<2x32xf32>
    %504 = vector.extract_strided_slice %489 {offsets = [0, 96], sizes = [2, 32], strides = [1, 1]} : vector<2x128xf32> to vector<2x32xf32>
    %505 = arith.negf %504 : vector<2x32xf32>
    %506 = math.exp %505 : vector<2x32xf32>
    %cst_214 = arith.constant 1.000000e+00 : f32
    %507 = vector.broadcast %cst_214 : f32 to vector<2x32xf32>
    %508 = arith.addf %507, %506 : vector<2x32xf32>
    %509 = arith.divf %507, %508 : vector<2x32xf32>
    %510 = arith.mulf %501, %479 : vector<2x32xf32>
    %511 = arith.mulf %495, %503 : vector<2x32xf32>
    %512 = arith.addf %510, %511 : vector<2x32xf32>
    %513 = math.tanh %512 : vector<2x32xf32>
    %514 = arith.mulf %509, %513 : vector<2x32xf32>
    %c2_215 = arith.constant 2 : index
    %c0_216 = arith.constant 0 : index
    %c0_217 = arith.constant 0 : index
    %515 = vector.load %arg15[%c2_215, %c0_216, %c0_217] : memref<8x2x128xf32, #tpu.memory_space<vmem>>, vector<1x2x128xf32>
    %516 = vector.shape_cast %515 : vector<1x2x128xf32> to vector<2x128xf32>
    %c5_218 = arith.constant 5 : index
    %c0_219 = arith.constant 0 : index
    %c0_220 = arith.constant 0 : index
    %517 = vector.load %arg15[%c5_218, %c0_219, %c0_220] : memref<8x2x128xf32, #tpu.memory_space<vmem>>, vector<1x2x128xf32>
    %518 = vector.shape_cast %517 : vector<1x2x128xf32> to vector<2x128xf32>
    %519 = arith.select %445, %516, %518 : vector<2x128xi1>, vector<2x128xf32>
    %520 = arith.truncf %514 : vector<2x32xf32> to vector<2x32xbf16>
    %cst_221 = arith.constant dense<0.000000e+00> : vector<2x128xf32>
    %521 = tpu.matmul %520, %446, %cst_221 {dimension_numbers = #tpu.dot_dimension_numbers<[1], [0], [0], [1], [0, 0, 1, 1], [], []>} : vector<2x32xbf16>, vector<32x128xbf16>, vector<2x128xf32> -> vector<2x128xf32>
    %522 = arith.addf %519, %521 : vector<2x128xf32>
    %523 = vector.extract_strided_slice %522 {offsets = [0, 0], sizes = [2, 32], strides = [1, 1]} : vector<2x128xf32> to vector<2x32xf32>
    %524 = arith.negf %523 : vector<2x32xf32>
    %525 = math.exp %524 : vector<2x32xf32>
    %cst_222 = arith.constant 1.000000e+00 : f32
    %526 = vector.broadcast %cst_222 : f32 to vector<2x32xf32>
    %527 = arith.addf %526, %525 : vector<2x32xf32>
    %528 = arith.divf %526, %527 : vector<2x32xf32>
    %529 = vector.extract_strided_slice %522 {offsets = [0, 32], sizes = [2, 32], strides = [1, 1]} : vector<2x128xf32> to vector<2x32xf32>
    %530 = arith.negf %529 : vector<2x32xf32>
    %531 = math.exp %530 : vector<2x32xf32>
    %cst_223 = arith.constant 1.000000e+00 : f32
    %532 = vector.broadcast %cst_223 : f32 to vector<2x32xf32>
    %533 = arith.addf %532, %531 : vector<2x32xf32>
    %534 = arith.divf %532, %533 : vector<2x32xf32>
    %535 = vector.extract_strided_slice %522 {offsets = [0, 64], sizes = [2, 32], strides = [1, 1]} : vector<2x128xf32> to vector<2x32xf32>
    %536 = math.tanh %535 : vector<2x32xf32>
    %537 = vector.extract_strided_slice %522 {offsets = [0, 96], sizes = [2, 32], strides = [1, 1]} : vector<2x128xf32> to vector<2x32xf32>
    %538 = arith.negf %537 : vector<2x32xf32>
    %539 = math.exp %538 : vector<2x32xf32>
    %cst_224 = arith.constant 1.000000e+00 : f32
    %540 = vector.broadcast %cst_224 : f32 to vector<2x32xf32>
    %541 = arith.addf %540, %539 : vector<2x32xf32>
    %542 = arith.divf %540, %541 : vector<2x32xf32>
    %543 = arith.mulf %534, %512 : vector<2x32xf32>
    %544 = arith.mulf %528, %536 : vector<2x32xf32>
    %545 = arith.addf %543, %544 : vector<2x32xf32>
    %546 = math.tanh %545 : vector<2x32xf32>
    %547 = arith.mulf %542, %546 : vector<2x32xf32>
    %c3_225 = arith.constant 3 : index
    %c0_226 = arith.constant 0 : index
    %c0_227 = arith.constant 0 : index
    %548 = vector.load %arg15[%c3_225, %c0_226, %c0_227] : memref<8x2x128xf32, #tpu.memory_space<vmem>>, vector<1x2x128xf32>
    %549 = vector.shape_cast %548 : vector<1x2x128xf32> to vector<2x128xf32>
    %c4_228 = arith.constant 4 : index
    %c0_229 = arith.constant 0 : index
    %c0_230 = arith.constant 0 : index
    %550 = vector.load %arg15[%c4_228, %c0_229, %c0_230] : memref<8x2x128xf32, #tpu.memory_space<vmem>>, vector<1x2x128xf32>
    %551 = vector.shape_cast %550 : vector<1x2x128xf32> to vector<2x128xf32>
    %552 = arith.select %445, %549, %551 : vector<2x128xi1>, vector<2x128xf32>
    %553 = arith.truncf %547 : vector<2x32xf32> to vector<2x32xbf16>
    %cst_231 = arith.constant dense<0.000000e+00> : vector<2x128xf32>
    %554 = tpu.matmul %553, %446, %cst_231 {dimension_numbers = #tpu.dot_dimension_numbers<[1], [0], [0], [1], [0, 0, 1, 1], [], []>} : vector<2x32xbf16>, vector<32x128xbf16>, vector<2x128xf32> -> vector<2x128xf32>
    %555 = arith.addf %552, %554 : vector<2x128xf32>
    %556 = vector.extract_strided_slice %555 {offsets = [0, 0], sizes = [2, 32], strides = [1, 1]} : vector<2x128xf32> to vector<2x32xf32>
    %557 = arith.negf %556 : vector<2x32xf32>
    %558 = math.exp %557 : vector<2x32xf32>
    %cst_232 = arith.constant 1.000000e+00 : f32
    %559 = vector.broadcast %cst_232 : f32 to vector<2x32xf32>
    %560 = arith.addf %559, %558 : vector<2x32xf32>
    %561 = arith.divf %559, %560 : vector<2x32xf32>
    %562 = vector.extract_strided_slice %555 {offsets = [0, 32], sizes = [2, 32], strides = [1, 1]} : vector<2x128xf32> to vector<2x32xf32>
    %563 = arith.negf %562 : vector<2x32xf32>
    %564 = math.exp %563 : vector<2x32xf32>
    %cst_233 = arith.constant 1.000000e+00 : f32
    %565 = vector.broadcast %cst_233 : f32 to vector<2x32xf32>
    %566 = arith.addf %565, %564 : vector<2x32xf32>
    %567 = arith.divf %565, %566 : vector<2x32xf32>
    %568 = vector.extract_strided_slice %555 {offsets = [0, 64], sizes = [2, 32], strides = [1, 1]} : vector<2x128xf32> to vector<2x32xf32>
    %569 = math.tanh %568 : vector<2x32xf32>
    %570 = vector.extract_strided_slice %555 {offsets = [0, 96], sizes = [2, 32], strides = [1, 1]} : vector<2x128xf32> to vector<2x32xf32>
    %571 = arith.negf %570 : vector<2x32xf32>
    %572 = math.exp %571 : vector<2x32xf32>
    %cst_234 = arith.constant 1.000000e+00 : f32
    %573 = vector.broadcast %cst_234 : f32 to vector<2x32xf32>
    %574 = arith.addf %573, %572 : vector<2x32xf32>
    %575 = arith.divf %573, %574 : vector<2x32xf32>
    %576 = arith.mulf %567, %545 : vector<2x32xf32>
    %577 = arith.mulf %561, %569 : vector<2x32xf32>
    %578 = arith.addf %576, %577 : vector<2x32xf32>
    %579 = math.tanh %578 : vector<2x32xf32>
    %580 = arith.mulf %575, %579 : vector<2x32xf32>
    %c4_235 = arith.constant 4 : index
    %c0_236 = arith.constant 0 : index
    %c0_237 = arith.constant 0 : index
    %581 = vector.load %arg15[%c4_235, %c0_236, %c0_237] : memref<8x2x128xf32, #tpu.memory_space<vmem>>, vector<1x2x128xf32>
    %582 = vector.shape_cast %581 : vector<1x2x128xf32> to vector<2x128xf32>
    %c3_238 = arith.constant 3 : index
    %c0_239 = arith.constant 0 : index
    %c0_240 = arith.constant 0 : index
    %583 = vector.load %arg15[%c3_238, %c0_239, %c0_240] : memref<8x2x128xf32, #tpu.memory_space<vmem>>, vector<1x2x128xf32>
    %584 = vector.shape_cast %583 : vector<1x2x128xf32> to vector<2x128xf32>
    %585 = arith.select %445, %582, %584 : vector<2x128xi1>, vector<2x128xf32>
    %586 = arith.truncf %580 : vector<2x32xf32> to vector<2x32xbf16>
    %cst_241 = arith.constant dense<0.000000e+00> : vector<2x128xf32>
    %587 = tpu.matmul %586, %446, %cst_241 {dimension_numbers = #tpu.dot_dimension_numbers<[1], [0], [0], [1], [0, 0, 1, 1], [], []>} : vector<2x32xbf16>, vector<32x128xbf16>, vector<2x128xf32> -> vector<2x128xf32>
    %588 = arith.addf %585, %587 : vector<2x128xf32>
    %589 = vector.extract_strided_slice %588 {offsets = [0, 0], sizes = [2, 32], strides = [1, 1]} : vector<2x128xf32> to vector<2x32xf32>
    %590 = arith.negf %589 : vector<2x32xf32>
    %591 = math.exp %590 : vector<2x32xf32>
    %cst_242 = arith.constant 1.000000e+00 : f32
    %592 = vector.broadcast %cst_242 : f32 to vector<2x32xf32>
    %593 = arith.addf %592, %591 : vector<2x32xf32>
    %594 = arith.divf %592, %593 : vector<2x32xf32>
    %595 = vector.extract_strided_slice %588 {offsets = [0, 32], sizes = [2, 32], strides = [1, 1]} : vector<2x128xf32> to vector<2x32xf32>
    %596 = arith.negf %595 : vector<2x32xf32>
    %597 = math.exp %596 : vector<2x32xf32>
    %cst_243 = arith.constant 1.000000e+00 : f32
    %598 = vector.broadcast %cst_243 : f32 to vector<2x32xf32>
    %599 = arith.addf %598, %597 : vector<2x32xf32>
    %600 = arith.divf %598, %599 : vector<2x32xf32>
    %601 = vector.extract_strided_slice %588 {offsets = [0, 64], sizes = [2, 32], strides = [1, 1]} : vector<2x128xf32> to vector<2x32xf32>
    %602 = math.tanh %601 : vector<2x32xf32>
    %603 = vector.extract_strided_slice %588 {offsets = [0, 96], sizes = [2, 32], strides = [1, 1]} : vector<2x128xf32> to vector<2x32xf32>
    %604 = arith.negf %603 : vector<2x32xf32>
    %605 = math.exp %604 : vector<2x32xf32>
    %cst_244 = arith.constant 1.000000e+00 : f32
    %606 = vector.broadcast %cst_244 : f32 to vector<2x32xf32>
    %607 = arith.addf %606, %605 : vector<2x32xf32>
    %608 = arith.divf %606, %607 : vector<2x32xf32>
    %609 = arith.mulf %600, %578 : vector<2x32xf32>
    %610 = arith.mulf %594, %602 : vector<2x32xf32>
    %611 = arith.addf %609, %610 : vector<2x32xf32>
    %612 = math.tanh %611 : vector<2x32xf32>
    %613 = arith.mulf %608, %612 : vector<2x32xf32>
    %c5_245 = arith.constant 5 : index
    %c0_246 = arith.constant 0 : index
    %c0_247 = arith.constant 0 : index
    %614 = vector.load %arg15[%c5_245, %c0_246, %c0_247] : memref<8x2x128xf32, #tpu.memory_space<vmem>>, vector<1x2x128xf32>
    %615 = vector.shape_cast %614 : vector<1x2x128xf32> to vector<2x128xf32>
    %c2_248 = arith.constant 2 : index
    %c0_249 = arith.constant 0 : index
    %c0_250 = arith.constant 0 : index
    %616 = vector.load %arg15[%c2_248, %c0_249, %c0_250] : memref<8x2x128xf32, #tpu.memory_space<vmem>>, vector<1x2x128xf32>
    %617 = vector.shape_cast %616 : vector<1x2x128xf32> to vector<2x128xf32>
    %618 = arith.select %445, %615, %617 : vector<2x128xi1>, vector<2x128xf32>
    %619 = arith.truncf %613 : vector<2x32xf32> to vector<2x32xbf16>
    %cst_251 = arith.constant dense<0.000000e+00> : vector<2x128xf32>
    %620 = tpu.matmul %619, %446, %cst_251 {dimension_numbers = #tpu.dot_dimension_numbers<[1], [0], [0], [1], [0, 0, 1, 1], [], []>} : vector<2x32xbf16>, vector<32x128xbf16>, vector<2x128xf32> -> vector<2x128xf32>
    %621 = arith.addf %618, %620 : vector<2x128xf32>
    %622 = vector.extract_strided_slice %621 {offsets = [0, 0], sizes = [2, 32], strides = [1, 1]} : vector<2x128xf32> to vector<2x32xf32>
    %623 = arith.negf %622 : vector<2x32xf32>
    %624 = math.exp %623 : vector<2x32xf32>
    %cst_252 = arith.constant 1.000000e+00 : f32
    %625 = vector.broadcast %cst_252 : f32 to vector<2x32xf32>
    %626 = arith.addf %625, %624 : vector<2x32xf32>
    %627 = arith.divf %625, %626 : vector<2x32xf32>
    %628 = vector.extract_strided_slice %621 {offsets = [0, 32], sizes = [2, 32], strides = [1, 1]} : vector<2x128xf32> to vector<2x32xf32>
    %629 = arith.negf %628 : vector<2x32xf32>
    %630 = math.exp %629 : vector<2x32xf32>
    %cst_253 = arith.constant 1.000000e+00 : f32
    %631 = vector.broadcast %cst_253 : f32 to vector<2x32xf32>
    %632 = arith.addf %631, %630 : vector<2x32xf32>
    %633 = arith.divf %631, %632 : vector<2x32xf32>
    %634 = vector.extract_strided_slice %621 {offsets = [0, 64], sizes = [2, 32], strides = [1, 1]} : vector<2x128xf32> to vector<2x32xf32>
    %635 = math.tanh %634 : vector<2x32xf32>
    %636 = vector.extract_strided_slice %621 {offsets = [0, 96], sizes = [2, 32], strides = [1, 1]} : vector<2x128xf32> to vector<2x32xf32>
    %637 = arith.negf %636 : vector<2x32xf32>
    %638 = math.exp %637 : vector<2x32xf32>
    %cst_254 = arith.constant 1.000000e+00 : f32
    %639 = vector.broadcast %cst_254 : f32 to vector<2x32xf32>
    %640 = arith.addf %639, %638 : vector<2x32xf32>
    %641 = arith.divf %639, %640 : vector<2x32xf32>
    %642 = arith.mulf %633, %611 : vector<2x32xf32>
    %643 = arith.mulf %627, %635 : vector<2x32xf32>
    %644 = arith.addf %642, %643 : vector<2x32xf32>
    %645 = math.tanh %644 : vector<2x32xf32>
    %646 = arith.mulf %641, %645 : vector<2x32xf32>
    %c6_255 = arith.constant 6 : index
    %c0_256 = arith.constant 0 : index
    %c0_257 = arith.constant 0 : index
    %647 = vector.load %arg15[%c6_255, %c0_256, %c0_257] : memref<8x2x128xf32, #tpu.memory_space<vmem>>, vector<1x2x128xf32>
    %648 = vector.shape_cast %647 : vector<1x2x128xf32> to vector<2x128xf32>
    %c1_258 = arith.constant 1 : index
    %c0_259 = arith.constant 0 : index
    %c0_260 = arith.constant 0 : index
    %649 = vector.load %arg15[%c1_258, %c0_259, %c0_260] : memref<8x2x128xf32, #tpu.memory_space<vmem>>, vector<1x2x128xf32>
    %650 = vector.shape_cast %649 : vector<1x2x128xf32> to vector<2x128xf32>
    %651 = arith.select %445, %648, %650 : vector<2x128xi1>, vector<2x128xf32>
    %652 = arith.truncf %646 : vector<2x32xf32> to vector<2x32xbf16>
    %cst_261 = arith.constant dense<0.000000e+00> : vector<2x128xf32>
    %653 = tpu.matmul %652, %446, %cst_261 {dimension_numbers = #tpu.dot_dimension_numbers<[1], [0], [0], [1], [0, 0, 1, 1], [], []>} : vector<2x32xbf16>, vector<32x128xbf16>, vector<2x128xf32> -> vector<2x128xf32>
    %654 = arith.addf %651, %653 : vector<2x128xf32>
    %655 = vector.extract_strided_slice %654 {offsets = [0, 0], sizes = [2, 32], strides = [1, 1]} : vector<2x128xf32> to vector<2x32xf32>
    %656 = arith.negf %655 : vector<2x32xf32>
    %657 = math.exp %656 : vector<2x32xf32>
    %cst_262 = arith.constant 1.000000e+00 : f32
    %658 = vector.broadcast %cst_262 : f32 to vector<2x32xf32>
    %659 = arith.addf %658, %657 : vector<2x32xf32>
    %660 = arith.divf %658, %659 : vector<2x32xf32>
    %661 = vector.extract_strided_slice %654 {offsets = [0, 32], sizes = [2, 32], strides = [1, 1]} : vector<2x128xf32> to vector<2x32xf32>
    %662 = arith.negf %661 : vector<2x32xf32>
    %663 = math.exp %662 : vector<2x32xf32>
    %cst_263 = arith.constant 1.000000e+00 : f32
    %664 = vector.broadcast %cst_263 : f32 to vector<2x32xf32>
    %665 = arith.addf %664, %663 : vector<2x32xf32>
    %666 = arith.divf %664, %665 : vector<2x32xf32>
    %667 = vector.extract_strided_slice %654 {offsets = [0, 64], sizes = [2, 32], strides = [1, 1]} : vector<2x128xf32> to vector<2x32xf32>
    %668 = math.tanh %667 : vector<2x32xf32>
    %669 = vector.extract_strided_slice %654 {offsets = [0, 96], sizes = [2, 32], strides = [1, 1]} : vector<2x128xf32> to vector<2x32xf32>
    %670 = arith.negf %669 : vector<2x32xf32>
    %671 = math.exp %670 : vector<2x32xf32>
    %cst_264 = arith.constant 1.000000e+00 : f32
    %672 = vector.broadcast %cst_264 : f32 to vector<2x32xf32>
    %673 = arith.addf %672, %671 : vector<2x32xf32>
    %674 = arith.divf %672, %673 : vector<2x32xf32>
    %675 = arith.mulf %666, %644 : vector<2x32xf32>
    %676 = arith.mulf %660, %668 : vector<2x32xf32>
    %677 = arith.addf %675, %676 : vector<2x32xf32>
    %678 = math.tanh %677 : vector<2x32xf32>
    %679 = arith.mulf %674, %678 : vector<2x32xf32>
    %c7_265 = arith.constant 7 : index
    %c0_266 = arith.constant 0 : index
    %c0_267 = arith.constant 0 : index
    %680 = vector.load %arg15[%c7_265, %c0_266, %c0_267] : memref<8x2x128xf32, #tpu.memory_space<vmem>>, vector<1x2x128xf32>
    %681 = vector.shape_cast %680 : vector<1x2x128xf32> to vector<2x128xf32>
    %c0_268 = arith.constant 0 : index
    %c0_269 = arith.constant 0 : index
    %c0_270 = arith.constant 0 : index
    %682 = vector.load %arg15[%c0_268, %c0_269, %c0_270] : memref<8x2x128xf32, #tpu.memory_space<vmem>>, vector<1x2x128xf32>
    %683 = vector.shape_cast %682 : vector<1x2x128xf32> to vector<2x128xf32>
    %684 = arith.select %445, %681, %683 : vector<2x128xi1>, vector<2x128xf32>
    %685 = arith.truncf %679 : vector<2x32xf32> to vector<2x32xbf16>
    %cst_271 = arith.constant dense<0.000000e+00> : vector<2x128xf32>
    %686 = tpu.matmul %685, %446, %cst_271 {dimension_numbers = #tpu.dot_dimension_numbers<[1], [0], [0], [1], [0, 0, 1, 1], [], []>} : vector<2x32xbf16>, vector<32x128xbf16>, vector<2x128xf32> -> vector<2x128xf32>
    %687 = arith.addf %684, %686 : vector<2x128xf32>
    %688 = vector.extract_strided_slice %687 {offsets = [0, 0], sizes = [2, 32], strides = [1, 1]} : vector<2x128xf32> to vector<2x32xf32>
    %689 = arith.negf %688 : vector<2x32xf32>
    %690 = math.exp %689 : vector<2x32xf32>
    %cst_272 = arith.constant 1.000000e+00 : f32
    %691 = vector.broadcast %cst_272 : f32 to vector<2x32xf32>
    %692 = arith.addf %691, %690 : vector<2x32xf32>
    %693 = arith.divf %691, %692 : vector<2x32xf32>
    %694 = vector.extract_strided_slice %687 {offsets = [0, 32], sizes = [2, 32], strides = [1, 1]} : vector<2x128xf32> to vector<2x32xf32>
    %695 = arith.negf %694 : vector<2x32xf32>
    %696 = math.exp %695 : vector<2x32xf32>
    %cst_273 = arith.constant 1.000000e+00 : f32
    %697 = vector.broadcast %cst_273 : f32 to vector<2x32xf32>
    %698 = arith.addf %697, %696 : vector<2x32xf32>
    %699 = arith.divf %697, %698 : vector<2x32xf32>
    %700 = vector.extract_strided_slice %687 {offsets = [0, 64], sizes = [2, 32], strides = [1, 1]} : vector<2x128xf32> to vector<2x32xf32>
    %701 = math.tanh %700 : vector<2x32xf32>
    %702 = vector.extract_strided_slice %687 {offsets = [0, 96], sizes = [2, 32], strides = [1, 1]} : vector<2x128xf32> to vector<2x32xf32>
    %703 = arith.negf %702 : vector<2x32xf32>
    %704 = math.exp %703 : vector<2x32xf32>
    %cst_274 = arith.constant 1.000000e+00 : f32
    %705 = vector.broadcast %cst_274 : f32 to vector<2x32xf32>
    %706 = arith.addf %705, %704 : vector<2x32xf32>
    %707 = arith.divf %705, %706 : vector<2x32xf32>
    %708 = arith.mulf %699, %677 : vector<2x32xf32>
    %709 = arith.mulf %693, %701 : vector<2x32xf32>
    %710 = arith.addf %708, %709 : vector<2x32xf32>
    %711 = math.tanh %710 : vector<2x32xf32>
    %712 = arith.mulf %707, %711 : vector<2x32xf32>
    %c0_275 = arith.constant 0 : index
    %c0_276 = arith.constant 0 : index
    %713 = vector.load %arg9[%c0_275, %c0_276] : memref<32x32xf32, #tpu.memory_space<vmem>>, vector<32x32xf32>
    %cst_277 = arith.constant dense<0.000000e+00> : vector<2x32xf32>
    %714 = tpu.matmul %712, %713, %cst_277 {dimension_numbers = #tpu.dot_dimension_numbers<[1], [0], [0], [1], [0, 0, 1, 1], [], []>} : vector<2x32xf32>, vector<32x32xf32>, vector<2x32xf32> -> vector<2x32xf32>
    %c0_278 = arith.constant 0 : index
    %c0_279 = arith.constant 0 : index
    %715 = vector.load %arg10[%c0_278, %c0_279] : memref<1x32xf32, #tpu.memory_space<vmem>>, vector<1x32xf32>
    %716 = vector.broadcast %715 : vector<1x32xf32> to vector<2x32xf32>
    %717 = arith.addf %714, %716 : vector<2x32xf32>
    %cst_280 = arith.constant 0.000000e+00 : f32
    %718 = vector.broadcast %cst_280 : f32 to vector<2x32xf32>
    %719 = arith.maximumf %717, %718 : vector<2x32xf32>
    %c0_281 = arith.constant 0 : index
    %c0_282 = arith.constant 0 : index
    %720 = vector.load %arg11[%c0_281, %c0_282] : memref<32x1xf32, #tpu.memory_space<vmem>>, vector<32x1xf32>
    %cst_283 = arith.constant dense<0.000000e+00> : vector<2x1xf32>
    %721 = tpu.matmul %719, %720, %cst_283 {dimension_numbers = #tpu.dot_dimension_numbers<[1], [0], [0], [1], [0, 0, 1, 1], [], []>} : vector<2x32xf32>, vector<32x1xf32>, vector<2x1xf32> -> vector<2x1xf32>
    %c0_284 = arith.constant 0 : index
    %c0_285 = arith.constant 0 : index
    %722 = vector.load %arg12[%c0_284, %c0_285] : memref<1x1xf32, #tpu.memory_space<vmem>>, vector<1x1xf32>
    %723 = vector.broadcast %722 : vector<1x1xf32> to vector<2x1xf32>
    %724 = arith.addf %721, %723 : vector<2x1xf32>
    %725 = arith.negf %724 : vector<2x1xf32>
    %726 = math.exp %725 : vector<2x1xf32>
    %cst_286 = arith.constant 1.000000e+00 : f32
    %727 = vector.broadcast %cst_286 : f32 to vector<2x1xf32>
    %728 = arith.addf %727, %726 : vector<2x1xf32>
    %729 = arith.divf %727, %728 : vector<2x1xf32>
    %c0_287 = arith.constant 0 : index
    %c0_288 = arith.constant 0 : index
    %730 = vector.load %arg13[%c0_287, %c0_288] : memref<2x1xf32, #tpu.memory_space<vmem>>, vector<2x1xf32>
    tpu.vector_store %arg13[%c0_287, %c0_288], %729 {strides = array<i32>} : memref<2x1xf32, #tpu.memory_space<vmem>>, vector<2x1xf32>,
    return
  }
  func.func @transform_0(%arg0: i32) -> (i32, i32, i32) {
    %c0_i32 = arith.constant 0 : i32
    %c0_i32_0 = arith.constant 0 : i32
    %c0_i32_1 = arith.constant 0 : i32
    %c0_i32_2 = arith.constant 0 : i32
    return %c0_i32, %c0_i32_0, %c0_i32_1 : i32, i32, i32
  }
  func.func @transform_1(%arg0: i32) -> (i32, i32) {
    %c0_i32 = arith.constant 0 : i32
    %c0_i32_0 = arith.constant 0 : i32
    %c0_i32_1 = arith.constant 0 : i32
    return %c0_i32, %c0_i32_0 : i32, i32
  }
  func.func @transform_2(%arg0: i32) -> (i32, i32) {
    %c0_i32 = arith.constant 0 : i32
    %c0_i32_0 = arith.constant 0 : i32
    %c0_i32_1 = arith.constant 0 : i32
    return %c0_i32, %c0_i32_0 : i32, i32
  }
  func.func @transform_3(%arg0: i32) -> (i32, i32) {
    %c0_i32 = arith.constant 0 : i32
    %c0_i32_0 = arith.constant 0 : i32
    %c0_i32_1 = arith.constant 0 : i32
    return %c0_i32, %c0_i32_0 : i32, i32
  }
  func.func @transform_4(%arg0: i32) -> (i32, i32) {
    %c0_i32 = arith.constant 0 : i32
    %c0_i32_0 = arith.constant 0 : i32
    %c0_i32_1 = arith.constant 0 : i32
    return %c0_i32, %c0_i32_0 : i32, i32
  }
  func.func @transform_5(%arg0: i32) -> (i32, i32) {
    %c0_i32 = arith.constant 0 : i32
    %c0_i32_0 = arith.constant 0 : i32
    %c0_i32_1 = arith.constant 0 : i32
    return %c0_i32, %c0_i32_0 : i32, i32
  }
  func.func @transform_6(%arg0: i32) -> (i32, i32) {
    %c0_i32 = arith.constant 0 : i32
    %c0_i32_0 = arith.constant 0 : i32
    %c0_i32_1 = arith.constant 0 : i32
    return %c0_i32, %c0_i32_0 : i32, i32
  }
  func.func @transform_7(%arg0: i32) -> (i32, i32) {
    %c0_i32 = arith.constant 0 : i32
    %c0_i32_0 = arith.constant 0 : i32
    %c0_i32_1 = arith.constant 0 : i32
    return %c0_i32, %c0_i32_0 : i32, i32
  }
  func.func @transform_8(%arg0: i32) -> (i32, i32) {
    %c0_i32 = arith.constant 0 : i32
    %c0_i32_0 = arith.constant 0 : i32
    %c0_i32_1 = arith.constant 0 : i32
    return %c0_i32, %c0_i32_0 : i32, i32
  }
  func.func @transform_9(%arg0: i32) -> (i32, i32) {
    %c0_i32 = arith.constant 0 : i32
    %c0_i32_0 = arith.constant 0 : i32
    %c0_i32_1 = arith.constant 0 : i32
    return %c0_i32, %c0_i32_0 : i32, i32
  }
  func.func @transform_10(%arg0: i32) -> (i32, i32) {
    %c0_i32 = arith.constant 0 : i32
    %c0_i32_0 = arith.constant 0 : i32
    %c0_i32_1 = arith.constant 0 : i32
    return %c0_i32, %c0_i32_0 : i32, i32
  }
  func.func @transform_11(%arg0: i32) -> (i32, i32) {
    %c0_i32 = arith.constant 0 : i32
    %c0_i32_0 = arith.constant 0 : i32
    %c0_i32_1 = arith.constant 0 : i32
    return %c0_i32, %c0_i32_0 : i32, i32
  }
  func.func @transform_12(%arg0: i32) -> (i32, i32) {
    %c0_i32 = arith.constant 0 : i32
    %c0_i32_0 = arith.constant 0 : i32
    %c0_i32_1 = arith.constant 0 : i32
    return %c0_i32, %c0_i32_0 : i32, i32
  }
}

</mosaic_0001>

<llo_original>
// kernel: yuan_forward.1
$region0: #{yuan_forward.1}
  #allocation0 [shape = 'u32[]', space=smem, size = 0x4, offset = 0x4, fixed_abs, tag = 'smem constant byte address 0x4 - core index']
  #allocation1 [shape = 'u32[144,128]{1,0:T(1,128)}', space=vmem, size = 0x12000, scoped, tag = 'internal scratch']
  #allocation2 [shape = 'f32[8,2,128]{2,1,0:T(2,128)}', space=vmem, size = 0x2000, scoped, tag = 'scratch operand']
  #allocation3 [shape = 'f32[8,2,128]{2,1,0:T(2,128)}', space=vmem, size = 0x2000, scoped, tag = 'scratch operand']
  #allocation4 [shape = 'f32[1,1]{1,0:T(1,128)S(1)}', space=vmem, size = 0x200, scoped, tag = 'scoped memory for yuan_forward.1']
  %s0 = inlined_call_operand.vmem [shape: bf16[8,2,32], index: 0, kind: input, shape index: {}]
  %s1 = inlined_call_operand.vmem [shape: bf16[32,128], index: 1, kind: input, shape index: {}]
  %s2 = inlined_call_operand.vmem [shape: bf16[32,128], index: 2, kind: input, shape index: {}]
  %s3 = inlined_call_operand.vmem [shape: f32[1,128], index: 3, kind: input, shape index: {}]
  %s4 = inlined_call_operand.vmem [shape: bf16[32,128], index: 4, kind: input, shape index: {}]
  %s5 = inlined_call_operand.vmem [shape: bf16[32,128], index: 5, kind: input, shape index: {}]
  %s6 = inlined_call_operand.vmem [shape: bf16[32,128], index: 6, kind: input, shape index: {}]
  %s7 = inlined_call_operand.vmem [shape: f32[1,128], index: 7, kind: input, shape index: {}]
  %s8 = inlined_call_operand.vmem [shape: f32[32,32], index: 8, kind: input, shape index: {}]
  %s9 = inlined_call_operand.vmem [shape: f32[1,32], index: 9, kind: input, shape index: {}]
  %s10 = inlined_call_operand.vmem [shape: f32[32,1], index: 10, kind: input, shape index: {}]
  %s11 = inlined_call_operand.<no memory space> [shape: f32[1,1], index: 11, kind: input, shape index: {}]
  %s12 = inlined_call_operand.vmem [shape: f32[2,1], index: 12, kind: output, shape index: {}]
  %s13 = sld [smem:[#allocation0]]
  $region58: #{yuan_forward.1} parent=0
    _
  %s15 = ssub.s32 1, %s13
  %s16 = scalar_select 0, %s15, %s13
  %v17 = vstv %s11
  %18 = vst [vmem:[#allocation4] sm:$0x1] %v17
  // Predicated region
  $region2: #{yuan_forward.1} parent=0 // pred_check
    _
  $region3: #{yuan_forward.1} parent=0 // pred_check_branch
    %20 = sbr.rel (0) target = $region5
  $region4: #{yuan_forward.1} parent=0 // pred_region
    _
  $region5: #{yuan_forward.1} parent=0 // pred_fallthru
    _
  // Predicated region
  $region6: #{yuan_forward.1} parent=0 // pred_check
    _
  $region7: #{yuan_forward.1} parent=0 // pred_check_branch
    %22 = sbr.rel (0) target = $region9
  $region8: #{yuan_forward.1} parent=0 // pred_region
    _
  $region9: #{yuan_forward.1} parent=0 // pred_fallthru
    _
  // Predicated region
  $region10: #{yuan_forward.1} parent=0 // pred_check
    _
  $region11: #{yuan_forward.1} parent=0 // pred_check_branch
    %24 = sbr.rel (0) target = $region13
  $region12: #{yuan_forward.1} parent=0 // pred_region
    _
  $region13: #{yuan_forward.1} parent=0 // pred_fallthru
    _
  // Predicated region
  $region14: #{yuan_forward.1} parent=0 // pred_check
    _
  $region15: #{yuan_forward.1} parent=0 // pred_check_branch
    %26 = sbr.rel (0) target = $region17
  $region16: #{yuan_forward.1} parent=0 // pred_region
    _
  $region17: #{yuan_forward.1} parent=0 // pred_fallthru
    _
  // Predicated region
  $region18: #{yuan_forward.1} parent=0 // pred_check
    _
  $region19: #{yuan_forward.1} parent=0 // pred_check_branch
    %28 = sbr.rel (0) target = $region21
  $region20: #{yuan_forward.1} parent=0 // pred_region
    _
  $region21: #{yuan_forward.1} parent=0 // pred_fallthru
    _
  // Predicated region
  $region22: #{yuan_forward.1} parent=0 // pred_check
    _
  $region23: #{yuan_forward.1} parent=0 // pred_check_branch
    %30 = sbr.rel (0) target = $region25
  $region24: #{yuan_forward.1} parent=0 // pred_region
    _
  $region25: #{yuan_forward.1} parent=0 // pred_fallthru
    _
  // Predicated region
  $region26: #{yuan_forward.1} parent=0 // pred_check
    _
  $region27: #{yuan_forward.1} parent=0 // pred_check_branch
    %32 = sbr.rel (0) target = $region29
  $region28: #{yuan_forward.1} parent=0 // pred_region
    _
  $region29: #{yuan_forward.1} parent=0 // pred_fallthru
    _
  // Predicated region
  $region30: #{yuan_forward.1} parent=0 // pred_check
    _
  $region31: #{yuan_forward.1} parent=0 // pred_check_branch
    %34 = sbr.rel (0) target = $region33
  $region32: #{yuan_forward.1} parent=0 // pred_region
    _
  $region33: #{yuan_forward.1} parent=0 // pred_fallthru
    _
  // Predicated region
  $region34: #{yuan_forward.1} parent=0 // pred_check
    _
  $region35: #{yuan_forward.1} parent=0 // pred_check_branch
    %36 = sbr.rel (0) target = $region37
  $region36: #{yuan_forward.1} parent=0 // pred_region
    _
  $region37: #{yuan_forward.1} parent=0 // pred_fallthru
    _
  // Predicated region
  $region38: #{yuan_forward.1} parent=0 // pred_check
    _
  $region39: #{yuan_forward.1} parent=0 // pred_check_branch
    %38 = sbr.rel (0) target = $region41
  $region40: #{yuan_forward.1} parent=0 // pred_region
    _
  $region41: #{yuan_forward.1} parent=0 // pred_fallthru
    _
  // Predicated region
  $region42: #{yuan_forward.1} parent=0 // pred_check
    _
  $region43: #{yuan_forward.1} parent=0 // pred_check_branch
    %40 = sbr.rel (0) target = $region45
  $region44: #{yuan_forward.1} parent=0 // pred_region
    _
  $region45: #{yuan_forward.1} parent=0 // pred_fallthru
    _
  // Predicated region
  $region46: #{yuan_forward.1} parent=0 // pred_check
    _
  $region47: #{yuan_forward.1} parent=0 // pred_check_branch
    %42 = sbr.rel (0) target = $region49
  $region48: #{yuan_forward.1} parent=0 // pred_region
    _
  $region49: #{yuan_forward.1} parent=0 // pred_fallthru
    _
  %v44 = vld [vmem:[%s1] sm:$0xf]
  %v45 = vld [vmem:[%s1 + $0x4] sm:$0xf]
  %v46 = vld [vmem:[%s1 + $0x8] sm:$0xf]
  %v47 = vld [vmem:[%s1 + $0xc] sm:$0xf]
  %v48 = vld [vmem:[%s3] sm:$0x1]
  %v49 = vld [vmem:[%s0] sm:$0x1]
  %v51 = vlaneseq
  %v52 = vshrl.u32 %v51, 7
  %v53 = vsub.s32 0, %v52
  %v54 = vrot.slane %v48, %v53
  %v60 = vunpack.c.l.b16 %v44
  %v61 = vunpack.c.l.b16 %v45
  %v62 = vunpack.c.l.b16 %v46
  %v63 = vunpack.c.l.b16 %v47
  %v64 = vpack.c.b16 %v61, %v60
  %v65 = vpack.c.b16 %v63, %v62
  %vm68 = vcmask 261120
  %v70 = vsel %vm68, %v49, 0
  %72 = vmatprep.subr.bf16.mxu0 0
  %73 = vmatpush1.bf16.msra.mxu0 0
  %74 = vmatprep.subr.bf16.mxu0 0
  %75 = vmatpush1.bf16.msra.mxu0 0
  %76 = vmatprep.subr.bf16.mxu0 0
  %77 = vmatpush1.bf16.msra.mxu0 0
  %78 = vmatprep.subr.bf16.mxu0 0
  %79 = vmatpush1.bf16.msra.mxu0 0
  %80 = vmatprep.subr.bf16.mxu0 0
  %81 = vmatpush1.bf16.msra.mxu0 0
  %82 = vmatprep.subr.bf16.mxu0 0
  %83 = vmatpush1.bf16.msra.mxu0 0
  %84 = vmatprep.subr.bf16.mxu0 0
  %85 = vmatpush1.bf16.msra.mxu0 %v65
  %86 = vmatprep.subr.bf16.mxu0 0
  %87 = vmatpush1.bf16.msra.mxu0 %v64
  %88 = vmatprep.subr.bf16.mxu0 0
  %89 = vmatpush2.bf16.msra.mxu0 0
  %90 = vmatprep.subr.bf16.mxu0 0
  %91 = vmatpush2.bf16.msra.mxu0 0
  %92 = vmatprep.subr.bf16.mxu0 0
  %93 = vmatpush2.bf16.msra.mxu0 0
  %94 = vmatprep.subr.bf16.mxu0 0
  %95 = vmatpush2.bf16.msra.mxu0 0
  %96 = vmatprep.subr.bf16.mxu0 0
  %97 = vmatpush2.bf16.msra.mxu0 0
  %98 = vmatprep.subr.bf16.mxu0 0
  %99 = vmatpush2.bf16.msra.mxu0 0
  %100 = vmatprep.subr.bf16.mxu0 0
  %101 = vmatpush2.bf16.msra.mxu0 0
  %102 = vmatprep.subr.bf16.mxu0 0
  %103 = vmatpush2.bf16.msra.mxu0 0
  %104 = vmatprep.mubr.bf16.mxu0 0
  %105 = vmatmul.mubr.bf16.gmra.mxu0 %v70
  %v106 = vpop.f32.mrf.mxu0
  %v107 = vadd.f32 %v54, %v106
  %v108 = vpop.f32.mrf.mxu0
  %v109 = vpop.f32.mrf.mxu0
  %v110 = vpop.f32.mrf.mxu0
  %111 = vdwg.mxu0
  %112 = vst [vmem:[#allocation2] sm:$0x3] %v107
  %s113 = scalar_lea.vmem %s0, 1
  %v114 = vld [vmem:[%s113] sm:$0x1]
  %v116 = vsel %vm68, %v114, 0
  %118 = vmatprep.subr.bf16.mxu0 0
  %119 = vmatpush1.bf16.msra.mxu0 0
  %120 = vmatprep.subr.bf16.mxu0 0
  %121 = vmatpush1.bf16.msra.mxu0 0
  %122 = vmatprep.subr.bf16.mxu0 0
  %123 = vmatpush1.bf16.msra.mxu0 0
  %124 = vmatprep.subr.bf16.mxu0 0
  %125 = vmatpush1.bf16.msra.mxu0 0
  %126 = vmatprep.subr.bf16.mxu0 0
  %127 = vmatpush1.bf16.msra.mxu0 0
  %128 = vmatprep.subr.bf16.mxu0 0
  %129 = vmatpush1.bf16.msra.mxu0 0
  %130 = vmatprep.subr.bf16.mxu0 0
  %131 = vmatpush1.bf16.msra.mxu0 %v65
  %132 = vmatprep.subr.bf16.mxu0 0
  %133 = vmatpush1.bf16.msra.mxu0 %v64
  %134 = vmatprep.subr.bf16.mxu0 0
  %135 = vmatpush2.bf16.msra.mxu0 0
  %136 = vmatprep.subr.bf16.mxu0 0
  %137 = vmatpush2.bf16.msra.mxu0 0
  %138 = vmatprep.subr.bf16.mxu0 0
  %139 = vmatpush2.bf16.msra.mxu0 0
  %140 = vmatprep.subr.bf16.mxu0 0
  %141 = vmatpush2.bf16.msra.mxu0 0
  %142 = vmatprep.subr.bf16.mxu0 0
  %143 = vmatpush2.bf16.msra.mxu0 0
  %144 = vmatprep.subr.bf16.mxu0 0
  %145 = vmatpush2.bf16.msra.mxu0 0
  %146 = vmatprep.subr.bf16.mxu0 0
  %147 = vmatpush2.bf16.msra.mxu0 0
  %148 = vmatprep.subr.bf16.mxu0 0
  %149 = vmatpush2.bf16.msra.mxu0 0
  %150 = vmatprep.mubr.bf16.mxu0 0
  %151 = vmatmul.mubr.bf16.gmra.mxu0 %v116
  %v152 = vpop.f32.mrf.mxu0
  %v153 = vadd.f32 %v54, %v152
  %v154 = vpop.f32.mrf.mxu0
  %v155 = vpop.f32.mrf.mxu0
  %v156 = vpop.f32.mrf.mxu0
  %157 = vdwg.mxu0
  %s158 = scalar_lea.vmem [#allocation2], 2
  %159 = vst [vmem:[%s158] sm:$0x3] %v153
  %s160 = scalar_lea.vmem %s0, 2
  %v161 = vld [vmem:[%s160] sm:$0x1]
  %v163 = vsel %vm68, %v161, 0
  %165 = vmatprep.subr.bf16.mxu0 0
  %166 = vmatpush1.bf16.msra.mxu0 0
  %167 = vmatprep.subr.bf16.mxu0 0
  %168 = vmatpush1.bf16.msra.mxu0 0
  %169 = vmatprep.subr.bf16.mxu0 0
  %170 = vmatpush1.bf16.msra.mxu0 0
  %171 = vmatprep.subr.bf16.mxu0 0
  %172 = vmatpush1.bf16.msra.mxu0 0
  %173 = vmatprep.subr.bf16.mxu0 0
  %174 = vmatpush1.bf16.msra.mxu0 0
  %175 = vmatprep.subr.bf16.mxu0 0
  %176 = vmatpush1.bf16.msra.mxu0 0
  %177 = vmatprep.subr.bf16.mxu0 0
  %178 = vmatpush1.bf16.msra.mxu0 %v65
  %179 = vmatprep.subr.bf16.mxu0 0
  %180 = vmatpush1.bf16.msra.mxu0 %v64
  %181 = vmatprep.subr.bf16.mxu0 0
  %182 = vmatpush2.bf16.msra.mxu0 0
  %183 = vmatprep.subr.bf16.mxu0 0
  %184 = vmatpush2.bf16.msra.mxu0 0
  %185 = vmatprep.subr.bf16.mxu0 0
  %186 = vmatpush2.bf16.msra.mxu0 0
  %187 = vmatprep.subr.bf16.mxu0 0
  %188 = vmatpush2.bf16.msra.mxu0 0
  %189 = vmatprep.subr.bf16.mxu0 0
  %190 = vmatpush2.bf16.msra.mxu0 0
  %191 = vmatprep.subr.bf16.mxu0 0
  %192 = vmatpush2.bf16.msra.mxu0 0
  %193 = vmatprep.subr.bf16.mxu0 0
  %194 = vmatpush2.bf16.msra.mxu0 0
  %195 = vmatprep.subr.bf16.mxu0 0
  %196 = vmatpush2.bf16.msra.mxu0 0
  %197 = vmatprep.mubr.bf16.mxu0 0
  %198 = vmatmul.mubr.bf16.gmra.mxu0 %v163
  %v199 = vpop.f32.mrf.mxu0
  %v200 = vadd.f32 %v54, %v199
  %v201 = vpop.f32.mrf.mxu0
  %v202 = vpop.f32.mrf.mxu0
  %v203 = vpop.f32.mrf.mxu0
  %204 = vdwg.mxu0
  %s205 = scalar_lea.vmem [#allocation2], 4
  %206 = vst [vmem:[%s205] sm:$0x3] %v200
  %s207 = scalar_lea.vmem %s0, 3
  %v208 = vld [vmem:[%s207] sm:$0x1]
  %v210 = vsel %vm68, %v208, 0
  %212 = vmatprep.subr.bf16.mxu0 0
  %213 = vmatpush1.bf16.msra.mxu0 0
  %214 = vmatprep.subr.bf16.mxu0 0
  %215 = vmatpush1.bf16.msra.mxu0 0
  %216 = vmatprep.subr.bf16.mxu0 0
  %217 = vmatpush1.bf16.msra.mxu0 0
  %218 = vmatprep.subr.bf16.mxu0 0
  %219 = vmatpush1.bf16.msra.mxu0 0
  %220 = vmatprep.subr.bf16.mxu0 0
  %221 = vmatpush1.bf16.msra.mxu0 0
  %222 = vmatprep.subr.bf16.mxu0 0
  %223 = vmatpush1.bf16.msra.mxu0 0
  %224 = vmatprep.subr.bf16.mxu0 0
  %225 = vmatpush1.bf16.msra.mxu0 %v65
  %226 = vmatprep.subr.bf16.mxu0 0
  %227 = vmatpush1.bf16.msra.mxu0 %v64
  %228 = vmatprep.subr.bf16.mxu0 0
  %229 = vmatpush2.bf16.msra.mxu0 0
  %230 = vmatprep.subr.bf16.mxu0 0
  %231 = vmatpush2.bf16.msra.mxu0 0
  %232 = vmatprep.subr.bf16.mxu0 0
  %233 = vmatpush2.bf16.msra.mxu0 0
  %234 = vmatprep.subr.bf16.mxu0 0
  %235 = vmatpush2.bf16.msra.mxu0 0
  %236 = vmatprep.subr.bf16.mxu0 0
  %237 = vmatpush2.bf16.msra.mxu0 0
  %238 = vmatprep.subr.bf16.mxu0 0
  %239 = vmatpush2.bf16.msra.mxu0 0
  %240 = vmatprep.subr.bf16.mxu0 0
  %241 = vmatpush2.bf16.msra.mxu0 0
  %242 = vmatprep.subr.bf16.mxu0 0
  %243 = vmatpush2.bf16.msra.mxu0 0
  %244 = vmatprep.mubr.bf16.mxu0 0
  %245 = vmatmul.mubr.bf16.gmra.mxu0 %v210
  %v246 = vpop.f32.mrf.mxu0
  %v247 = vadd.f32 %v54, %v246
  %v248 = vpop.f32.mrf.mxu0
  %v249 = vpop.f32.mrf.mxu0
  %v250 = vpop.f32.mrf.mxu0
  %251 = vdwg.mxu0
  %s252 = scalar_lea.vmem [#allocation2], 6
  %253 = vst [vmem:[%s252] sm:$0x3] %v247
  %s254 = scalar_lea.vmem %s0, 4
  %v255 = vld [vmem:[%s254] sm:$0x1]
  %v257 = vsel %vm68, %v255, 0
  %259 = vmatprep.subr.bf16.mxu0 0
  %260 = vmatpush1.bf16.msra.mxu0 0
  %261 = vmatprep.subr.bf16.mxu0 0
  %262 = vmatpush1.bf16.msra.mxu0 0
  %263 = vmatprep.subr.bf16.mxu0 0
  %264 = vmatpush1.bf16.msra.mxu0 0
  %265 = vmatprep.subr.bf16.mxu0 0
  %266 = vmatpush1.bf16.msra.mxu0 0
  %267 = vmatprep.subr.bf16.mxu0 0
  %268 = vmatpush1.bf16.msra.mxu0 0
  %269 = vmatprep.subr.bf16.mxu0 0
  %270 = vmatpush1.bf16.msra.mxu0 0
  %271 = vmatprep.subr.bf16.mxu0 0
  %272 = vmatpush1.bf16.msra.mxu0 %v65
  %273 = vmatprep.subr.bf16.mxu0 0
  %274 = vmatpush1.bf16.msra.mxu0 %v64
  %275 = vmatprep.subr.bf16.mxu0 0
  %276 = vmatpush2.bf16.msra.mxu0 0
  %277 = vmatprep.subr.bf16.mxu0 0
  %278 = vmatpush2.bf16.msra.mxu0 0
  %279 = vmatprep.subr.bf16.mxu0 0
  %280 = vmatpush2.bf16.msra.mxu0 0
  %281 = vmatprep.subr.bf16.mxu0 0
  %282 = vmatpush2.bf16.msra.mxu0 0
  %283 = vmatprep.subr.bf16.mxu0 0
  %284 = vmatpush2.bf16.msra.mxu0 0
  %285 = vmatprep.subr.bf16.mxu0 0
  %286 = vmatpush2.bf16.msra.mxu0 0
  %287 = vmatprep.subr.bf16.mxu0 0
  %288 = vmatpush2.bf16.msra.mxu0 0
  %289 = vmatprep.subr.bf16.mxu0 0
  %290 = vmatpush2.bf16.msra.mxu0 0
  %291 = vmatprep.mubr.bf16.mxu0 0
  %292 = vmatmul.mubr.bf16.gmra.mxu0 %v257
  %v293 = vpop.f32.mrf.mxu0
  %v294 = vadd.f32 %v54, %v293
  %v295 = vpop.f32.mrf.mxu0
  %v296 = vpop.f32.mrf.mxu0
  %v297 = vpop.f32.mrf.mxu0
  %298 = vdwg.mxu0
  %s299 = scalar_lea.vmem [#allocation2], 8
  %300 = vst [vmem:[%s299] sm:$0x3] %v294
  %s301 = scalar_lea.vmem %s0, 5
  %v302 = vld [vmem:[%s301] sm:$0x1]
  %v304 = vsel %vm68, %v302, 0
  %306 = vmatprep.subr.bf16.mxu0 0
  %307 = vmatpush1.bf16.msra.mxu0 0
  %308 = vmatprep.subr.bf16.mxu0 0
  %309 = vmatpush1.bf16.msra.mxu0 0
  %310 = vmatprep.subr.bf16.mxu0 0
  %311 = vmatpush1.bf16.msra.mxu0 0
  %312 = vmatprep.subr.bf16.mxu0 0
  %313 = vmatpush1.bf16.msra.mxu0 0
  %314 = vmatprep.subr.bf16.mxu0 0
  %315 = vmatpush1.bf16.msra.mxu0 0
  %316 = vmatprep.subr.bf16.mxu0 0
  %317 = vmatpush1.bf16.msra.mxu0 0
  %318 = vmatprep.subr.bf16.mxu0 0
  %319 = vmatpush1.bf16.msra.mxu0 %v65
  %320 = vmatprep.subr.bf16.mxu0 0
  %321 = vmatpush1.bf16.msra.mxu0 %v64
  %322 = vmatprep.subr.bf16.mxu0 0
  %323 = vmatpush2.bf16.msra.mxu0 0
  %324 = vmatprep.subr.bf16.mxu0 0
  %325 = vmatpush2.bf16.msra.mxu0 0
  %326 = vmatprep.subr.bf16.mxu0 0
  %327 = vmatpush2.bf16.msra.mxu0 0
  %328 = vmatprep.subr.bf16.mxu0 0
  %329 = vmatpush2.bf16.msra.mxu0 0
  %330 = vmatprep.subr.bf16.mxu0 0
  %331 = vmatpush2.bf16.msra.mxu0 0
  %332 = vmatprep.subr.bf16.mxu0 0
  %333 = vmatpush2.bf16.msra.mxu0 0
  %334 = vmatprep.subr.bf16.mxu0 0
  %335 = vmatpush2.bf16.msra.mxu0 0
  %336 = vmatprep.subr.bf16.mxu0 0
  %337 = vmatpush2.bf16.msra.mxu0 0
  %338 = vmatprep.mubr.bf16.mxu0 0
  %339 = vmatmul.mubr.bf16.gmra.mxu0 %v304
  %v340 = vpop.f32.mrf.mxu0
  %v341 = vadd.f32 %v54, %v340
  %v342 = vpop.f32.mrf.mxu0
  %v343 = vpop.f32.mrf.mxu0
  %v344 = vpop.f32.mrf.mxu0
  %345 = vdwg.mxu0
  %s346 = scalar_lea.vmem [#allocation2], 10
  %347 = vst [vmem:[%s346] sm:$0x3] %v341
  %s348 = scalar_lea.vmem %s0, 6
  %v349 = vld [vmem:[%s348] sm:$0x1]
  %v351 = vsel %vm68, %v349, 0
  %353 = vmatprep.subr.bf16.mxu0 0
  %354 = vmatpush1.bf16.msra.mxu0 0
  %355 = vmatprep.subr.bf16.mxu0 0
  %356 = vmatpush1.bf16.msra.mxu0 0
  %357 = vmatprep.subr.bf16.mxu0 0
  %358 = vmatpush1.bf16.msra.mxu0 0
  %359 = vmatprep.subr.bf16.mxu0 0
  %360 = vmatpush1.bf16.msra.mxu0 0
  %361 = vmatprep.subr.bf16.mxu0 0
  %362 = vmatpush1.bf16.msra.mxu0 0
  %363 = vmatprep.subr.bf16.mxu0 0
  %364 = vmatpush1.bf16.msra.mxu0 0
  %365 = vmatprep.subr.bf16.mxu0 0
  %366 = vmatpush1.bf16.msra.mxu0 %v65
  %367 = vmatprep.subr.bf16.mxu0 0
  %368 = vmatpush1.bf16.msra.mxu0 %v64
  %369 = vmatprep.subr.bf16.mxu0 0
  %370 = vmatpush2.bf16.msra.mxu0 0
  %371 = vmatprep.subr.bf16.mxu0 0
  %372 = vmatpush2.bf16.msra.mxu0 0
  %373 = vmatprep.subr.bf16.mxu0 0
  %374 = vmatpush2.bf16.msra.mxu0 0
  %375 = vmatprep.subr.bf16.mxu0 0
  %376 = vmatpush2.bf16.msra.mxu0 0
  %377 = vmatprep.subr.bf16.mxu0 0
  %378 = vmatpush2.bf16.msra.mxu0 0
  %379 = vmatprep.subr.bf16.mxu0 0
  %380 = vmatpush2.bf16.msra.mxu0 0
  %381 = vmatprep.subr.bf16.mxu0 0
  %382 = vmatpush2.bf16.msra.mxu0 0
  %383 = vmatprep.subr.bf16.mxu0 0
  %384 = vmatpush2.bf16.msra.mxu0 0
  %385 = vmatprep.mubr.bf16.mxu0 0
  %386 = vmatmul.mubr.bf16.gmra.mxu0 %v351
  %v387 = vpop.f32.mrf.mxu0
  %v388 = vadd.f32 %v54, %v387
  %v389 = vpop.f32.mrf.mxu0
  %v390 = vpop.f32.mrf.mxu0
  %v391 = vpop.f32.mrf.mxu0
  %392 = vdwg.mxu0
  %s393 = scalar_lea.vmem [#allocation2], 12
  %394 = vst [vmem:[%s393] sm:$0x3] %v388
  %s395 = scalar_lea.vmem %s0, 7
  %v396 = vld [vmem:[%s395] sm:$0x1]
  %v398 = vsel %vm68, %v396, 0
  %400 = vmatprep.subr.bf16.mxu0 0
  %401 = vmatpush1.bf16.msra.mxu0 0
  %402 = vmatprep.subr.bf16.mxu0 0
  %403 = vmatpush1.bf16.msra.mxu0 0
  %404 = vmatprep.subr.bf16.mxu0 0
  %405 = vmatpush1.bf16.msra.mxu0 0
  %406 = vmatprep.subr.bf16.mxu0 0
  %407 = vmatpush1.bf16.msra.mxu0 0
  %408 = vmatprep.subr.bf16.mxu0 0
  %409 = vmatpush1.bf16.msra.mxu0 0
  %410 = vmatprep.subr.bf16.mxu0 0
  %411 = vmatpush1.bf16.msra.mxu0 0
  %412 = vmatprep.subr.bf16.mxu0 0
  %413 = vmatpush1.bf16.msra.mxu0 %v65
  %414 = vmatprep.subr.bf16.mxu0 0
  %415 = vmatpush1.bf16.msra.mxu0 %v64
  %416 = vmatprep.subr.bf16.mxu0 0
  %417 = vmatpush2.bf16.msra.mxu0 0
  %418 = vmatprep.subr.bf16.mxu0 0
  %419 = vmatpush2.bf16.msra.mxu0 0
  %420 = vmatprep.subr.bf16.mxu0 0
  %421 = vmatpush2.bf16.msra.mxu0 0
  %422 = vmatprep.subr.bf16.mxu0 0
  %423 = vmatpush2.bf16.msra.mxu0 0
  %424 = vmatprep.subr.bf16.mxu0 0
  %425 = vmatpush2.bf16.msra.mxu0 0
  %426 = vmatprep.subr.bf16.mxu0 0
  %427 = vmatpush2.bf16.msra.mxu0 0
  %428 = vmatprep.subr.bf16.mxu0 0
  %429 = vmatpush2.bf16.msra.mxu0 0
  %430 = vmatprep.subr.bf16.mxu0 0
  %431 = vmatpush2.bf16.msra.mxu0 0
  %432 = vmatprep.mubr.bf16.mxu0 0
  %433 = vmatmul.mubr.bf16.gmra.mxu0 %v398
  %v434 = vpop.f32.mrf.mxu0
  %v435 = vadd.f32 %v54, %v434
  %v436 = vpop.f32.mrf.mxu0
  %v437 = vpop.f32.mrf.mxu0
  %v438 = vpop.f32.mrf.mxu0
  %439 = vdwg.mxu0
  %s440 = scalar_lea.vmem [#allocation2], 14
  %441 = vst [vmem:[%s440] sm:$0x3] %v435
  %v442 = vlaneseq
  %v443 = vand.u32 %v442, 127
  %vm444 = vcmp.lt.s32.totalorder %v443, 0
  %v445 = vsub.s32 0, %v443
  %v446 = vsel %vm444, %v445, %v443
  %v447 = vshrl.u32 %v446, 5
  %v448 = vand.u32 %v446, 31
  %v449 = vsub.s32 0, %v448
  %v450 = vsel %vm444, %v449, %v448
  %vm451 = vcmp.ne.s32.totalorder %v450, 0
  %vm452 = vcmp.lt.s32.totalorder %v450, 0
  %vm453 = vmand %vm452, %vm451
  %v454 = vadd.s32 %v450, 32
  %v455 = vsel %vm453, %v454, %v450
  %vm456 = vcmp.lt.s32.totalorder %v455, 16
  %v457 = vld [vmem:[%s2] sm:$0xf]
  %v458 = vld [vmem:[%s2 + $0x4] sm:$0xf]
  %v459 = vld [vmem:[%s2 + $0x8] sm:$0xf]
  %v460 = vld [vmem:[%s2 + $0xc] sm:$0xf]
  %v461 = vld [vmem:[#allocation2] sm:$0x3]
  %v462 = vld [vmem:[%s440] sm:$0x3]
  %v463 = vsel %vm456, %v461, %v462
  %v468 = vunpack.c.l.b16 %v457
  %v469 = vunpack.c.l.b16 %v458
  %v470 = vunpack.c.l.b16 %v459
  %v471 = vunpack.c.l.b16 %v460
  %v472 = vpack.c.b16 %v469, %v468
  %v473 = vpack.c.b16 %v471, %v470
  %v477 = vsel %vm68, 0, 0
  %479 = vmatprep.subr.bf16.mxu0 0
  %480 = vmatpush1.bf16.msra.mxu0 0
  %481 = vmatprep.subr.bf16.mxu0 0
  %482 = vmatpush1.bf16.msra.mxu0 0
  %483 = vmatprep.subr.bf16.mxu0 0
  %484 = vmatpush1.bf16.msra.mxu0 0
  %485 = vmatprep.subr.bf16.mxu0 0
  %486 = vmatpush1.bf16.msra.mxu0 0
  %487 = vmatprep.subr.bf16.mxu0 0
  %488 = vmatpush1.bf16.msra.mxu0 0
  %489 = vmatprep.subr.bf16.mxu0 0
  %490 = vmatpush1.bf16.msra.mxu0 0
  %491 = vmatprep.subr.bf16.mxu0 0
  %492 = vmatpush1.bf16.msra.mxu0 %v473
  %493 = vmatprep.subr.bf16.mxu0 0
  %494 = vmatpush1.bf16.msra.mxu0 %v472
  %495 = vmatprep.subr.bf16.mxu0 0
  %496 = vmatpush2.bf16.msra.mxu0 0
  %497 = vmatprep.subr.bf16.mxu0 0
  %498 = vmatpush2.bf16.msra.mxu0 0
  %499 = vmatprep.subr.bf16.mxu0 0
  %500 = vmatpush2.bf16.msra.mxu0 0
  %501 = vmatprep.subr.bf16.mxu0 0
  %502 = vmatpush2.bf16.msra.mxu0 0
  %503 = vmatprep.subr.bf16.mxu0 0
  %504 = vmatpush2.bf16.msra.mxu0 0
  %505 = vmatprep.subr.bf16.mxu0 0
  %506 = vmatpush2.bf16.msra.mxu0 0
  %507 = vmatprep.subr.bf16.mxu0 0
  %508 = vmatpush2.bf16.msra.mxu0 0
  %509 = vmatprep.subr.bf16.mxu0 0
  %510 = vmatpush2.bf16.msra.mxu0 0
  %511 = vmatprep.mubr.bf16.mxu0 0
  %512 = vmatmul.mubr.bf16.gmra.mxu0 %v477
  %v513 = vpop.f32.mrf.mxu0
  %v514 = vadd.f32 0.0, %v513
  %v515 = vpop.f32.mrf.mxu0
  %v516 = vpop.f32.mrf.mxu0
  %v517 = vpop.f32.mrf.mxu0
  %518 = vdwg.mxu0
  %v519 = vadd.f32 %v463, %v514
  %v520 = vxor.u32 %v519, 2147483648
  %v521 = vmul.f32 %v520, 1.442695
  %v522 = vpow.pop %v521
  %v523 = vadd.f32 %v522, 1.0
  %v524 = vrcp.pop %v523
  %v525 = vmul.f32 1.0, %v524
  %v526 = vtanh.pop %v519
  %v527 = vmul.f32 %v525, 0.0
  %529 = vrot.lane.b32.xlu0 %v526, 64
  %v530 = vpop.permute.xlu0 %529
  %v532 = vmul.f32 %v525, %v530
  %534 = vrot.lane.b32.xlu0 %v532, 32
  %v535 = vpop.permute.xlu0 %534
  %v537 = vadd.f32 %v527, %v535
  %v538 = vtanh.pop %v537
  %540 = vrot.lane.b32.xlu0 %v538, 64
  %v541 = vpop.permute.xlu0 %540
  %v543 = vmul.f32 %v525, %v541
  %v544 = vld [vmem:[%s158] sm:$0x3]
  %v545 = vld [vmem:[%s393] sm:$0x3]
  %v546 = vsel %vm456, %v544, %v545
  %v547 = vpack.c.bf16 %v543, %v543
  %549 = vrot.lane.b32.xlu0 %v547, 32
  %v550 = vpop.permute.xlu0 %549
  %v552 = vsel %vm68, %v550, 0
  %554 = vmatprep.subr.bf16.mxu0 0
  %555 = vmatpush1.bf16.msra.mxu0 0
  %556 = vmatprep.subr.bf16.mxu0 0
  %557 = vmatpush1.bf16.msra.mxu0 0
  %558 = vmatprep.subr.bf16.mxu0 0
  %559 = vmatpush1.bf16.msra.mxu0 0
  %560 = vmatprep.subr.bf16.mxu0 0
  %561 = vmatpush1.bf16.msra.mxu0 0
  %562 = vmatprep.subr.bf16.mxu0 0
  %563 = vmatpush1.bf16.msra.mxu0 0
  %564 = vmatprep.subr.bf16.mxu0 0
  %565 = vmatpush1.bf16.msra.mxu0 0
  %566 = vmatprep.subr.bf16.mxu0 0
  %567 = vmatpush1.bf16.msra.mxu0 %v473
  %568 = vmatprep.subr.bf16.mxu0 0
  %569 = vmatpush1.bf16.msra.mxu0 %v472
  %570 = vmatprep.subr.bf16.mxu0 0
  %571 = vmatpush2.bf16.msra.mxu0 0
  %572 = vmatprep.subr.bf16.mxu0 0
  %573 = vmatpush2.bf16.msra.mxu0 0
  %574 = vmatprep.subr.bf16.mxu0 0
  %575 = vmatpush2.bf16.msra.mxu0 0
  %576 = vmatprep.subr.bf16.mxu0 0
  %577 = vmatpush2.bf16.msra.mxu0 0
  %578 = vmatprep.subr.bf16.mxu0 0
  %579 = vmatpush2.bf16.msra.mxu0 0
  %580 = vmatprep.subr.bf16.mxu0 0
  %581 = vmatpush2.bf16.msra.mxu0 0
  %582 = vmatprep.subr.bf16.mxu0 0
  %583 = vmatpush2.bf16.msra.mxu0 0
  %584 = vmatprep.subr.bf16.mxu0 0
  %585 = vmatpush2.bf16.msra.mxu0 0
  %586 = vmatprep.mubr.bf16.mxu0 0
  %587 = vmatmul.mubr.bf16.gmra.mxu0 %v552
  %v588 = vpop.f32.mrf.mxu0
  %v589 = vadd.f32 0.0, %v588
  %v590 = vpop.f32.mrf.mxu0
  %v591 = vpop.f32.mrf.mxu0
  %v592 = vpop.f32.mrf.mxu0
  %593 = vdwg.mxu0
  %v594 = vadd.f32 %v546, %v589
  %v595 = vxor.u32 %v594, 2147483648
  %v596 = vmul.f32 %v595, 1.442695
  %v597 = vpow.pop %v596
  %v598 = vadd.f32 %v597, 1.0
  %v599 = vrcp.pop %v598
  %v600 = vmul.f32 1.0, %v599
  %v601 = vtanh.pop %v594
  %v602 = vmul.f32 %v600, %v537
  %604 = vrot.lane.b32.xlu0 %v601, 64
  %v605 = vpop.permute.xlu0 %604
  %v607 = vmul.f32 %v600, %v605
  %609 = vrot.lane.b32.xlu0 %v607, 32
  %v610 = vpop.permute.xlu0 %609
  %v612 = vadd.f32 %v602, %v610
  %v613 = vtanh.pop %v612
  %615 = vrot.lane.b32.xlu0 %v613, 64
  %v616 = vpop.permute.xlu0 %615
  %v618 = vmul.f32 %v600, %v616
  %v619 = vld [vmem:[%s205] sm:$0x3]
  %v620 = vld [vmem:[%s346] sm:$0x3]
  %v621 = vsel %vm456, %v619, %v620
  %v622 = vpack.c.bf16 %v618, %v618
  %624 = vrot.lane.b32.xlu0 %v622, 32
  %v625 = vpop.permute.xlu0 %624
  %v627 = vsel %vm68, %v625, 0
  %629 = vmatprep.subr.bf16.mxu0 0
  %630 = vmatpush1.bf16.msra.mxu0 0
  %631 = vmatprep.subr.bf16.mxu0 0
  %632 = vmatpush1.bf16.msra.mxu0 0
  %633 = vmatprep.subr.bf16.mxu0 0
  %634 = vmatpush1.bf16.msra.mxu0 0
  %635 = vmatprep.subr.bf16.mxu0 0
  %636 = vmatpush1.bf16.msra.mxu0 0
  %637 = vmatprep.subr.bf16.mxu0 0
  %638 = vmatpush1.bf16.msra.mxu0 0
  %639 = vmatprep.subr.bf16.mxu0 0
  %640 = vmatpush1.bf16.msra.mxu0 0
  %641 = vmatprep.subr.bf16.mxu0 0
  %642 = vmatpush1.bf16.msra.mxu0 %v473
  %643 = vmatprep.subr.bf16.mxu0 0
  %644 = vmatpush1.bf16.msra.mxu0 %v472
  %645 = vmatprep.subr.bf16.mxu0 0
  %646 = vmatpush2.bf16.msra.mxu0 0
  %647 = vmatprep.subr.bf16.mxu0 0
  %648 = vmatpush2.bf16.msra.mxu0 0
  %649 = vmatprep.subr.bf16.mxu0 0
  %650 = vmatpush2.bf16.msra.mxu0 0
  %651 = vmatprep.subr.bf16.mxu0 0
  %652 = vmatpush2.bf16.msra.mxu0 0
  %653 = vmatprep.subr.bf16.mxu0 0
  %654 = vmatpush2.bf16.msra.mxu0 0
  %655 = vmatprep.subr.bf16.mxu0 0
  %656 = vmatpush2.bf16.msra.mxu0 0
  %657 = vmatprep.subr.bf16.mxu0 0
  %658 = vmatpush2.bf16.msra.mxu0 0
  %659 = vmatprep.subr.bf16.mxu0 0
  %660 = vmatpush2.bf16.msra.mxu0 0
  %661 = vmatprep.mubr.bf16.mxu0 0
  %662 = vmatmul.mubr.bf16.gmra.mxu0 %v627
  %v663 = vpop.f32.mrf.mxu0
  %v664 = vadd.f32 0.0, %v663
  %v665 = vpop.f32.mrf.mxu0
  %v666 = vpop.f32.mrf.mxu0
  %v667 = vpop.f32.mrf.mxu0
  %668 = vdwg.mxu0
  %v669 = vadd.f32 %v621, %v664
  %v670 = vxor.u32 %v669, 2147483648
  %v671 = vmul.f32 %v670, 1.442695
  %v672 = vpow.pop %v671
  %v673 = vadd.f32 %v672, 1.0
  %v674 = vrcp.pop %v673
  %v675 = vmul.f32 1.0, %v674
  %v676 = vtanh.pop %v669
  %v677 = vmul.f32 %v675, %v612
  %679 = vrot.lane.b32.xlu0 %v676, 64
  %v680 = vpop.permute.xlu0 %679
  %v682 = vmul.f32 %v675, %v680
  %684 = vrot.lane.b32.xlu0 %v682, 32
  %v685 = vpop.permute.xlu0 %684
  %v687 = vadd.f32 %v677, %v685
  %v688 = vtanh.pop %v687
  %690 = vrot.lane.b32.xlu0 %v688, 64
  %v691 = vpop.permute.xlu0 %690
  %v693 = vmul.f32 %v675, %v691
  %v694 = vld [vmem:[%s252] sm:$0x3]
  %v695 = vld [vmem:[%s299] sm:$0x3]
  %v696 = vsel %vm456, %v694, %v695
  %v697 = vpack.c.bf16 %v693, %v693
  %699 = vrot.lane.b32.xlu0 %v697, 32
  %v700 = vpop.permute.xlu0 %699
  %v702 = vsel %vm68, %v700, 0
  %704 = vmatprep.subr.bf16.mxu0 0
  %705 = vmatpush1.bf16.msra.mxu0 0
  %706 = vmatprep.subr.bf16.mxu0 0
  %707 = vmatpush1.bf16.msra.mxu0 0
  %708 = vmatprep.subr.bf16.mxu0 0
  %709 = vmatpush1.bf16.msra.mxu0 0
  %710 = vmatprep.subr.bf16.mxu0 0
  %711 = vmatpush1.bf16.msra.mxu0 0
  %712 = vmatprep.subr.bf16.mxu0 0
  %713 = vmatpush1.bf16.msra.mxu0 0
  %714 = vmatprep.subr.bf16.mxu0 0
  %715 = vmatpush1.bf16.msra.mxu0 0
  %716 = vmatprep.subr.bf16.mxu0 0
  %717 = vmatpush1.bf16.msra.mxu0 %v473
  %718 = vmatprep.subr.bf16.mxu0 0
  %719 = vmatpush1.bf16.msra.mxu0 %v472
  %720 = vmatprep.subr.bf16.mxu0 0
  %721 = vmatpush2.bf16.msra.mxu0 0
  %722 = vmatprep.subr.bf16.mxu0 0
  %723 = vmatpush2.bf16.msra.mxu0 0
  %724 = vmatprep.subr.bf16.mxu0 0
  %725 = vmatpush2.bf16.msra.mxu0 0
  %726 = vmatprep.subr.bf16.mxu0 0
  %727 = vmatpush2.bf16.msra.mxu0 0
  %728 = vmatprep.subr.bf16.mxu0 0
  %729 = vmatpush2.bf16.msra.mxu0 0
  %730 = vmatprep.subr.bf16.mxu0 0
  %731 = vmatpush2.bf16.msra.mxu0 0
  %732 = vmatprep.subr.bf16.mxu0 0
  %733 = vmatpush2.bf16.msra.mxu0 0
  %734 = vmatprep.subr.bf16.mxu0 0
  %735 = vmatpush2.bf16.msra.mxu0 0
  %736 = vmatprep.mubr.bf16.mxu0 0
  %737 = vmatmul.mubr.bf16.gmra.mxu0 %v702
  %v738 = vpop.f32.mrf.mxu0
  %v739 = vadd.f32 0.0, %v738
  %v740 = vpop.f32.mrf.mxu0
  %v741 = vpop.f32.mrf.mxu0
  %v742 = vpop.f32.mrf.mxu0
  %743 = vdwg.mxu0
  %v744 = vadd.f32 %v696, %v739
  %v745 = vxor.u32 %v744, 2147483648
  %v746 = vmul.f32 %v745, 1.442695
  %v747 = vpow.pop %v746
  %v748 = vadd.f32 %v747, 1.0
  %v749 = vrcp.pop %v748
  %v750 = vmul.f32 1.0, %v749
  %v751 = vtanh.pop %v744
  %v752 = vmul.f32 %v750, %v687
  %754 = vrot.lane.b32.xlu0 %v751, 64
  %v755 = vpop.permute.xlu0 %754
  %v757 = vmul.f32 %v750, %v755
  %759 = vrot.lane.b32.xlu0 %v757, 32
  %v760 = vpop.permute.xlu0 %759
  %v762 = vadd.f32 %v752, %v760
  %v763 = vtanh.pop %v762
  %765 = vrot.lane.b32.xlu0 %v763, 64
  %v766 = vpop.permute.xlu0 %765
  %v768 = vmul.f32 %v750, %v766
  %v769 = vsel %vm456, %v695, %v694
  %v770 = vpack.c.bf16 %v768, %v768
  %772 = vrot.lane.b32.xlu0 %v770, 32
  %v773 = vpop.permute.xlu0 %772
  %v775 = vsel %vm68, %v773, 0
  %777 = vmatprep.subr.bf16.mxu0 0
  %778 = vmatpush1.bf16.msra.mxu0 0
  %779 = vmatprep.subr.bf16.mxu0 0
  %780 = vmatpush1.bf16.msra.mxu0 0
  %781 = vmatprep.subr.bf16.mxu0 0
  %782 = vmatpush1.bf16.msra.mxu0 0
  %783 = vmatprep.subr.bf16.mxu0 0
  %784 = vmatpush1.bf16.msra.mxu0 0
  %785 = vmatprep.subr.bf16.mxu0 0
  %786 = vmatpush1.bf16.msra.mxu0 0
  %787 = vmatprep.subr.bf16.mxu0 0
  %788 = vmatpush1.bf16.msra.mxu0 0
  %789 = vmatprep.subr.bf16.mxu0 0
  %790 = vmatpush1.bf16.msra.mxu0 %v473
  %791 = vmatprep.subr.bf16.mxu0 0
  %792 = vmatpush1.bf16.msra.mxu0 %v472
  %793 = vmatprep.subr.bf16.mxu0 0
  %794 = vmatpush2.bf16.msra.mxu0 0
  %795 = vmatprep.subr.bf16.mxu0 0
  %796 = vmatpush2.bf16.msra.mxu0 0
  %797 = vmatprep.subr.bf16.mxu0 0
  %798 = vmatpush2.bf16.msra.mxu0 0
  %799 = vmatprep.subr.bf16.mxu0 0
  %800 = vmatpush2.bf16.msra.mxu0 0
  %801 = vmatprep.subr.bf16.mxu0 0
  %802 = vmatpush2.bf16.msra.mxu0 0
  %803 = vmatprep.subr.bf16.mxu0 0
  %804 = vmatpush2.bf16.msra.mxu0 0
  %805 = vmatprep.subr.bf16.mxu0 0
  %806 = vmatpush2.bf16.msra.mxu0 0
  %807 = vmatprep.subr.bf16.mxu0 0
  %808 = vmatpush2.bf16.msra.mxu0 0
  %809 = vmatprep.mubr.bf16.mxu0 0
  %810 = vmatmul.mubr.bf16.gmra.mxu0 %v775
  %v811 = vpop.f32.mrf.mxu0
  %v812 = vadd.f32 0.0, %v811
  %v813 = vpop.f32.mrf.mxu0
  %v814 = vpop.f32.mrf.mxu0
  %v815 = vpop.f32.mrf.mxu0
  %816 = vdwg.mxu0
  %v817 = vadd.f32 %v769, %v812
  %v818 = vxor.u32 %v817, 2147483648
  %v819 = vmul.f32 %v818, 1.442695
  %v820 = vpow.pop %v819
  %v821 = vadd.f32 %v820, 1.0
  %v822 = vrcp.pop %v821
  %v823 = vmul.f32 1.0, %v822
  %v824 = vtanh.pop %v817
  %v825 = vmul.f32 %v823, %v762
  %827 = vrot.lane.b32.xlu0 %v824, 64
  %v828 = vpop.permute.xlu0 %827
  %v830 = vmul.f32 %v823, %v828
  %832 = vrot.lane.b32.xlu0 %v830, 32
  %v833 = vpop.permute.xlu0 %832
  %v835 = vadd.f32 %v825, %v833
  %v836 = vtanh.pop %v835
  %838 = vrot.lane.b32.xlu0 %v836, 64
  %v839 = vpop.permute.xlu0 %838
  %v841 = vmul.f32 %v823, %v839
  %v842 = vsel %vm456, %v620, %v619
  %v843 = vpack.c.bf16 %v841, %v841
  %845 = vrot.lane.b32.xlu0 %v843, 32
  %v846 = vpop.permute.xlu0 %845
  %v848 = vsel %vm68, %v846, 0
  %850 = vmatprep.subr.bf16.mxu0 0
  %851 = vmatpush1.bf16.msra.mxu0 0
  %852 = vmatprep.subr.bf16.mxu0 0
  %853 = vmatpush1.bf16.msra.mxu0 0
  %854 = vmatprep.subr.bf16.mxu0 0
  %855 = vmatpush1.bf16.msra.mxu0 0
  %856 = vmatprep.subr.bf16.mxu0 0
  %857 = vmatpush1.bf16.msra.mxu0 0
  %858 = vmatprep.subr.bf16.mxu0 0
  %859 = vmatpush1.bf16.msra.mxu0 0
  %860 = vmatprep.subr.bf16.mxu0 0
  %861 = vmatpush1.bf16.msra.mxu0 0
  %862 = vmatprep.subr.bf16.mxu0 0
  %863 = vmatpush1.bf16.msra.mxu0 %v473
  %864 = vmatprep.subr.bf16.mxu0 0
  %865 = vmatpush1.bf16.msra.mxu0 %v472
  %866 = vmatprep.subr.bf16.mxu0 0
  %867 = vmatpush2.bf16.msra.mxu0 0
  %868 = vmatprep.subr.bf16.mxu0 0
  %869 = vmatpush2.bf16.msra.mxu0 0
  %870 = vmatprep.subr.bf16.mxu0 0
  %871 = vmatpush2.bf16.msra.mxu0 0
  %872 = vmatprep.subr.bf16.mxu0 0
  %873 = vmatpush2.bf16.msra.mxu0 0
  %874 = vmatprep.subr.bf16.mxu0 0
  %875 = vmatpush2.bf16.msra.mxu0 0
  %876 = vmatprep.subr.bf16.mxu0 0
  %877 = vmatpush2.bf16.msra.mxu0 0
  %878 = vmatprep.subr.bf16.mxu0 0
  %879 = vmatpush2.bf16.msra.mxu0 0
  %880 = vmatprep.subr.bf16.mxu0 0
  %881 = vmatpush2.bf16.msra.mxu0 0
  %882 = vmatprep.mubr.bf16.mxu0 0
  %883 = vmatmul.mubr.bf16.gmra.mxu0 %v848
  %v884 = vpop.f32.mrf.mxu0
  %v885 = vadd.f32 0.0, %v884
  %v886 = vpop.f32.mrf.mxu0
  %v887 = vpop.f32.mrf.mxu0
  %v888 = vpop.f32.mrf.mxu0
  %889 = vdwg.mxu0
  %v890 = vadd.f32 %v842, %v885
  %v891 = vxor.u32 %v890, 2147483648
  %v892 = vmul.f32 %v891, 1.442695
  %v893 = vpow.pop %v892
  %v894 = vadd.f32 %v893, 1.0
  %v895 = vrcp.pop %v894
  %v896 = vmul.f32 1.0, %v895
  %v897 = vtanh.pop %v890
  %v898 = vmul.f32 %v896, %v835
  %900 = vrot.lane.b32.xlu0 %v897, 64
  %v901 = vpop.permute.xlu0 %900
  %v903 = vmul.f32 %v896, %v901
  %905 = vrot.lane.b32.xlu0 %v903, 32
  %v906 = vpop.permute.xlu0 %905
  %v908 = vadd.f32 %v898, %v906
  %v909 = vtanh.pop %v908
  %911 = vrot.lane.b32.xlu0 %v909, 64
  %v912 = vpop.permute.xlu0 %911
  %v914 = vmul.f32 %v896, %v912
  %v915 = vsel %vm456, %v545, %v544
  %v916 = vpack.c.bf16 %v914, %v914
  %918 = vrot.lane.b32.xlu0 %v916, 32
  %v919 = vpop.permute.xlu0 %918
  %v921 = vsel %vm68, %v919, 0
  %923 = vmatprep.subr.bf16.mxu0 0
  %924 = vmatpush1.bf16.msra.mxu0 0
  %925 = vmatprep.subr.bf16.mxu0 0
  %926 = vmatpush1.bf16.msra.mxu0 0
  %927 = vmatprep.subr.bf16.mxu0 0
  %928 = vmatpush1.bf16.msra.mxu0 0
  %929 = vmatprep.subr.bf16.mxu0 0
  %930 = vmatpush1.bf16.msra.mxu0 0
  %931 = vmatprep.subr.bf16.mxu0 0
  %932 = vmatpush1.bf16.msra.mxu0 0
  %933 = vmatprep.subr.bf16.mxu0 0
  %934 = vmatpush1.bf16.msra.mxu0 0
  %935 = vmatprep.subr.bf16.mxu0 0
  %936 = vmatpush1.bf16.msra.mxu0 %v473
  %937 = vmatprep.subr.bf16.mxu0 0
  %938 = vmatpush1.bf16.msra.mxu0 %v472
  %939 = vmatprep.subr.bf16.mxu0 0
  %940 = vmatpush2.bf16.msra.mxu0 0
  %941 = vmatprep.subr.bf16.mxu0 0
  %942 = vmatpush2.bf16.msra.mxu0 0
  %943 = vmatprep.subr.bf16.mxu0 0
  %944 = vmatpush2.bf16.msra.mxu0 0
  %945 = vmatprep.subr.bf16.mxu0 0
  %946 = vmatpush2.bf16.msra.mxu0 0
  %947 = vmatprep.subr.bf16.mxu0 0
  %948 = vmatpush2.bf16.msra.mxu0 0
  %949 = vmatprep.subr.bf16.mxu0 0
  %950 = vmatpush2.bf16.msra.mxu0 0
  %951 = vmatprep.subr.bf16.mxu0 0
  %952 = vmatpush2.bf16.msra.mxu0 0
  %953 = vmatprep.subr.bf16.mxu0 0
  %954 = vmatpush2.bf16.msra.mxu0 0
  %955 = vmatprep.mubr.bf16.mxu0 0
  %956 = vmatmul.mubr.bf16.gmra.mxu0 %v921
  %v957 = vpop.f32.mrf.mxu0
  %v958 = vadd.f32 0.0, %v957
  %v959 = vpop.f32.mrf.mxu0
  %v960 = vpop.f32.mrf.mxu0
  %v961 = vpop.f32.mrf.mxu0
  %962 = vdwg.mxu0
  %v963 = vadd.f32 %v915, %v958
  %v964 = vxor.u32 %v963, 2147483648
  %v965 = vmul.f32 %v964, 1.442695
  %v966 = vpow.pop %v965
  %v967 = vadd.f32 %v966, 1.0
  %v968 = vrcp.pop %v967
  %v969 = vmul.f32 1.0, %v968
  %v970 = vtanh.pop %v963
  %v971 = vmul.f32 %v969, %v908
  %973 = vrot.lane.b32.xlu0 %v970, 64
  %v974 = vpop.permute.xlu0 %973
  %v976 = vmul.f32 %v969, %v974
  %978 = vrot.lane.b32.xlu0 %v976, 32
  %v979 = vpop.permute.xlu0 %978
  %v981 = vadd.f32 %v971, %v979
  %v982 = vtanh.pop %v981
  %984 = vrot.lane.b32.xlu0 %v982, 64
  %v985 = vpop.permute.xlu0 %984
  %v987 = vmul.f32 %v969, %v985
  %v988 = vsel %vm456, %v462, %v461
  %v989 = vpack.c.bf16 %v987, %v987
  %991 = vrot.lane.b32.xlu0 %v989, 32
  %v992 = vpop.permute.xlu0 %991
  %v994 = vsel %vm68, %v992, 0
  %996 = vmatprep.subr.bf16.mxu0 0
  %997 = vmatpush1.bf16.msra.mxu0 0
  %998 = vmatprep.subr.bf16.mxu0 0
  %999 = vmatpush1.bf16.msra.mxu0 0
  %1000 = vmatprep.subr.bf16.mxu0 0
  %1001 = vmatpush1.bf16.msra.mxu0 0
  %1002 = vmatprep.subr.bf16.mxu0 0
  %1003 = vmatpush1.bf16.msra.mxu0 0
  %1004 = vmatprep.subr.bf16.mxu0 0
  %1005 = vmatpush1.bf16.msra.mxu0 0
  %1006 = vmatprep.subr.bf16.mxu0 0
  %1007 = vmatpush1.bf16.msra.mxu0 0
  %1008 = vmatprep.subr.bf16.mxu0 0
  %1009 = vmatpush1.bf16.msra.mxu0 %v473
  %1010 = vmatprep.subr.bf16.mxu0 0
  %1011 = vmatpush1.bf16.msra.mxu0 %v472
  %1012 = vmatprep.subr.bf16.mxu0 0
  %1013 = vmatpush2.bf16.msra.mxu0 0
  %1014 = vmatprep.subr.bf16.mxu0 0
  %1015 = vmatpush2.bf16.msra.mxu0 0
  %1016 = vmatprep.subr.bf16.mxu0 0
  %1017 = vmatpush2.bf16.msra.mxu0 0
  %1018 = vmatprep.subr.bf16.mxu0 0
  %1019 = vmatpush2.bf16.msra.mxu0 0
  %1020 = vmatprep.subr.bf16.mxu0 0
  %1021 = vmatpush2.bf16.msra.mxu0 0
  %1022 = vmatprep.subr.bf16.mxu0 0
  %1023 = vmatpush2.bf16.msra.mxu0 0
  %1024 = vmatprep.subr.bf16.mxu0 0
  %1025 = vmatpush2.bf16.msra.mxu0 0
  %1026 = vmatprep.subr.bf16.mxu0 0
  %1027 = vmatpush2.bf16.msra.mxu0 0
  %1028 = vmatprep.mubr.bf16.mxu0 0
  %1029 = vmatmul.mubr.bf16.gmra.mxu0 %v994
  %v1030 = vpop.f32.mrf.mxu0
  %v1031 = vadd.f32 0.0, %v1030
  %v1032 = vpop.f32.mrf.mxu0
  %v1033 = vpop.f32.mrf.mxu0
  %v1034 = vpop.f32.mrf.mxu0
  %1035 = vdwg.mxu0
  %v1036 = vadd.f32 %v988, %v1031
  %v1037 = vxor.u32 %v1036, 2147483648
  %v1038 = vmul.f32 %v1037, 1.442695
  %v1039 = vpow.pop %v1038
  %v1040 = vadd.f32 %v1039, 1.0
  %v1041 = vrcp.pop %v1040
  %v1042 = vmul.f32 1.0, %v1041
  %v1043 = vtanh.pop %v1036
  %v1044 = vmul.f32 %v1042, %v981
  %1046 = vrot.lane.b32.xlu0 %v1043, 64
  %v1047 = vpop.permute.xlu0 %1046
  %v1049 = vmul.f32 %v1042, %v1047
  %1051 = vrot.lane.b32.xlu0 %v1049, 32
  %v1052 = vpop.permute.xlu0 %1051
  %v1054 = vadd.f32 %v1044, %v1052
  %v1055 = vtanh.pop %v1054
  %1057 = vrot.lane.b32.xlu0 %v1055, 64
  %v1058 = vpop.permute.xlu0 %1057
  %v1060 = vmul.f32 %v1042, %v1058
  %v1061 = vld [vmem:[%s4] sm:$0xf]
  %v1062 = vld [vmem:[%s4 + $0x4] sm:$0xf]
  %v1063 = vld [vmem:[%s4 + $0x8] sm:$0xf]
  %v1064 = vld [vmem:[%s4 + $0xc] sm:$0xf]
  %v1065 = vld [vmem:[%s5] sm:$0xf]
  %v1066 = vld [vmem:[%s5 + $0x4] sm:$0xf]
  %v1067 = vld [vmem:[%s5 + $0x8] sm:$0xf]
  %v1068 = vld [vmem:[%s5 + $0xc] sm:$0xf]
  %v1069 = vld [vmem:[%s7] sm:$0x1]
  %v1070 = vpack.c.bf16 %v1060, %v1060
  %1072 = vrot.lane.b32.xlu0 %v1070, 32
  %v1073 = vpop.permute.xlu0 %1072
  %v1078 = vunpack.c.l.b16 %v1065
  %v1079 = vunpack.c.l.b16 %v1066
  %v1080 = vunpack.c.l.b16 %v1067
  %v1081 = vunpack.c.l.b16 %v1068
  %v1082 = vpack.c.b16 %v1079, %v1078
  %v1083 = vpack.c.b16 %v1081, %v1080
  %v1087 = vsel %vm68, %v1073, 0
  %1089 = vmatprep.subr.bf16.mxu0 0
  %1090 = vmatpush1.bf16.msra.mxu0 0
  %1091 = vmatprep.subr.bf16.mxu0 0
  %1092 = vmatpush1.bf16.msra.mxu0 0
  %1093 = vmatprep.subr.bf16.mxu0 0
  %1094 = vmatpush1.bf16.msra.mxu0 0
  %1095 = vmatprep.subr.bf16.mxu0 0
  %1096 = vmatpush1.bf16.msra.mxu0 0
  %1097 = vmatprep.subr.bf16.mxu0 0
  %1098 = vmatpush1.bf16.msra.mxu0 0
  %1099 = vmatprep.subr.bf16.mxu0 0
  %1100 = vmatpush1.bf16.msra.mxu0 0
  %1101 = vmatprep.subr.bf16.mxu0 0
  %1102 = vmatpush1.bf16.msra.mxu0 %v1083
  %1103 = vmatprep.subr.bf16.mxu0 0
  %1104 = vmatpush1.bf16.msra.mxu0 %v1082
  %1105 = vmatprep.subr.bf16.mxu0 0
  %1106 = vmatpush2.bf16.msra.mxu0 0
  %1107 = vmatprep.subr.bf16.mxu0 0
  %1108 = vmatpush2.bf16.msra.mxu0 0
  %1109 = vmatprep.subr.bf16.mxu0 0
  %1110 = vmatpush2.bf16.msra.mxu0 0
  %1111 = vmatprep.subr.bf16.mxu0 0
  %1112 = vmatpush2.bf16.msra.mxu0 0
  %1113 = vmatprep.subr.bf16.mxu0 0
  %1114 = vmatpush2.bf16.msra.mxu0 0
  %1115 = vmatprep.subr.bf16.mxu0 0
  %1116 = vmatpush2.bf16.msra.mxu0 0
  %1117 = vmatprep.subr.bf16.mxu0 0
  %1118 = vmatpush2.bf16.msra.mxu0 0
  %1119 = vmatprep.subr.bf16.mxu0 0
  %1120 = vmatpush2.bf16.msra.mxu0 0
  %1121 = vmatprep.mubr.bf16.mxu0 0
  %1122 = vmatmul.mubr.bf16.gmra.mxu0 %v1087
  %v1123 = vpop.f32.mrf.mxu0
  %v1124 = vadd.f32 0.0, %v1123
  %v1125 = vpop.f32.mrf.mxu0
  %v1126 = vpop.f32.mrf.mxu0
  %v1127 = vpop.f32.mrf.mxu0
  %1128 = vdwg.mxu0
  %v1133 = vunpack.c.l.b16 %v1061
  %v1134 = vunpack.c.l.b16 %v1062
  %v1135 = vunpack.c.l.b16 %v1063
  %v1136 = vunpack.c.l.b16 %v1064
  %v1137 = vpack.c.b16 %v1134, %v1133
  %v1138 = vpack.c.b16 %v1136, %v1135
  %1141 = vmatprep.subr.bf16.mxu0 0
  %1142 = vmatpush1.bf16.msra.mxu0 0
  %1143 = vmatprep.subr.bf16.mxu0 0
  %1144 = vmatpush1.bf16.msra.mxu0 0
  %1145 = vmatprep.subr.bf16.mxu0 0
  %1146 = vmatpush1.bf16.msra.mxu0 0
  %1147 = vmatprep.subr.bf16.mxu0 0
  %1148 = vmatpush1.bf16.msra.mxu0 0
  %1149 = vmatprep.subr.bf16.mxu0 0
  %1150 = vmatpush1.bf16.msra.mxu0 0
  %1151 = vmatprep.subr.bf16.mxu0 0
  %1152 = vmatpush1.bf16.msra.mxu0 0
  %1153 = vmatprep.subr.bf16.mxu0 0
  %1154 = vmatpush1.bf16.msra.mxu0 %v1138
  %1155 = vmatprep.subr.bf16.mxu0 0
  %1156 = vmatpush1.bf16.msra.mxu0 %v1137
  %1157 = vmatprep.subr.bf16.mxu0 0
  %1158 = vmatpush2.bf16.msra.mxu0 0
  %1159 = vmatprep.subr.bf16.mxu0 0
  %1160 = vmatpush2.bf16.msra.mxu0 0
  %1161 = vmatprep.subr.bf16.mxu0 0
  %1162 = vmatpush2.bf16.msra.mxu0 0
  %1163 = vmatprep.subr.bf16.mxu0 0
  %1164 = vmatpush2.bf16.msra.mxu0 0
  %1165 = vmatprep.subr.bf16.mxu0 0
  %1166 = vmatpush2.bf16.msra.mxu0 0
  %1167 = vmatprep.subr.bf16.mxu0 0
  %1168 = vmatpush2.bf16.msra.mxu0 0
  %1169 = vmatprep.subr.bf16.mxu0 0
  %1170 = vmatpush2.bf16.msra.mxu0 0
  %1171 = vmatprep.subr.bf16.mxu0 0
  %1172 = vmatpush2.bf16.msra.mxu0 0
  %1173 = vmatprep.mubr.bf16.mxu0 0
  %1174 = vmatmul.mubr.bf16.gmra.mxu0 %v552
  %v1175 = vpop.f32.mrf.mxu0
  %v1176 = vadd.f32 %v1124, %v1175
  %v1177 = vpop.f32.mrf.mxu0
  %v1178 = vpop.f32.mrf.mxu0
  %v1179 = vpop.f32.mrf.mxu0
  %1180 = vdwg.mxu0
  %v1182 = vlaneseq
  %v1183 = vshrl.u32 %v1182, 7
  %v1184 = vsub.s32 0, %v1183
  %v1185 = vrot.slane %v1069, %v1184
  %v1187 = vadd.f32 %v1176, %v1185
  %1188 = vst [vmem:[#allocation3] sm:$0x3] %v1187
  %1189 = vmatprep.subr.bf16.mxu0 0
  %1190 = vmatpush1.bf16.msra.mxu0 0
  %1191 = vmatprep.subr.bf16.mxu0 0
  %1192 = vmatpush1.bf16.msra.mxu0 0
  %1193 = vmatprep.subr.bf16.mxu0 0
  %1194 = vmatpush1.bf16.msra.mxu0 0
  %1195 = vmatprep.subr.bf16.mxu0 0
  %1196 = vmatpush1.bf16.msra.mxu0 0
  %1197 = vmatprep.subr.bf16.mxu0 0
  %1198 = vmatpush1.bf16.msra.mxu0 0
  %1199 = vmatprep.subr.bf16.mxu0 0
  %1200 = vmatpush1.bf16.msra.mxu0 0
  %1201 = vmatprep.subr.bf16.mxu0 0
  %1202 = vmatpush1.bf16.msra.mxu0 %v1083
  %1203 = vmatprep.subr.bf16.mxu0 0
  %1204 = vmatpush1.bf16.msra.mxu0 %v1082
  %1205 = vmatprep.subr.bf16.mxu0 0
  %1206 = vmatpush2.bf16.msra.mxu0 0
  %1207 = vmatprep.subr.bf16.mxu0 0
  %1208 = vmatpush2.bf16.msra.mxu0 0
  %1209 = vmatprep.subr.bf16.mxu0 0
  %1210 = vmatpush2.bf16.msra.mxu0 0
  %1211 = vmatprep.subr.bf16.mxu0 0
  %1212 = vmatpush2.bf16.msra.mxu0 0
  %1213 = vmatprep.subr.bf16.mxu0 0
  %1214 = vmatpush2.bf16.msra.mxu0 0
  %1215 = vmatprep.subr.bf16.mxu0 0
  %1216 = vmatpush2.bf16.msra.mxu0 0
  %1217 = vmatprep.subr.bf16.mxu0 0
  %1218 = vmatpush2.bf16.msra.mxu0 0
  %1219 = vmatprep.subr.bf16.mxu0 0
  %1220 = vmatpush2.bf16.msra.mxu0 0
  %1221 = vmatprep.mubr.bf16.mxu0 0
  %1222 = vmatmul.mubr.bf16.gmra.mxu0 %v994
  %v1223 = vpop.f32.mrf.mxu0
  %v1224 = vadd.f32 0.0, %v1223
  %v1225 = vpop.f32.mrf.mxu0
  %v1226 = vpop.f32.mrf.mxu0
  %v1227 = vpop.f32.mrf.mxu0
  %1228 = vdwg.mxu0
  %1229 = vmatprep.subr.bf16.mxu0 0
  %1230 = vmatpush1.bf16.msra.mxu0 0
  %1231 = vmatprep.subr.bf16.mxu0 0
  %1232 = vmatpush1.bf16.msra.mxu0 0
  %1233 = vmatprep.subr.bf16.mxu0 0
  %1234 = vmatpush1.bf16.msra.mxu0 0
  %1235 = vmatprep.subr.bf16.mxu0 0
  %1236 = vmatpush1.bf16.msra.mxu0 0
  %1237 = vmatprep.subr.bf16.mxu0 0
  %1238 = vmatpush1.bf16.msra.mxu0 0
  %1239 = vmatprep.subr.bf16.mxu0 0
  %1240 = vmatpush1.bf16.msra.mxu0 0
  %1241 = vmatprep.subr.bf16.mxu0 0
  %1242 = vmatpush1.bf16.msra.mxu0 %v1138
  %1243 = vmatprep.subr.bf16.mxu0 0
  %1244 = vmatpush1.bf16.msra.mxu0 %v1137
  %1245 = vmatprep.subr.bf16.mxu0 0
  %1246 = vmatpush2.bf16.msra.mxu0 0
  %1247 = vmatprep.subr.bf16.mxu0 0
  %1248 = vmatpush2.bf16.msra.mxu0 0
  %1249 = vmatprep.subr.bf16.mxu0 0
  %1250 = vmatpush2.bf16.msra.mxu0 0
  %1251 = vmatprep.subr.bf16.mxu0 0
  %1252 = vmatpush2.bf16.msra.mxu0 0
  %1253 = vmatprep.subr.bf16.mxu0 0
  %1254 = vmatpush2.bf16.msra.mxu0 0
  %1255 = vmatprep.subr.bf16.mxu0 0
  %1256 = vmatpush2.bf16.msra.mxu0 0
  %1257 = vmatprep.subr.bf16.mxu0 0
  %1258 = vmatpush2.bf16.msra.mxu0 0
  %1259 = vmatprep.subr.bf16.mxu0 0
  %1260 = vmatpush2.bf16.msra.mxu0 0
  %1261 = vmatprep.mubr.bf16.mxu0 0
  %1262 = vmatmul.mubr.bf16.gmra.mxu0 %v627
  %v1263 = vpop.f32.mrf.mxu0
  %v1264 = vadd.f32 %v1224, %v1263
  %v1265 = vpop.f32.mrf.mxu0
  %v1266 = vpop.f32.mrf.mxu0
  %v1267 = vpop.f32.mrf.mxu0
  %1268 = vdwg.mxu0
  %v1269 = vadd.f32 %v1264, %v1185
  %s1270 = scalar_lea.vmem [#allocation3], 2
  %1271 = vst [vmem:[%s1270] sm:$0x3] %v1269
  %1272 = vmatprep.subr.bf16.mxu0 0
  %1273 = vmatpush1.bf16.msra.mxu0 0
  %1274 = vmatprep.subr.bf16.mxu0 0
  %1275 = vmatpush1.bf16.msra.mxu0 0
  %1276 = vmatprep.subr.bf16.mxu0 0
  %1277 = vmatpush1.bf16.msra.mxu0 0
  %1278 = vmatprep.subr.bf16.mxu0 0
  %1279 = vmatpush1.bf16.msra.mxu0 0
  %1280 = vmatprep.subr.bf16.mxu0 0
  %1281 = vmatpush1.bf16.msra.mxu0 0
  %1282 = vmatprep.subr.bf16.mxu0 0
  %1283 = vmatpush1.bf16.msra.mxu0 0
  %1284 = vmatprep.subr.bf16.mxu0 0
  %1285 = vmatpush1.bf16.msra.mxu0 %v1083
  %1286 = vmatprep.subr.bf16.mxu0 0
  %1287 = vmatpush1.bf16.msra.mxu0 %v1082
  %1288 = vmatprep.subr.bf16.mxu0 0
  %1289 = vmatpush2.bf16.msra.mxu0 0
  %1290 = vmatprep.subr.bf16.mxu0 0
  %1291 = vmatpush2.bf16.msra.mxu0 0
  %1292 = vmatprep.subr.bf16.mxu0 0
  %1293 = vmatpush2.bf16.msra.mxu0 0
  %1294 = vmatprep.subr.bf16.mxu0 0
  %1295 = vmatpush2.bf16.msra.mxu0 0
  %1296 = vmatprep.subr.bf16.mxu0 0
  %1297 = vmatpush2.bf16.msra.mxu0 0
  %1298 = vmatprep.subr.bf16.mxu0 0
  %1299 = vmatpush2.bf16.msra.mxu0 0
  %1300 = vmatprep.subr.bf16.mxu0 0
  %1301 = vmatpush2.bf16.msra.mxu0 0
  %1302 = vmatprep.subr.bf16.mxu0 0
  %1303 = vmatpush2.bf16.msra.mxu0 0
  %1304 = vmatprep.mubr.bf16.mxu0 0
  %1305 = vmatmul.mubr.bf16.gmra.mxu0 %v921
  %v1306 = vpop.f32.mrf.mxu0
  %v1307 = vadd.f32 0.0, %v1306
  %v1308 = vpop.f32.mrf.mxu0
  %v1309 = vpop.f32.mrf.mxu0
  %v1310 = vpop.f32.mrf.mxu0
  %1311 = vdwg.mxu0
  %1312 = vmatprep.subr.bf16.mxu0 0
  %1313 = vmatpush1.bf16.msra.mxu0 0
  %1314 = vmatprep.subr.bf16.mxu0 0
  %1315 = vmatpush1.bf16.msra.mxu0 0
  %1316 = vmatprep.subr.bf16.mxu0 0
  %1317 = vmatpush1.bf16.msra.mxu0 0
  %1318 = vmatprep.subr.bf16.mxu0 0
  %1319 = vmatpush1.bf16.msra.mxu0 0
  %1320 = vmatprep.subr.bf16.mxu0 0
  %1321 = vmatpush1.bf16.msra.mxu0 0
  %1322 = vmatprep.subr.bf16.mxu0 0
  %1323 = vmatpush1.bf16.msra.mxu0 0
  %1324 = vmatprep.subr.bf16.mxu0 0
  %1325 = vmatpush1.bf16.msra.mxu0 %v1138
  %1326 = vmatprep.subr.bf16.mxu0 0
  %1327 = vmatpush1.bf16.msra.mxu0 %v1137
  %1328 = vmatprep.subr.bf16.mxu0 0
  %1329 = vmatpush2.bf16.msra.mxu0 0
  %1330 = vmatprep.subr.bf16.mxu0 0
  %1331 = vmatpush2.bf16.msra.mxu0 0
  %1332 = vmatprep.subr.bf16.mxu0 0
  %1333 = vmatpush2.bf16.msra.mxu0 0
  %1334 = vmatprep.subr.bf16.mxu0 0
  %1335 = vmatpush2.bf16.msra.mxu0 0
  %1336 = vmatprep.subr.bf16.mxu0 0
  %1337 = vmatpush2.bf16.msra.mxu0 0
  %1338 = vmatprep.subr.bf16.mxu0 0
  %1339 = vmatpush2.bf16.msra.mxu0 0
  %1340 = vmatprep.subr.bf16.mxu0 0
  %1341 = vmatpush2.bf16.msra.mxu0 0
  %1342 = vmatprep.subr.bf16.mxu0 0
  %1343 = vmatpush2.bf16.msra.mxu0 0
  %1344 = vmatprep.mubr.bf16.mxu0 0
  %1345 = vmatmul.mubr.bf16.gmra.mxu0 %v702
  %v1346 = vpop.f32.mrf.mxu0
  %v1347 = vadd.f32 %v1307, %v1346
  %v1348 = vpop.f32.mrf.mxu0
  %v1349 = vpop.f32.mrf.mxu0
  %v1350 = vpop.f32.mrf.mxu0
  %1351 = vdwg.mxu0
  %v1352 = vadd.f32 %v1347, %v1185
  %s1353 = scalar_lea.vmem [#allocation3], 4
  %1354 = vst [vmem:[%s1353] sm:$0x3] %v1352
  %1355 = vmatprep.subr.bf16.mxu0 0
  %1356 = vmatpush1.bf16.msra.mxu0 0
  %1357 = vmatprep.subr.bf16.mxu0 0
  %1358 = vmatpush1.bf16.msra.mxu0 0
  %1359 = vmatprep.subr.bf16.mxu0 0
  %1360 = vmatpush1.bf16.msra.mxu0 0
  %1361 = vmatprep.subr.bf16.mxu0 0
  %1362 = vmatpush1.bf16.msra.mxu0 0
  %1363 = vmatprep.subr.bf16.mxu0 0
  %1364 = vmatpush1.bf16.msra.mxu0 0
  %1365 = vmatprep.subr.bf16.mxu0 0
  %1366 = vmatpush1.bf16.msra.mxu0 0
  %1367 = vmatprep.subr.bf16.mxu0 0
  %1368 = vmatpush1.bf16.msra.mxu0 %v1083
  %1369 = vmatprep.subr.bf16.mxu0 0
  %1370 = vmatpush1.bf16.msra.mxu0 %v1082
  %1371 = vmatprep.subr.bf16.mxu0 0
  %1372 = vmatpush2.bf16.msra.mxu0 0
  %1373 = vmatprep.subr.bf16.mxu0 0
  %1374 = vmatpush2.bf16.msra.mxu0 0
  %1375 = vmatprep.subr.bf16.mxu0 0
  %1376 = vmatpush2.bf16.msra.mxu0 0
  %1377 = vmatprep.subr.bf16.mxu0 0
  %1378 = vmatpush2.bf16.msra.mxu0 0
  %1379 = vmatprep.subr.bf16.mxu0 0
  %1380 = vmatpush2.bf16.msra.mxu0 0
  %1381 = vmatprep.subr.bf16.mxu0 0
  %1382 = vmatpush2.bf16.msra.mxu0 0
  %1383 = vmatprep.subr.bf16.mxu0 0
  %1384 = vmatpush2.bf16.msra.mxu0 0
  %1385 = vmatprep.subr.bf16.mxu0 0
  %1386 = vmatpush2.bf16.msra.mxu0 0
  %1387 = vmatprep.mubr.bf16.mxu0 0
  %1388 = vmatmul.mubr.bf16.gmra.mxu0 %v848
  %v1389 = vpop.f32.mrf.mxu0
  %v1390 = vadd.f32 0.0, %v1389
  %v1391 = vpop.f32.mrf.mxu0
  %v1392 = vpop.f32.mrf.mxu0
  %v1393 = vpop.f32.mrf.mxu0
  %1394 = vdwg.mxu0
  %1395 = vmatprep.subr.bf16.mxu0 0
  %1396 = vmatpush1.bf16.msra.mxu0 0
  %1397 = vmatprep.subr.bf16.mxu0 0
  %1398 = vmatpush1.bf16.msra.mxu0 0
  %1399 = vmatprep.subr.bf16.mxu0 0
  %1400 = vmatpush1.bf16.msra.mxu0 0
  %1401 = vmatprep.subr.bf16.mxu0 0
  %1402 = vmatpush1.bf16.msra.mxu0 0
  %1403 = vmatprep.subr.bf16.mxu0 0
  %1404 = vmatpush1.bf16.msra.mxu0 0
  %1405 = vmatprep.subr.bf16.mxu0 0
  %1406 = vmatpush1.bf16.msra.mxu0 0
  %1407 = vmatprep.subr.bf16.mxu0 0
  %1408 = vmatpush1.bf16.msra.mxu0 %v1138
  %1409 = vmatprep.subr.bf16.mxu0 0
  %1410 = vmatpush1.bf16.msra.mxu0 %v1137
  %1411 = vmatprep.subr.bf16.mxu0 0
  %1412 = vmatpush2.bf16.msra.mxu0 0
  %1413 = vmatprep.subr.bf16.mxu0 0
  %1414 = vmatpush2.bf16.msra.mxu0 0
  %1415 = vmatprep.subr.bf16.mxu0 0
  %1416 = vmatpush2.bf16.msra.mxu0 0
  %1417 = vmatprep.subr.bf16.mxu0 0
  %1418 = vmatpush2.bf16.msra.mxu0 0
  %1419 = vmatprep.subr.bf16.mxu0 0
  %1420 = vmatpush2.bf16.msra.mxu0 0
  %1421 = vmatprep.subr.bf16.mxu0 0
  %1422 = vmatpush2.bf16.msra.mxu0 0
  %1423 = vmatprep.subr.bf16.mxu0 0
  %1424 = vmatpush2.bf16.msra.mxu0 0
  %1425 = vmatprep.subr.bf16.mxu0 0
  %1426 = vmatpush2.bf16.msra.mxu0 0
  %1427 = vmatprep.mubr.bf16.mxu0 0
  %1428 = vmatmul.mubr.bf16.gmra.mxu0 %v775
  %v1429 = vpop.f32.mrf.mxu0
  %v1430 = vadd.f32 %v1390, %v1429
  %v1431 = vpop.f32.mrf.mxu0
  %v1432 = vpop.f32.mrf.mxu0
  %v1433 = vpop.f32.mrf.mxu0
  %1434 = vdwg.mxu0
  %v1435 = vadd.f32 %v1430, %v1185
  %s1436 = scalar_lea.vmem [#allocation3], 6
  %1437 = vst [vmem:[%s1436] sm:$0x3] %v1435
  %1438 = vmatprep.subr.bf16.mxu0 0
  %1439 = vmatpush1.bf16.msra.mxu0 0
  %1440 = vmatprep.subr.bf16.mxu0 0
  %1441 = vmatpush1.bf16.msra.mxu0 0
  %1442 = vmatprep.subr.bf16.mxu0 0
  %1443 = vmatpush1.bf16.msra.mxu0 0
  %1444 = vmatprep.subr.bf16.mxu0 0
  %1445 = vmatpush1.bf16.msra.mxu0 0
  %1446 = vmatprep.subr.bf16.mxu0 0
  %1447 = vmatpush1.bf16.msra.mxu0 0
  %1448 = vmatprep.subr.bf16.mxu0 0
  %1449 = vmatpush1.bf16.msra.mxu0 0
  %1450 = vmatprep.subr.bf16.mxu0 0
  %1451 = vmatpush1.bf16.msra.mxu0 %v1083
  %1452 = vmatprep.subr.bf16.mxu0 0
  %1453 = vmatpush1.bf16.msra.mxu0 %v1082
  %1454 = vmatprep.subr.bf16.mxu0 0
  %1455 = vmatpush2.bf16.msra.mxu0 0
  %1456 = vmatprep.subr.bf16.mxu0 0
  %1457 = vmatpush2.bf16.msra.mxu0 0
  %1458 = vmatprep.subr.bf16.mxu0 0
  %1459 = vmatpush2.bf16.msra.mxu0 0
  %1460 = vmatprep.subr.bf16.mxu0 0
  %1461 = vmatpush2.bf16.msra.mxu0 0
  %1462 = vmatprep.subr.bf16.mxu0 0
  %1463 = vmatpush2.bf16.msra.mxu0 0
  %1464 = vmatprep.subr.bf16.mxu0 0
  %1465 = vmatpush2.bf16.msra.mxu0 0
  %1466 = vmatprep.subr.bf16.mxu0 0
  %1467 = vmatpush2.bf16.msra.mxu0 0
  %1468 = vmatprep.subr.bf16.mxu0 0
  %1469 = vmatpush2.bf16.msra.mxu0 0
  %1470 = vmatprep.mubr.bf16.mxu0 0
  %1471 = vmatmul.mubr.bf16.gmra.mxu0 %v775
  %v1472 = vpop.f32.mrf.mxu0
  %v1473 = vadd.f32 0.0, %v1472
  %v1474 = vpop.f32.mrf.mxu0
  %v1475 = vpop.f32.mrf.mxu0
  %v1476 = vpop.f32.mrf.mxu0
  %1477 = vdwg.mxu0
  %1478 = vmatprep.subr.bf16.mxu0 0
  %1479 = vmatpush1.bf16.msra.mxu0 0
  %1480 = vmatprep.subr.bf16.mxu0 0
  %1481 = vmatpush1.bf16.msra.mxu0 0
  %1482 = vmatprep.subr.bf16.mxu0 0
  %1483 = vmatpush1.bf16.msra.mxu0 0
  %1484 = vmatprep.subr.bf16.mxu0 0
  %1485 = vmatpush1.bf16.msra.mxu0 0
  %1486 = vmatprep.subr.bf16.mxu0 0
  %1487 = vmatpush1.bf16.msra.mxu0 0
  %1488 = vmatprep.subr.bf16.mxu0 0
  %1489 = vmatpush1.bf16.msra.mxu0 0
  %1490 = vmatprep.subr.bf16.mxu0 0
  %1491 = vmatpush1.bf16.msra.mxu0 %v1138
  %1492 = vmatprep.subr.bf16.mxu0 0
  %1493 = vmatpush1.bf16.msra.mxu0 %v1137
  %1494 = vmatprep.subr.bf16.mxu0 0
  %1495 = vmatpush2.bf16.msra.mxu0 0
  %1496 = vmatprep.subr.bf16.mxu0 0
  %1497 = vmatpush2.bf16.msra.mxu0 0
  %1498 = vmatprep.subr.bf16.mxu0 0
  %1499 = vmatpush2.bf16.msra.mxu0 0
  %1500 = vmatprep.subr.bf16.mxu0 0
  %1501 = vmatpush2.bf16.msra.mxu0 0
  %1502 = vmatprep.subr.bf16.mxu0 0
  %1503 = vmatpush2.bf16.msra.mxu0 0
  %1504 = vmatprep.subr.bf16.mxu0 0
  %1505 = vmatpush2.bf16.msra.mxu0 0
  %1506 = vmatprep.subr.bf16.mxu0 0
  %1507 = vmatpush2.bf16.msra.mxu0 0
  %1508 = vmatprep.subr.bf16.mxu0 0
  %1509 = vmatpush2.bf16.msra.mxu0 0
  %1510 = vmatprep.mubr.bf16.mxu0 0
  %1511 = vmatmul.mubr.bf16.gmra.mxu0 %v848
  %v1512 = vpop.f32.mrf.mxu0
  %v1513 = vadd.f32 %v1473, %v1512
  %v1514 = vpop.f32.mrf.mxu0
  %v1515 = vpop.f32.mrf.mxu0
  %v1516 = vpop.f32.mrf.mxu0
  %1517 = vdwg.mxu0
  %v1518 = vadd.f32 %v1513, %v1185
  %s1519 = scalar_lea.vmem [#allocation3], 8
  %1520 = vst [vmem:[%s1519] sm:$0x3] %v1518
  %1521 = vmatprep.subr.bf16.mxu0 0
  %1522 = vmatpush1.bf16.msra.mxu0 0
  %1523 = vmatprep.subr.bf16.mxu0 0
  %1524 = vmatpush1.bf16.msra.mxu0 0
  %1525 = vmatprep.subr.bf16.mxu0 0
  %1526 = vmatpush1.bf16.msra.mxu0 0
  %1527 = vmatprep.subr.bf16.mxu0 0
  %1528 = vmatpush1.bf16.msra.mxu0 0
  %1529 = vmatprep.subr.bf16.mxu0 0
  %1530 = vmatpush1.bf16.msra.mxu0 0
  %1531 = vmatprep.subr.bf16.mxu0 0
  %1532 = vmatpush1.bf16.msra.mxu0 0
  %1533 = vmatprep.subr.bf16.mxu0 0
  %1534 = vmatpush1.bf16.msra.mxu0 %v1083
  %1535 = vmatprep.subr.bf16.mxu0 0
  %1536 = vmatpush1.bf16.msra.mxu0 %v1082
  %1537 = vmatprep.subr.bf16.mxu0 0
  %1538 = vmatpush2.bf16.msra.mxu0 0
  %1539 = vmatprep.subr.bf16.mxu0 0
  %1540 = vmatpush2.bf16.msra.mxu0 0
  %1541 = vmatprep.subr.bf16.mxu0 0
  %1542 = vmatpush2.bf16.msra.mxu0 0
  %1543 = vmatprep.subr.bf16.mxu0 0
  %1544 = vmatpush2.bf16.msra.mxu0 0
  %1545 = vmatprep.subr.bf16.mxu0 0
  %1546 = vmatpush2.bf16.msra.mxu0 0
  %1547 = vmatprep.subr.bf16.mxu0 0
  %1548 = vmatpush2.bf16.msra.mxu0 0
  %1549 = vmatprep.subr.bf16.mxu0 0
  %1550 = vmatpush2.bf16.msra.mxu0 0
  %1551 = vmatprep.subr.bf16.mxu0 0
  %1552 = vmatpush2.bf16.msra.mxu0 0
  %1553 = vmatprep.mubr.bf16.mxu0 0
  %1554 = vmatmul.mubr.bf16.gmra.mxu0 %v702
  %v1555 = vpop.f32.mrf.mxu0
  %v1556 = vadd.f32 0.0, %v1555
  %v1557 = vpop.f32.mrf.mxu0
  %v1558 = vpop.f32.mrf.mxu0
  %v1559 = vpop.f32.mrf.mxu0
  %1560 = vdwg.mxu0
  %1561 = vmatprep.subr.bf16.mxu0 0
  %1562 = vmatpush1.bf16.msra.mxu0 0
  %1563 = vmatprep.subr.bf16.mxu0 0
  %1564 = vmatpush1.bf16.msra.mxu0 0
  %1565 = vmatprep.subr.bf16.mxu0 0
  %1566 = vmatpush1.bf16.msra.mxu0 0
  %1567 = vmatprep.subr.bf16.mxu0 0
  %1568 = vmatpush1.bf16.msra.mxu0 0
  %1569 = vmatprep.subr.bf16.mxu0 0
  %1570 = vmatpush1.bf16.msra.mxu0 0
  %1571 = vmatprep.subr.bf16.mxu0 0
  %1572 = vmatpush1.bf16.msra.mxu0 0
  %1573 = vmatprep.subr.bf16.mxu0 0
  %1574 = vmatpush1.bf16.msra.mxu0 %v1138
  %1575 = vmatprep.subr.bf16.mxu0 0
  %1576 = vmatpush1.bf16.msra.mxu0 %v1137
  %1577 = vmatprep.subr.bf16.mxu0 0
  %1578 = vmatpush2.bf16.msra.mxu0 0
  %1579 = vmatprep.subr.bf16.mxu0 0
  %1580 = vmatpush2.bf16.msra.mxu0 0
  %1581 = vmatprep.subr.bf16.mxu0 0
  %1582 = vmatpush2.bf16.msra.mxu0 0
  %1583 = vmatprep.subr.bf16.mxu0 0
  %1584 = vmatpush2.bf16.msra.mxu0 0
  %1585 = vmatprep.subr.bf16.mxu0 0
  %1586 = vmatpush2.bf16.msra.mxu0 0
  %1587 = vmatprep.subr.bf16.mxu0 0
  %1588 = vmatpush2.bf16.msra.mxu0 0
  %1589 = vmatprep.subr.bf16.mxu0 0
  %1590 = vmatpush2.bf16.msra.mxu0 0
  %1591 = vmatprep.subr.bf16.mxu0 0
  %1592 = vmatpush2.bf16.msra.mxu0 0
  %1593 = vmatprep.mubr.bf16.mxu0 0
  %1594 = vmatmul.mubr.bf16.gmra.mxu0 %v921
  %v1595 = vpop.f32.mrf.mxu0
  %v1596 = vadd.f32 %v1556, %v1595
  %v1597 = vpop.f32.mrf.mxu0
  %v1598 = vpop.f32.mrf.mxu0
  %v1599 = vpop.f32.mrf.mxu0
  %1600 = vdwg.mxu0
  %v1601 = vadd.f32 %v1596, %v1185
  %s1602 = scalar_lea.vmem [#allocation3], 10
  %1603 = vst [vmem:[%s1602] sm:$0x3] %v1601
  %1604 = vmatprep.subr.bf16.mxu0 0
  %1605 = vmatpush1.bf16.msra.mxu0 0
  %1606 = vmatprep.subr.bf16.mxu0 0
  %1607 = vmatpush1.bf16.msra.mxu0 0
  %1608 = vmatprep.subr.bf16.mxu0 0
  %1609 = vmatpush1.bf16.msra.mxu0 0
  %1610 = vmatprep.subr.bf16.mxu0 0
  %1611 = vmatpush1.bf16.msra.mxu0 0
  %1612 = vmatprep.subr.bf16.mxu0 0
  %1613 = vmatpush1.bf16.msra.mxu0 0
  %1614 = vmatprep.subr.bf16.mxu0 0
  %1615 = vmatpush1.bf16.msra.mxu0 0
  %1616 = vmatprep.subr.bf16.mxu0 0
  %1617 = vmatpush1.bf16.msra.mxu0 %v1083
  %1618 = vmatprep.subr.bf16.mxu0 0
  %1619 = vmatpush1.bf16.msra.mxu0 %v1082
  %1620 = vmatprep.subr.bf16.mxu0 0
  %1621 = vmatpush2.bf16.msra.mxu0 0
  %1622 = vmatprep.subr.bf16.mxu0 0
  %1623 = vmatpush2.bf16.msra.mxu0 0
  %1624 = vmatprep.subr.bf16.mxu0 0
  %1625 = vmatpush2.bf16.msra.mxu0 0
  %1626 = vmatprep.subr.bf16.mxu0 0
  %1627 = vmatpush2.bf16.msra.mxu0 0
  %1628 = vmatprep.subr.bf16.mxu0 0
  %1629 = vmatpush2.bf16.msra.mxu0 0
  %1630 = vmatprep.subr.bf16.mxu0 0
  %1631 = vmatpush2.bf16.msra.mxu0 0
  %1632 = vmatprep.subr.bf16.mxu0 0
  %1633 = vmatpush2.bf16.msra.mxu0 0
  %1634 = vmatprep.subr.bf16.mxu0 0
  %1635 = vmatpush2.bf16.msra.mxu0 0
  %1636 = vmatprep.mubr.bf16.mxu0 0
  %1637 = vmatmul.mubr.bf16.gmra.mxu0 %v627
  %v1638 = vpop.f32.mrf.mxu0
  %v1639 = vadd.f32 0.0, %v1638
  %v1640 = vpop.f32.mrf.mxu0
  %v1641 = vpop.f32.mrf.mxu0
  %v1642 = vpop.f32.mrf.mxu0
  %1643 = vdwg.mxu0
  %1644 = vmatprep.subr.bf16.mxu0 0
  %1645 = vmatpush1.bf16.msra.mxu0 0
  %1646 = vmatprep.subr.bf16.mxu0 0
  %1647 = vmatpush1.bf16.msra.mxu0 0
  %1648 = vmatprep.subr.bf16.mxu0 0
  %1649 = vmatpush1.bf16.msra.mxu0 0
  %1650 = vmatprep.subr.bf16.mxu0 0
  %1651 = vmatpush1.bf16.msra.mxu0 0
  %1652 = vmatprep.subr.bf16.mxu0 0
  %1653 = vmatpush1.bf16.msra.mxu0 0
  %1654 = vmatprep.subr.bf16.mxu0 0
  %1655 = vmatpush1.bf16.msra.mxu0 0
  %1656 = vmatprep.subr.bf16.mxu0 0
  %1657 = vmatpush1.bf16.msra.mxu0 %v1138
  %1658 = vmatprep.subr.bf16.mxu0 0
  %1659 = vmatpush1.bf16.msra.mxu0 %v1137
  %1660 = vmatprep.subr.bf16.mxu0 0
  %1661 = vmatpush2.bf16.msra.mxu0 0
  %1662 = vmatprep.subr.bf16.mxu0 0
  %1663 = vmatpush2.bf16.msra.mxu0 0
  %1664 = vmatprep.subr.bf16.mxu0 0
  %1665 = vmatpush2.bf16.msra.mxu0 0
  %1666 = vmatprep.subr.bf16.mxu0 0
  %1667 = vmatpush2.bf16.msra.mxu0 0
  %1668 = vmatprep.subr.bf16.mxu0 0
  %1669 = vmatpush2.bf16.msra.mxu0 0
  %1670 = vmatprep.subr.bf16.mxu0 0
  %1671 = vmatpush2.bf16.msra.mxu0 0
  %1672 = vmatprep.subr.bf16.mxu0 0
  %1673 = vmatpush2.bf16.msra.mxu0 0
  %1674 = vmatprep.subr.bf16.mxu0 0
  %1675 = vmatpush2.bf16.msra.mxu0 0
  %1676 = vmatprep.mubr.bf16.mxu0 0
  %1677 = vmatmul.mubr.bf16.gmra.mxu0 %v994
  %v1678 = vpop.f32.mrf.mxu0
  %v1679 = vadd.f32 %v1639, %v1678
  %v1680 = vpop.f32.mrf.mxu0
  %v1681 = vpop.f32.mrf.mxu0
  %v1682 = vpop.f32.mrf.mxu0
  %1683 = vdwg.mxu0
  %v1684 = vadd.f32 %v1679, %v1185
  %s1685 = scalar_lea.vmem [#allocation3], 12
  %1686 = vst [vmem:[%s1685] sm:$0x3] %v1684
  %1687 = vmatprep.subr.bf16.mxu0 0
  %1688 = vmatpush1.bf16.msra.mxu0 0
  %1689 = vmatprep.subr.bf16.mxu0 0
  %1690 = vmatpush1.bf16.msra.mxu0 0
  %1691 = vmatprep.subr.bf16.mxu0 0
  %1692 = vmatpush1.bf16.msra.mxu0 0
  %1693 = vmatprep.subr.bf16.mxu0 0
  %1694 = vmatpush1.bf16.msra.mxu0 0
  %1695 = vmatprep.subr.bf16.mxu0 0
  %1696 = vmatpush1.bf16.msra.mxu0 0
  %1697 = vmatprep.subr.bf16.mxu0 0
  %1698 = vmatpush1.bf16.msra.mxu0 0
  %1699 = vmatprep.subr.bf16.mxu0 0
  %1700 = vmatpush1.bf16.msra.mxu0 %v1083
  %1701 = vmatprep.subr.bf16.mxu0 0
  %1702 = vmatpush1.bf16.msra.mxu0 %v1082
  %1703 = vmatprep.subr.bf16.mxu0 0
  %1704 = vmatpush2.bf16.msra.mxu0 0
  %1705 = vmatprep.subr.bf16.mxu0 0
  %1706 = vmatpush2.bf16.msra.mxu0 0
  %1707 = vmatprep.subr.bf16.mxu0 0
  %1708 = vmatpush2.bf16.msra.mxu0 0
  %1709 = vmatprep.subr.bf16.mxu0 0
  %1710 = vmatpush2.bf16.msra.mxu0 0
  %1711 = vmatprep.subr.bf16.mxu0 0
  %1712 = vmatpush2.bf16.msra.mxu0 0
  %1713 = vmatprep.subr.bf16.mxu0 0
  %1714 = vmatpush2.bf16.msra.mxu0 0
  %1715 = vmatprep.subr.bf16.mxu0 0
  %1716 = vmatpush2.bf16.msra.mxu0 0
  %1717 = vmatprep.subr.bf16.mxu0 0
  %1718 = vmatpush2.bf16.msra.mxu0 0
  %1719 = vmatprep.mubr.bf16.mxu0 0
  %1720 = vmatmul.mubr.bf16.gmra.mxu0 %v552
  %v1721 = vpop.f32.mrf.mxu0
  %v1722 = vadd.f32 0.0, %v1721
  %v1723 = vpop.f32.mrf.mxu0
  %v1724 = vpop.f32.mrf.mxu0
  %v1725 = vpop.f32.mrf.mxu0
  %1726 = vdwg.mxu0
  %1727 = vmatprep.subr.bf16.mxu0 0
  %1728 = vmatpush1.bf16.msra.mxu0 0
  %1729 = vmatprep.subr.bf16.mxu0 0
  %1730 = vmatpush1.bf16.msra.mxu0 0
  %1731 = vmatprep.subr.bf16.mxu0 0
  %1732 = vmatpush1.bf16.msra.mxu0 0
  %1733 = vmatprep.subr.bf16.mxu0 0
  %1734 = vmatpush1.bf16.msra.mxu0 0
  %1735 = vmatprep.subr.bf16.mxu0 0
  %1736 = vmatpush1.bf16.msra.mxu0 0
  %1737 = vmatprep.subr.bf16.mxu0 0
  %1738 = vmatpush1.bf16.msra.mxu0 0
  %1739 = vmatprep.subr.bf16.mxu0 0
  %1740 = vmatpush1.bf16.msra.mxu0 %v1138
  %1741 = vmatprep.subr.bf16.mxu0 0
  %1742 = vmatpush1.bf16.msra.mxu0 %v1137
  %1743 = vmatprep.subr.bf16.mxu0 0
  %1744 = vmatpush2.bf16.msra.mxu0 0
  %1745 = vmatprep.subr.bf16.mxu0 0
  %1746 = vmatpush2.bf16.msra.mxu0 0
  %1747 = vmatprep.subr.bf16.mxu0 0
  %1748 = vmatpush2.bf16.msra.mxu0 0
  %1749 = vmatprep.subr.bf16.mxu0 0
  %1750 = vmatpush2.bf16.msra.mxu0 0
  %1751 = vmatprep.subr.bf16.mxu0 0
  %1752 = vmatpush2.bf16.msra.mxu0 0
  %1753 = vmatprep.subr.bf16.mxu0 0
  %1754 = vmatpush2.bf16.msra.mxu0 0
  %1755 = vmatprep.subr.bf16.mxu0 0
  %1756 = vmatpush2.bf16.msra.mxu0 0
  %1757 = vmatprep.subr.bf16.mxu0 0
  %1758 = vmatpush2.bf16.msra.mxu0 0
  %1759 = vmatprep.mubr.bf16.mxu0 0
  %1760 = vmatmul.mubr.bf16.gmra.mxu0 %v1087
  %v1761 = vpop.f32.mrf.mxu0
  %v1762 = vadd.f32 %v1722, %v1761
  %v1763 = vpop.f32.mrf.mxu0
  %v1764 = vpop.f32.mrf.mxu0
  %v1765 = vpop.f32.mrf.mxu0
  %1766 = vdwg.mxu0
  %v1767 = vadd.f32 %v1762, %v1185
  %s1768 = scalar_lea.vmem [#allocation3], 14
  %1769 = vst [vmem:[%s1768] sm:$0x3] %v1767
  %v1770 = vld [vmem:[%s6] sm:$0xf]
  %v1771 = vld [vmem:[%s6 + $0x4] sm:$0xf]
  %v1772 = vld [vmem:[%s6 + $0x8] sm:$0xf]
  %v1773 = vld [vmem:[%s6 + $0xc] sm:$0xf]
  %v1774 = vld [vmem:[#allocation3] sm:$0x3]
  %v1775 = vld [vmem:[%s1768] sm:$0x3]
  %v1776 = vsel %vm456, %v1774, %v1775
  %v1781 = vunpack.c.l.b16 %v1770
  %v1782 = vunpack.c.l.b16 %v1771
  %v1783 = vunpack.c.l.b16 %v1772
  %v1784 = vunpack.c.l.b16 %v1773
  %v1785 = vpack.c.b16 %v1782, %v1781
  %v1786 = vpack.c.b16 %v1784, %v1783
  %1789 = vmatprep.subr.bf16.mxu0 0
  %1790 = vmatpush1.bf16.msra.mxu0 0
  %1791 = vmatprep.subr.bf16.mxu0 0
  %1792 = vmatpush1.bf16.msra.mxu0 0
  %1793 = vmatprep.subr.bf16.mxu0 0
  %1794 = vmatpush1.bf16.msra.mxu0 0
  %1795 = vmatprep.subr.bf16.mxu0 0
  %1796 = vmatpush1.bf16.msra.mxu0 0
  %1797 = vmatprep.subr.bf16.mxu0 0
  %1798 = vmatpush1.bf16.msra.mxu0 0
  %1799 = vmatprep.subr.bf16.mxu0 0
  %1800 = vmatpush1.bf16.msra.mxu0 0
  %1801 = vmatprep.subr.bf16.mxu0 0
  %1802 = vmatpush1.bf16.msra.mxu0 %v1786
  %1803 = vmatprep.subr.bf16.mxu0 0
  %1804 = vmatpush1.bf16.msra.mxu0 %v1785
  %1805 = vmatprep.subr.bf16.mxu0 0
  %1806 = vmatpush2.bf16.msra.mxu0 0
  %1807 = vmatprep.subr.bf16.mxu0 0
  %1808 = vmatpush2.bf16.msra.mxu0 0
  %1809 = vmatprep.subr.bf16.mxu0 0
  %1810 = vmatpush2.bf16.msra.mxu0 0
  %1811 = vmatprep.subr.bf16.mxu0 0
  %1812 = vmatpush2.bf16.msra.mxu0 0
  %1813 = vmatprep.subr.bf16.mxu0 0
  %1814 = vmatpush2.bf16.msra.mxu0 0
  %1815 = vmatprep.subr.bf16.mxu0 0
  %1816 = vmatpush2.bf16.msra.mxu0 0
  %1817 = vmatprep.subr.bf16.mxu0 0
  %1818 = vmatpush2.bf16.msra.mxu0 0
  %1819 = vmatprep.subr.bf16.mxu0 0
  %1820 = vmatpush2.bf16.msra.mxu0 0
  %1821 = vmatprep.mubr.bf16.mxu0 0
  %1822 = vmatmul.mubr.bf16.gmra.mxu0 %v477
  %v1823 = vpop.f32.mrf.mxu0
  %v1824 = vadd.f32 0.0, %v1823
  %v1825 = vpop.f32.mrf.mxu0
  %v1826 = vpop.f32.mrf.mxu0
  %v1827 = vpop.f32.mrf.mxu0
  %1828 = vdwg.mxu0
  %v1829 = vadd.f32 %v1776, %v1824
  %v1830 = vxor.u32 %v1829, 2147483648
  %v1831 = vmul.f32 %v1830, 1.442695
  %v1832 = vpow.pop %v1831
  %v1833 = vadd.f32 %v1832, 1.0
  %v1834 = vrcp.pop %v1833
  %v1835 = vmul.f32 1.0, %v1834
  %v1836 = vtanh.pop %v1829
  %v1837 = vmul.f32 %v1835, 0.0
  %1839 = vrot.lane.b32.xlu0 %v1836, 64
  %v1840 = vpop.permute.xlu0 %1839
  %v1842 = vmul.f32 %v1835, %v1840
  %1844 = vrot.lane.b32.xlu0 %v1842, 32
  %v1845 = vpop.permute.xlu0 %1844
  %v1847 = vadd.f32 %v1837, %v1845
  %v1848 = vtanh.pop %v1847
  %1850 = vrot.lane.b32.xlu0 %v1848, 64
  %v1851 = vpop.permute.xlu0 %1850
  %v1853 = vmul.f32 %v1835, %v1851
  %v1854 = vld [vmem:[%s1270] sm:$0x3]
  %v1855 = vld [vmem:[%s1685] sm:$0x3]
  %v1856 = vsel %vm456, %v1854, %v1855
  %v1857 = vpack.c.bf16 %v1853, %v1853
  %1859 = vrot.lane.b32.xlu0 %v1857, 32
  %v1860 = vpop.permute.xlu0 %1859
  %v1862 = vsel %vm68, %v1860, 0
  %1864 = vmatprep.subr.bf16.mxu0 0
  %1865 = vmatpush1.bf16.msra.mxu0 0
  %1866 = vmatprep.subr.bf16.mxu0 0
  %1867 = vmatpush1.bf16.msra.mxu0 0
  %1868 = vmatprep.subr.bf16.mxu0 0
  %1869 = vmatpush1.bf16.msra.mxu0 0
  %1870 = vmatprep.subr.bf16.mxu0 0
  %1871 = vmatpush1.bf16.msra.mxu0 0
  %1872 = vmatprep.subr.bf16.mxu0 0
  %1873 = vmatpush1.bf16.msra.mxu0 0
  %1874 = vmatprep.subr.bf16.mxu0 0
  %1875 = vmatpush1.bf16.msra.mxu0 0
  %1876 = vmatprep.subr.bf16.mxu0 0
  %1877 = vmatpush1.bf16.msra.mxu0 %v1786
  %1878 = vmatprep.subr.bf16.mxu0 0
  %1879 = vmatpush1.bf16.msra.mxu0 %v1785
  %1880 = vmatprep.subr.bf16.mxu0 0
  %1881 = vmatpush2.bf16.msra.mxu0 0
  %1882 = vmatprep.subr.bf16.mxu0 0
  %1883 = vmatpush2.bf16.msra.mxu0 0
  %1884 = vmatprep.subr.bf16.mxu0 0
  %1885 = vmatpush2.bf16.msra.mxu0 0
  %1886 = vmatprep.subr.bf16.mxu0 0
  %1887 = vmatpush2.bf16.msra.mxu0 0
  %1888 = vmatprep.subr.bf16.mxu0 0
  %1889 = vmatpush2.bf16.msra.mxu0 0
  %1890 = vmatprep.subr.bf16.mxu0 0
  %1891 = vmatpush2.bf16.msra.mxu0 0
  %1892 = vmatprep.subr.bf16.mxu0 0
  %1893 = vmatpush2.bf16.msra.mxu0 0
  %1894 = vmatprep.subr.bf16.mxu0 0
  %1895 = vmatpush2.bf16.msra.mxu0 0
  %1896 = vmatprep.mubr.bf16.mxu0 0
  %1897 = vmatmul.mubr.bf16.gmra.mxu0 %v1862
  %v1898 = vpop.f32.mrf.mxu0
  %v1899 = vadd.f32 0.0, %v1898
  %v1900 = vpop.f32.mrf.mxu0
  %v1901 = vpop.f32.mrf.mxu0
  %v1902 = vpop.f32.mrf.mxu0
  %1903 = vdwg.mxu0
  %v1904 = vadd.f32 %v1856, %v1899
  %v1905 = vxor.u32 %v1904, 2147483648
  %v1906 = vmul.f32 %v1905, 1.442695
  %v1907 = vpow.pop %v1906
  %v1908 = vadd.f32 %v1907, 1.0
  %v1909 = vrcp.pop %v1908
  %v1910 = vmul.f32 1.0, %v1909
  %v1911 = vtanh.pop %v1904
  %v1912 = vmul.f32 %v1910, %v1847
  %1914 = vrot.lane.b32.xlu0 %v1911, 64
  %v1915 = vpop.permute.xlu0 %1914
  %v1917 = vmul.f32 %v1910, %v1915
  %1919 = vrot.lane.b32.xlu0 %v1917, 32
  %v1920 = vpop.permute.xlu0 %1919
  %v1922 = vadd.f32 %v1912, %v1920
  %v1923 = vtanh.pop %v1922
  %1925 = vrot.lane.b32.xlu0 %v1923, 64
  %v1926 = vpop.permute.xlu0 %1925
  %v1928 = vmul.f32 %v1910, %v1926
  %v1929 = vld [vmem:[%s1353] sm:$0x3]
  %v1930 = vld [vmem:[%s1602] sm:$0x3]
  %v1931 = vsel %vm456, %v1929, %v1930
  %v1932 = vpack.c.bf16 %v1928, %v1928
  %1934 = vrot.lane.b32.xlu0 %v1932, 32
  %v1935 = vpop.permute.xlu0 %1934
  %v1937 = vsel %vm68, %v1935, 0
  %1939 = vmatprep.subr.bf16.mxu0 0
  %1940 = vmatpush1.bf16.msra.mxu0 0
  %1941 = vmatprep.subr.bf16.mxu0 0
  %1942 = vmatpush1.bf16.msra.mxu0 0
  %1943 = vmatprep.subr.bf16.mxu0 0
  %1944 = vmatpush1.bf16.msra.mxu0 0
  %1945 = vmatprep.subr.bf16.mxu0 0
  %1946 = vmatpush1.bf16.msra.mxu0 0
  %1947 = vmatprep.subr.bf16.mxu0 0
  %1948 = vmatpush1.bf16.msra.mxu0 0
  %1949 = vmatprep.subr.bf16.mxu0 0
  %1950 = vmatpush1.bf16.msra.mxu0 0
  %1951 = vmatprep.subr.bf16.mxu0 0
  %1952 = vmatpush1.bf16.msra.mxu0 %v1786
  %1953 = vmatprep.subr.bf16.mxu0 0
  %1954 = vmatpush1.bf16.msra.mxu0 %v1785
  %1955 = vmatprep.subr.bf16.mxu0 0
  %1956 = vmatpush2.bf16.msra.mxu0 0
  %1957 = vmatprep.subr.bf16.mxu0 0
  %1958 = vmatpush2.bf16.msra.mxu0 0
  %1959 = vmatprep.subr.bf16.mxu0 0
  %1960 = vmatpush2.bf16.msra.mxu0 0
  %1961 = vmatprep.subr.bf16.mxu0 0
  %1962 = vmatpush2.bf16.msra.mxu0 0
  %1963 = vmatprep.subr.bf16.mxu0 0
  %1964 = vmatpush2.bf16.msra.mxu0 0
  %1965 = vmatprep.subr.bf16.mxu0 0
  %1966 = vmatpush2.bf16.msra.mxu0 0
  %1967 = vmatprep.subr.bf16.mxu0 0
  %1968 = vmatpush2.bf16.msra.mxu0 0
  %1969 = vmatprep.subr.bf16.mxu0 0
  %1970 = vmatpush2.bf16.msra.mxu0 0
  %1971 = vmatprep.mubr.bf16.mxu0 0
  %1972 = vmatmul.mubr.bf16.gmra.mxu0 %v1937
  %v1973 = vpop.f32.mrf.mxu0
  %v1974 = vadd.f32 0.0, %v1973
  %v1975 = vpop.f32.mrf.mxu0
  %v1976 = vpop.f32.mrf.mxu0
  %v1977 = vpop.f32.mrf.mxu0
  %1978 = vdwg.mxu0
  %v1979 = vadd.f32 %v1931, %v1974
  %v1980 = vxor.u32 %v1979, 2147483648
  %v1981 = vmul.f32 %v1980, 1.442695
  %v1982 = vpow.pop %v1981
  %v1983 = vadd.f32 %v1982, 1.0
  %v1984 = vrcp.pop %v1983
  %v1985 = vmul.f32 1.0, %v1984
  %v1986 = vtanh.pop %v1979
  %v1987 = vmul.f32 %v1985, %v1922
  %1989 = vrot.lane.b32.xlu0 %v1986, 64
  %v1990 = vpop.permute.xlu0 %1989
  %v1992 = vmul.f32 %v1985, %v1990
  %1994 = vrot.lane.b32.xlu0 %v1992, 32
  %v1995 = vpop.permute.xlu0 %1994
  %v1997 = vadd.f32 %v1987, %v1995
  %v1998 = vtanh.pop %v1997
  %2000 = vrot.lane.b32.xlu0 %v1998, 64
  %v2001 = vpop.permute.xlu0 %2000
  %v2003 = vmul.f32 %v1985, %v2001
  %v2004 = vld [vmem:[%s1436] sm:$0x3]
  %v2005 = vld [vmem:[%s1519] sm:$0x3]
  %v2006 = vsel %vm456, %v2004, %v2005
  %v2007 = vpack.c.bf16 %v2003, %v2003
  %2009 = vrot.lane.b32.xlu0 %v2007, 32
  %v2010 = vpop.permute.xlu0 %2009
  %v2012 = vsel %vm68, %v2010, 0
  %2014 = vmatprep.subr.bf16.mxu0 0
  %2015 = vmatpush1.bf16.msra.mxu0 0
  %2016 = vmatprep.subr.bf16.mxu0 0
  %2017 = vmatpush1.bf16.msra.mxu0 0
  %2018 = vmatprep.subr.bf16.mxu0 0
  %2019 = vmatpush1.bf16.msra.mxu0 0
  %2020 = vmatprep.subr.bf16.mxu0 0
  %2021 = vmatpush1.bf16.msra.mxu0 0
  %2022 = vmatprep.subr.bf16.mxu0 0
  %2023 = vmatpush1.bf16.msra.mxu0 0
  %2024 = vmatprep.subr.bf16.mxu0 0
  %2025 = vmatpush1.bf16.msra.mxu0 0
  %2026 = vmatprep.subr.bf16.mxu0 0
  %2027 = vmatpush1.bf16.msra.mxu0 %v1786
  %2028 = vmatprep.subr.bf16.mxu0 0
  %2029 = vmatpush1.bf16.msra.mxu0 %v1785
  %2030 = vmatprep.subr.bf16.mxu0 0
  %2031 = vmatpush2.bf16.msra.mxu0 0
  %2032 = vmatprep.subr.bf16.mxu0 0
  %2033 = vmatpush2.bf16.msra.mxu0 0
  %2034 = vmatprep.subr.bf16.mxu0 0
  %2035 = vmatpush2.bf16.msra.mxu0 0
  %2036 = vmatprep.subr.bf16.mxu0 0
  %2037 = vmatpush2.bf16.msra.mxu0 0
  %2038 = vmatprep.subr.bf16.mxu0 0
  %2039 = vmatpush2.bf16.msra.mxu0 0
  %2040 = vmatprep.subr.bf16.mxu0 0
  %2041 = vmatpush2.bf16.msra.mxu0 0
  %2042 = vmatprep.subr.bf16.mxu0 0
  %2043 = vmatpush2.bf16.msra.mxu0 0
  %2044 = vmatprep.subr.bf16.mxu0 0
  %2045 = vmatpush2.bf16.msra.mxu0 0
  %2046 = vmatprep.mubr.bf16.mxu0 0
  %2047 = vmatmul.mubr.bf16.gmra.mxu0 %v2012
  %v2048 = vpop.f32.mrf.mxu0
  %v2049 = vadd.f32 0.0, %v2048
  %v2050 = vpop.f32.mrf.mxu0
  %v2051 = vpop.f32.mrf.mxu0
  %v2052 = vpop.f32.mrf.mxu0
  %2053 = vdwg.mxu0
  %v2054 = vadd.f32 %v2006, %v2049
  %v2055 = vxor.u32 %v2054, 2147483648
  %v2056 = vmul.f32 %v2055, 1.442695
  %v2057 = vpow.pop %v2056
  %v2058 = vadd.f32 %v2057, 1.0
  %v2059 = vrcp.pop %v2058
  %v2060 = vmul.f32 1.0, %v2059
  %v2061 = vtanh.pop %v2054
  %v2062 = vmul.f32 %v2060, %v1997
  %2064 = vrot.lane.b32.xlu0 %v2061, 64
  %v2065 = vpop.permute.xlu0 %2064
  %v2067 = vmul.f32 %v2060, %v2065
  %2069 = vrot.lane.b32.xlu0 %v2067, 32
  %v2070 = vpop.permute.xlu0 %2069
  %v2072 = vadd.f32 %v2062, %v2070
  %v2073 = vtanh.pop %v2072
  %2075 = vrot.lane.b32.xlu0 %v2073, 64
  %v2076 = vpop.permute.xlu0 %2075
  %v2078 = vmul.f32 %v2060, %v2076
  %v2079 = vsel %vm456, %v2005, %v2004
  %v2080 = vpack.c.bf16 %v2078, %v2078
  %2082 = vrot.lane.b32.xlu0 %v2080, 32
  %v2083 = vpop.permute.xlu0 %2082
  %v2085 = vsel %vm68, %v2083, 0
  %2087 = vmatprep.subr.bf16.mxu0 0
  %2088 = vmatpush1.bf16.msra.mxu0 0
  %2089 = vmatprep.subr.bf16.mxu0 0
  %2090 = vmatpush1.bf16.msra.mxu0 0
  %2091 = vmatprep.subr.bf16.mxu0 0
  %2092 = vmatpush1.bf16.msra.mxu0 0
  %2093 = vmatprep.subr.bf16.mxu0 0
  %2094 = vmatpush1.bf16.msra.mxu0 0
  %2095 = vmatprep.subr.bf16.mxu0 0
  %2096 = vmatpush1.bf16.msra.mxu0 0
  %2097 = vmatprep.subr.bf16.mxu0 0
  %2098 = vmatpush1.bf16.msra.mxu0 0
  %2099 = vmatprep.subr.bf16.mxu0 0
  %2100 = vmatpush1.bf16.msra.mxu0 %v1786
  %2101 = vmatprep.subr.bf16.mxu0 0
  %2102 = vmatpush1.bf16.msra.mxu0 %v1785
  %2103 = vmatprep.subr.bf16.mxu0 0
  %2104 = vmatpush2.bf16.msra.mxu0 0
  %2105 = vmatprep.subr.bf16.mxu0 0
  %2106 = vmatpush2.bf16.msra.mxu0 0
  %2107 = vmatprep.subr.bf16.mxu0 0
  %2108 = vmatpush2.bf16.msra.mxu0 0
  %2109 = vmatprep.subr.bf16.mxu0 0
  %2110 = vmatpush2.bf16.msra.mxu0 0
  %2111 = vmatprep.subr.bf16.mxu0 0
  %2112 = vmatpush2.bf16.msra.mxu0 0
  %2113 = vmatprep.subr.bf16.mxu0 0
  %2114 = vmatpush2.bf16.msra.mxu0 0
  %2115 = vmatprep.subr.bf16.mxu0 0
  %2116 = vmatpush2.bf16.msra.mxu0 0
  %2117 = vmatprep.subr.bf16.mxu0 0
  %2118 = vmatpush2.bf16.msra.mxu0 0
  %2119 = vmatprep.mubr.bf16.mxu0 0
  %2120 = vmatmul.mubr.bf16.gmra.mxu0 %v2085
  %v2121 = vpop.f32.mrf.mxu0
  %v2122 = vadd.f32 0.0, %v2121
  %v2123 = vpop.f32.mrf.mxu0
  %v2124 = vpop.f32.mrf.mxu0
  %v2125 = vpop.f32.mrf.mxu0
  %2126 = vdwg.mxu0
  %v2127 = vadd.f32 %v2079, %v2122
  %v2128 = vxor.u32 %v2127, 2147483648
  %v2129 = vmul.f32 %v2128, 1.442695
  %v2130 = vpow.pop %v2129
  %v2131 = vadd.f32 %v2130, 1.0
  %v2132 = vrcp.pop %v2131
  %v2133 = vmul.f32 1.0, %v2132
  %v2134 = vtanh.pop %v2127
  %v2135 = vmul.f32 %v2133, %v2072
  %2137 = vrot.lane.b32.xlu0 %v2134, 64
  %v2138 = vpop.permute.xlu0 %2137
  %v2140 = vmul.f32 %v2133, %v2138
  %2142 = vrot.lane.b32.xlu0 %v2140, 32
  %v2143 = vpop.permute.xlu0 %2142
  %v2145 = vadd.f32 %v2135, %v2143
  %v2146 = vtanh.pop %v2145
  %2148 = vrot.lane.b32.xlu0 %v2146, 64
  %v2149 = vpop.permute.xlu0 %2148
  %v2151 = vmul.f32 %v2133, %v2149
  %v2152 = vsel %vm456, %v1930, %v1929
  %v2153 = vpack.c.bf16 %v2151, %v2151
  %2155 = vrot.lane.b32.xlu0 %v2153, 32
  %v2156 = vpop.permute.xlu0 %2155
  %v2158 = vsel %vm68, %v2156, 0
  %2160 = vmatprep.subr.bf16.mxu0 0
  %2161 = vmatpush1.bf16.msra.mxu0 0
  %2162 = vmatprep.subr.bf16.mxu0 0
  %2163 = vmatpush1.bf16.msra.mxu0 0
  %2164 = vmatprep.subr.bf16.mxu0 0
  %2165 = vmatpush1.bf16.msra.mxu0 0
  %2166 = vmatprep.subr.bf16.mxu0 0
  %2167 = vmatpush1.bf16.msra.mxu0 0
  %2168 = vmatprep.subr.bf16.mxu0 0
  %2169 = vmatpush1.bf16.msra.mxu0 0
  %2170 = vmatprep.subr.bf16.mxu0 0
  %2171 = vmatpush1.bf16.msra.mxu0 0
  %2172 = vmatprep.subr.bf16.mxu0 0
  %2173 = vmatpush1.bf16.msra.mxu0 %v1786
  %2174 = vmatprep.subr.bf16.mxu0 0
  %2175 = vmatpush1.bf16.msra.mxu0 %v1785
  %2176 = vmatprep.subr.bf16.mxu0 0
  %2177 = vmatpush2.bf16.msra.mxu0 0
  %2178 = vmatprep.subr.bf16.mxu0 0
  %2179 = vmatpush2.bf16.msra.mxu0 0
  %2180 = vmatprep.subr.bf16.mxu0 0
  %2181 = vmatpush2.bf16.msra.mxu0 0
  %2182 = vmatprep.subr.bf16.mxu0 0
  %2183 = vmatpush2.bf16.msra.mxu0 0
  %2184 = vmatprep.subr.bf16.mxu0 0
  %2185 = vmatpush2.bf16.msra.mxu0 0
  %2186 = vmatprep.subr.bf16.mxu0 0
  %2187 = vmatpush2.bf16.msra.mxu0 0
  %2188 = vmatprep.subr.bf16.mxu0 0
  %2189 = vmatpush2.bf16.msra.mxu0 0
  %2190 = vmatprep.subr.bf16.mxu0 0
  %2191 = vmatpush2.bf16.msra.mxu0 0
  %2192 = vmatprep.mubr.bf16.mxu0 0
  %2193 = vmatmul.mubr.bf16.gmra.mxu0 %v2158
  %v2194 = vpop.f32.mrf.mxu0
  %v2195 = vadd.f32 0.0, %v2194
  %v2196 = vpop.f32.mrf.mxu0
  %v2197 = vpop.f32.mrf.mxu0
  %v2198 = vpop.f32.mrf.mxu0
  %2199 = vdwg.mxu0
  %v2200 = vadd.f32 %v2152, %v2195
  %v2201 = vxor.u32 %v2200, 2147483648
  %v2202 = vmul.f32 %v2201, 1.442695
  %v2203 = vpow.pop %v2202
  %v2204 = vadd.f32 %v2203, 1.0
  %v2205 = vrcp.pop %v2204
  %v2206 = vmul.f32 1.0, %v2205
  %v2207 = vtanh.pop %v2200
  %v2208 = vmul.f32 %v2206, %v2145
  %2210 = vrot.lane.b32.xlu0 %v2207, 64
  %v2211 = vpop.permute.xlu0 %2210
  %v2213 = vmul.f32 %v2206, %v2211
  %2215 = vrot.lane.b32.xlu0 %v2213, 32
  %v2216 = vpop.permute.xlu0 %2215
  %v2218 = vadd.f32 %v2208, %v2216
  %v2219 = vtanh.pop %v2218
  %2221 = vrot.lane.b32.xlu0 %v2219, 64
  %v2222 = vpop.permute.xlu0 %2221
  %v2224 = vmul.f32 %v2206, %v2222
  %v2225 = vsel %vm456, %v1855, %v1854
  %v2226 = vpack.c.bf16 %v2224, %v2224
  %2228 = vrot.lane.b32.xlu0 %v2226, 32
  %v2229 = vpop.permute.xlu0 %2228
  %v2231 = vsel %vm68, %v2229, 0
  %2233 = vmatprep.subr.bf16.mxu0 0
  %2234 = vmatpush1.bf16.msra.mxu0 0
  %2235 = vmatprep.subr.bf16.mxu0 0
  %2236 = vmatpush1.bf16.msra.mxu0 0
  %2237 = vmatprep.subr.bf16.mxu0 0
  %2238 = vmatpush1.bf16.msra.mxu0 0
  %2239 = vmatprep.subr.bf16.mxu0 0
  %2240 = vmatpush1.bf16.msra.mxu0 0
  %2241 = vmatprep.subr.bf16.mxu0 0
  %2242 = vmatpush1.bf16.msra.mxu0 0
  %2243 = vmatprep.subr.bf16.mxu0 0
  %2244 = vmatpush1.bf16.msra.mxu0 0
  %2245 = vmatprep.subr.bf16.mxu0 0
  %2246 = vmatpush1.bf16.msra.mxu0 %v1786
  %2247 = vmatprep.subr.bf16.mxu0 0
  %2248 = vmatpush1.bf16.msra.mxu0 %v1785
  %2249 = vmatprep.subr.bf16.mxu0 0
  %2250 = vmatpush2.bf16.msra.mxu0 0
  %2251 = vmatprep.subr.bf16.mxu0 0
  %2252 = vmatpush2.bf16.msra.mxu0 0
  %2253 = vmatprep.subr.bf16.mxu0 0
  %2254 = vmatpush2.bf16.msra.mxu0 0
  %2255 = vmatprep.subr.bf16.mxu0 0
  %2256 = vmatpush2.bf16.msra.mxu0 0
  %2257 = vmatprep.subr.bf16.mxu0 0
  %2258 = vmatpush2.bf16.msra.mxu0 0
  %2259 = vmatprep.subr.bf16.mxu0 0
  %2260 = vmatpush2.bf16.msra.mxu0 0
  %2261 = vmatprep.subr.bf16.mxu0 0
  %2262 = vmatpush2.bf16.msra.mxu0 0
  %2263 = vmatprep.subr.bf16.mxu0 0
  %2264 = vmatpush2.bf16.msra.mxu0 0
  %2265 = vmatprep.mubr.bf16.mxu0 0
  %2266 = vmatmul.mubr.bf16.gmra.mxu0 %v2231
  %v2267 = vpop.f32.mrf.mxu0
  %v2268 = vadd.f32 0.0, %v2267
  %v2269 = vpop.f32.mrf.mxu0
  %v2270 = vpop.f32.mrf.mxu0
  %v2271 = vpop.f32.mrf.mxu0
  %2272 = vdwg.mxu0
  %v2273 = vadd.f32 %v2225, %v2268
  %v2274 = vxor.u32 %v2273, 2147483648
  %v2275 = vmul.f32 %v2274, 1.442695
  %v2276 = vpow.pop %v2275
  %v2277 = vadd.f32 %v2276, 1.0
  %v2278 = vrcp.pop %v2277
  %v2279 = vmul.f32 1.0, %v2278
  %v2280 = vtanh.pop %v2273
  %v2281 = vmul.f32 %v2279, %v2218
  %2283 = vrot.lane.b32.xlu0 %v2280, 64
  %v2284 = vpop.permute.xlu0 %2283
  %v2286 = vmul.f32 %v2279, %v2284
  %2288 = vrot.lane.b32.xlu0 %v2286, 32
  %v2289 = vpop.permute.xlu0 %2288
  %v2291 = vadd.f32 %v2281, %v2289
  %v2292 = vtanh.pop %v2291
  %2294 = vrot.lane.b32.xlu0 %v2292, 64
  %v2295 = vpop.permute.xlu0 %2294
  %v2297 = vmul.f32 %v2279, %v2295
  %v2298 = vsel %vm456, %v1775, %v1774
  %v2299 = vpack.c.bf16 %v2297, %v2297
  %2301 = vrot.lane.b32.xlu0 %v2299, 32
  %v2302 = vpop.permute.xlu0 %2301
  %v2304 = vsel %vm68, %v2302, 0
  %2306 = vmatprep.subr.bf16.mxu0 0
  %2307 = vmatpush1.bf16.msra.mxu0 0
  %2308 = vmatprep.subr.bf16.mxu0 0
  %2309 = vmatpush1.bf16.msra.mxu0 0
  %2310 = vmatprep.subr.bf16.mxu0 0
  %2311 = vmatpush1.bf16.msra.mxu0 0
  %2312 = vmatprep.subr.bf16.mxu0 0
  %2313 = vmatpush1.bf16.msra.mxu0 0
  %2314 = vmatprep.subr.bf16.mxu0 0
  %2315 = vmatpush1.bf16.msra.mxu0 0
  %2316 = vmatprep.subr.bf16.mxu0 0
  %2317 = vmatpush1.bf16.msra.mxu0 0
  %2318 = vmatprep.subr.bf16.mxu0 0
  %2319 = vmatpush1.bf16.msra.mxu0 %v1786
  %2320 = vmatprep.subr.bf16.mxu0 0
  %2321 = vmatpush1.bf16.msra.mxu0 %v1785
  %2322 = vmatprep.subr.bf16.mxu0 0
  %2323 = vmatpush2.bf16.msra.mxu0 0
  %2324 = vmatprep.subr.bf16.mxu0 0
  %2325 = vmatpush2.bf16.msra.mxu0 0
  %2326 = vmatprep.subr.bf16.mxu0 0
  %2327 = vmatpush2.bf16.msra.mxu0 0
  %2328 = vmatprep.subr.bf16.mxu0 0
  %2329 = vmatpush2.bf16.msra.mxu0 0
  %2330 = vmatprep.subr.bf16.mxu0 0
  %2331 = vmatpush2.bf16.msra.mxu0 0
  %2332 = vmatprep.subr.bf16.mxu0 0
  %2333 = vmatpush2.bf16.msra.mxu0 0
  %2334 = vmatprep.subr.bf16.mxu0 0
  %2335 = vmatpush2.bf16.msra.mxu0 0
  %2336 = vmatprep.subr.bf16.mxu0 0
  %2337 = vmatpush2.bf16.msra.mxu0 0
  %2338 = vmatprep.mubr.bf16.mxu0 0
  %2339 = vmatmul.mubr.bf16.gmra.mxu0 %v2304
  %v2340 = vpop.f32.mrf.mxu0
  %v2341 = vadd.f32 0.0, %v2340
  %v2342 = vpop.f32.mrf.mxu0
  %v2343 = vpop.f32.mrf.mxu0
  %v2344 = vpop.f32.mrf.mxu0
  %2345 = vdwg.mxu0
  %v2346 = vadd.f32 %v2298, %v2341
  %v2347 = vxor.u32 %v2346, 2147483648
  %v2348 = vmul.f32 %v2347, 1.442695
  %v2349 = vpow.pop %v2348
  %v2350 = vadd.f32 %v2349, 1.0
  %v2351 = vrcp.pop %v2350
  %v2352 = vmul.f32 1.0, %v2351
  %v2353 = vtanh.pop %v2346
  %v2354 = vmul.f32 %v2352, %v2291
  %2356 = vrot.lane.b32.xlu0 %v2353, 64
  %v2357 = vpop.permute.xlu0 %2356
  %v2359 = vmul.f32 %v2352, %v2357
  %2361 = vrot.lane.b32.xlu0 %v2359, 32
  %v2362 = vpop.permute.xlu0 %2361
  %v2364 = vadd.f32 %v2354, %v2362
  %v2365 = vtanh.pop %v2364
  %2367 = vrot.lane.b32.xlu0 %v2365, 64
  %v2368 = vpop.permute.xlu0 %2367
  %v2370 = vmul.f32 %v2352, %v2368
  %v2371 = vld [vmem:[%s8] sm:$0xff]
  %v2372 = vld [vmem:[%s8 + $0x8] sm:$0xff]
  %v2373 = vld [vmem:[%s8 + $0x10] sm:$0xff]
  %v2374 = vld [vmem:[%s8 + $0x18] sm:$0xff]
  %v2375 = vld [vmem:[%s9] sm:$0x1]
  %v2377 = vlaneseq
  %v2378 = vshrl.u32 %v2377, 7
  %v2379 = vsub.s32 0, %v2378
  %v2380 = vrot.slane %v2375, %v2379
  %2383 = vrot.lane.b32.xlu0 %v2370, 32
  %v2384 = vpop.permute.xlu0 %2383
  %v2385 = vsel %vm68, %v2384, 0
  %2387 = vmatprep.subr.mxu0 0.0
  %2388 = vmatpush1.msra.mxu0 0.0
  %2389 = vmatprep.subr.mxu0 0.0
  %2390 = vmatpush1.msra.mxu0 0.0
  %2391 = vmatprep.subr.mxu0 0.0
  %2392 = vmatpush1.msra.mxu0 0.0
  %2393 = vmatprep.subr.mxu0 0.0
  %2394 = vmatpush1.msra.mxu0 0.0
  %2395 = vmatprep.subr.mxu0 0.0
  %2396 = vmatpush1.msra.mxu0 0.0
  %2397 = vmatprep.subr.mxu0 0.0
  %2398 = vmatpush1.msra.mxu0 0.0
  %2399 = vmatprep.subr.mxu0 0.0
  %2400 = vmatpush1.msra.mxu0 0.0
  %2401 = vmatprep.subr.mxu0 0.0
  %2402 = vmatpush1.msra.mxu0 0.0
  %2403 = vmatprep.subr.mxu0 0.0
  %2404 = vmatpush1.msra.mxu0 0.0
  %2405 = vmatprep.subr.mxu0 0.0
  %2406 = vmatpush1.msra.mxu0 0.0
  %2407 = vmatprep.subr.mxu0 0.0
  %2408 = vmatpush1.msra.mxu0 0.0
  %2409 = vmatprep.subr.mxu0 0.0
  %2410 = vmatpush1.msra.mxu0 0.0
  %2411 = vmatprep.subr.mxu0 0.0
  %2412 = vmatpush1.msra.mxu0 %v2374
  %2413 = vmatprep.subr.mxu0 0.0
  %2414 = vmatpush1.msra.mxu0 %v2373
  %2415 = vmatprep.subr.mxu0 0.0
  %2416 = vmatpush1.msra.mxu0 %v2372
  %2417 = vmatprep.subr.mxu0 0.0
  %2418 = vmatpush1.msra.mxu0 %v2371
  %2419 = vmatprep.subr.mxu0 0.0
  %2420 = vmatpush2.msra.mxu0 0.0
  %2421 = vmatprep.subr.mxu0 0.0
  %2422 = vmatpush2.msra.mxu0 0.0
  %2423 = vmatprep.subr.mxu0 0.0
  %2424 = vmatpush2.msra.mxu0 0.0
  %2425 = vmatprep.subr.mxu0 0.0
  %2426 = vmatpush2.msra.mxu0 0.0
  %2427 = vmatprep.subr.mxu0 0.0
  %2428 = vmatpush2.msra.mxu0 0.0
  %2429 = vmatprep.subr.mxu0 0.0
  %2430 = vmatpush2.msra.mxu0 0.0
  %2431 = vmatprep.subr.mxu0 0.0
  %2432 = vmatpush2.msra.mxu0 0.0
  %2433 = vmatprep.subr.mxu0 0.0
  %2434 = vmatpush2.msra.mxu0 0.0
  %2435 = vmatprep.subr.mxu0 0.0
  %2436 = vmatpush2.msra.mxu0 0.0
  %2437 = vmatprep.subr.mxu0 0.0
  %2438 = vmatpush2.msra.mxu0 0.0
  %2439 = vmatprep.subr.mxu0 0.0
  %2440 = vmatpush2.msra.mxu0 0.0
  %2441 = vmatprep.subr.mxu0 0.0
  %2442 = vmatpush2.msra.mxu0 0.0
  %2443 = vmatprep.subr.mxu0 0.0
  %2444 = vmatpush2.msra.mxu0 0.0
  %2445 = vmatprep.subr.mxu0 0.0
  %2446 = vmatpush2.msra.mxu0 0.0
  %2447 = vmatprep.subr.mxu0 0.0
  %2448 = vmatpush2.msra.mxu0 0.0
  %2449 = vmatprep.subr.mxu0 0.0
  %2450 = vmatpush2.msra.mxu0 0.0
  %2451 = vmatprep.mubr.f32.mxu0 0.0
  %2452 = vmatmul.mubr.f32.gmra.mxu0 %v2385
  %v2453 = vpop.f32.mrf.mxu0
  %v2454 = vadd.f32 %v2380, %v2453
  %v2455 = vpop.f32.mrf.mxu0
  %2456 = vdwg.mxu0
  %v2457 = vmax.f32 %v2454, 0.0
  %v2458 = vld [vmem:[%s10] sm:$0xff]
  %v2459 = vld [vmem:[%s10 + $0x8] sm:$0xff]
  %v2460 = vld [vmem:[%s10 + $0x10] sm:$0xff]
  %v2461 = vld [vmem:[%s10 + $0x18] sm:$0xff]
  %v2462 = vld [vmem:[#allocation4] sm:$0x1]
  %v2464 = vlaneseq
  %v2465 = vshrl.u32 %v2464, 7
  %v2466 = vsub.s32 0, %v2465
  %v2467 = vrot.slane %v2462, %v2466
  %v2470 = vsel %vm68, %v2457, 0
  %2472 = vmatprep.subr.mxu0 0.0
  %2473 = vmatpush1.msra.mxu0 0.0
  %2474 = vmatprep.subr.mxu0 0.0
  %2475 = vmatpush1.msra.mxu0 0.0
  %2476 = vmatprep.subr.mxu0 0.0
  %2477 = vmatpush1.msra.mxu0 0.0
  %2478 = vmatprep.subr.mxu0 0.0
  %2479 = vmatpush1.msra.mxu0 0.0
  %2480 = vmatprep.subr.mxu0 0.0
  %2481 = vmatpush1.msra.mxu0 0.0
  %2482 = vmatprep.subr.mxu0 0.0
  %2483 = vmatpush1.msra.mxu0 0.0
  %2484 = vmatprep.subr.mxu0 0.0
  %2485 = vmatpush1.msra.mxu0 0.0
  %2486 = vmatprep.subr.mxu0 0.0
  %2487 = vmatpush1.msra.mxu0 0.0
  %2488 = vmatprep.subr.mxu0 0.0
  %2489 = vmatpush1.msra.mxu0 0.0
  %2490 = vmatprep.subr.mxu0 0.0
  %2491 = vmatpush1.msra.mxu0 0.0
  %2492 = vmatprep.subr.mxu0 0.0
  %2493 = vmatpush1.msra.mxu0 0.0
  %2494 = vmatprep.subr.mxu0 0.0
  %2495 = vmatpush1.msra.mxu0 0.0
  %2496 = vmatprep.subr.mxu0 0.0
  %2497 = vmatpush1.msra.mxu0 %v2461
  %2498 = vmatprep.subr.mxu0 0.0
  %2499 = vmatpush1.msra.mxu0 %v2460
  %2500 = vmatprep.subr.mxu0 0.0
  %2501 = vmatpush1.msra.mxu0 %v2459
  %2502 = vmatprep.subr.mxu0 0.0
  %2503 = vmatpush1.msra.mxu0 %v2458
  %2504 = vmatprep.subr.mxu0 0.0
  %2505 = vmatpush2.msra.mxu0 0.0
  %2506 = vmatprep.subr.mxu0 0.0
  %2507 = vmatpush2.msra.mxu0 0.0
  %2508 = vmatprep.subr.mxu0 0.0
  %2509 = vmatpush2.msra.mxu0 0.0
  %2510 = vmatprep.subr.mxu0 0.0
  %2511 = vmatpush2.msra.mxu0 0.0
  %2512 = vmatprep.subr.mxu0 0.0
  %2513 = vmatpush2.msra.mxu0 0.0
  %2514 = vmatprep.subr.mxu0 0.0
  %2515 = vmatpush2.msra.mxu0 0.0
  %2516 = vmatprep.subr.mxu0 0.0
  %2517 = vmatpush2.msra.mxu0 0.0
  %2518 = vmatprep.subr.mxu0 0.0
  %2519 = vmatpush2.msra.mxu0 0.0
  %2520 = vmatprep.subr.mxu0 0.0
  %2521 = vmatpush2.msra.mxu0 0.0
  %2522 = vmatprep.subr.mxu0 0.0
  %2523 = vmatpush2.msra.mxu0 0.0
  %2524 = vmatprep.subr.mxu0 0.0
  %2525 = vmatpush2.msra.mxu0 0.0
  %2526 = vmatprep.subr.mxu0 0.0
  %2527 = vmatpush2.msra.mxu0 0.0
  %2528 = vmatprep.subr.mxu0 0.0
  %2529 = vmatpush2.msra.mxu0 0.0
  %2530 = vmatprep.subr.mxu0 0.0
  %2531 = vmatpush2.msra.mxu0 0.0
  %2532 = vmatprep.subr.mxu0 0.0
  %2533 = vmatpush2.msra.mxu0 0.0
  %2534 = vmatprep.subr.mxu0 0.0
  %2535 = vmatpush2.msra.mxu0 0.0
  %2536 = vmatprep.mubr.f32.mxu0 0.0
  %2537 = vmatmul.mubr.f32.gmra.mxu0 %v2470
  %v2538 = vpop.f32.mrf.mxu0
  %v2539 = vadd.f32 %v2467, %v2538
  %v2540 = vpop.f32.mrf.mxu0
  %2541 = vdwg.mxu0
  %v2542 = vxor.u32 %v2539, 2147483648
  %v2543 = vmul.f32 %v2542, 1.442695
  %v2544 = vpow.pop %v2543
  %v2545 = vadd.f32 %v2544, 1.0
  %v2546 = vrcp.pop %v2545
  %v2547 = vmul.f32 1.0, %v2546
  %vm2548 = vcmask 1024
  %2549 = vst.msk [vmem:[%s12] sm:$0x3] %vm2548, %v2547
  // Predicated region
  $region50: #{yuan_forward.1} parent=0 // pred_check
    _
  $region51: #{yuan_forward.1} parent=0 // pred_check_branch
    %2551 = sbr.rel (0) target = $region53
  $region52: #{yuan_forward.1} parent=0 // pred_region
    _
  $region53: #{yuan_forward.1} parent=0 // pred_fallthru
    _
  // Predicated region
  $region54: #{yuan_forward.1} parent=0 // pred_check
    _
  $region55: #{yuan_forward.1} parent=0 // pred_check_branch
    %2553 = sbr.rel (0) target = $region57
  $region56: #{yuan_forward.1} parent=0 // pred_region
    _
  $region57: #{yuan_forward.1} parent=0 // pred_fallthru
    _

</llo_original>
